<compile_context>
chip_gen: v5e
topology: v5e:2x2
jax: 0.10.0
libtpu: 0.0.40
codegen_flags: <defaults>
</compile_context>

<pallas_src>
import functools
import math

import jax
import jax.numpy as jnp
from jax.experimental import pallas as pl
from jax.experimental.pallas import tpu as pltpu

# PINN default architecture: Layers=[3, 256, 256, 256, 256, 1], Tanh activations.
LAYERS = [3, 256, 256, 256, 256, 1]


def pinn_mlp_kernel(x_ref,
                    w1_ref, b1_ref, w2_ref, b2_ref, w3_ref, b3_ref,
                    w4_ref, b4_ref, w5_ref, b5_ref,
                    o_ref,
                    *, low_precision_tanh):
    """One row-tile (tm, 3) -> (tm, 1) of the 5-layer tanh MLP.

    Weights arrive already cast to the compute dtype (bf16 by default, f32 for
    the accuracy-check path); matmul accumulation stays f32 via
    preferred_element_type.  b1/b5 are f32 (added to the f32 accumulator); b2-b4
    are in the compute dtype and added after the downcast.  The input
    normalization is pre-folded into w1/b1, so raw (x, y, t) rows feed the first
    matmul directly.

    low_precision_tanh (static):
      True  -> tanh on the compute-dtype activation (v6e/v7x: native bf16 EUP).
      False -> tanh on the f32 accumulator, single downcast after (v5e path).
    """
    cdt = w2_ref.dtype

    x = x_ref[...].astype(cdt)                                                      # (tm, 3)

    # Layer 1: bias stays f32 (it carries the folded normalization constants).
    h = jnp.dot(x, w1_ref[...], preferred_element_type=jnp.float32) + b1_ref[...]   # (tm, 256) f32
    if low_precision_tanh:
        h = jnp.tanh(h.astype(cdt))
    else:
        h = jnp.tanh(h).astype(cdt)

    # Hidden layers 2-4: bias add in the compute dtype (half the VALU width in bf16).
    for w_ref, b_ref in ((w2_ref, b2_ref), (w3_ref, b3_ref), (w4_ref, b4_ref)):
        a = jnp.dot(h, w_ref[...], preferred_element_type=jnp.float32)              # (tm, 256) f32
        if low_precision_tanh:
            h = jnp.tanh(a.astype(cdt) + b_ref[...])
        else:
            h = jnp.tanh(a + b_ref[...]).astype(cdt)

    # Last Linear: no activation; f32 bias on the f32 accumulator.
    o_ref[...] = jnp.dot(h, w5_ref[...], preferred_element_type=jnp.float32) + b5_ref[...]


def init_params(key, layers=LAYERS):
    """Deterministic init matching the module: xavier_normal_ weights and
    PyTorch-default uniform(-1/sqrt(fan_in), 1/sqrt(fan_in)) biases.
    Weights are stored transposed to (in, out) for row-major matmul."""
    params = []
    for i in range(len(layers) - 1):
        fan_in, fan_out = layers[i], layers[i + 1]
        key, kw, kb = jax.random.split(key, 3)
        std = math.sqrt(2.0 / (fan_in + fan_out))
        w = std * jax.random.normal(kw, (fan_in, fan_out), jnp.float32)
        bound = 1.0 / math.sqrt(fan_in)
        b = jax.random.uniform(kb, (fan_out,), jnp.float32, -bound, bound)
        params.append((w, b))
    return params


def _choose_tm(N, max_tm=2048, multiple=256, target_grid=4):
    """Pick the largest row tile (multiple of 256, capped at max_tm) that keeps
    the grid at >= target_grid balanced steps (v7x has 2 TCs sharding the
    'parallel' axis), falling back to >= 2 steps, then to a single tile."""
    for target in (target_grid, 2):
        tm = (N // target) // multiple * multiple
        if tm >= multiple:
            return min(tm, max_tm)
    # Very small N: one tile, rounded up to a sublane multiple of 8.
    return max(8, -(-N // 8) * 8)


def _default_low_precision_tanh():
    """bf16 tanh only on generations with a native bf16 VPU/EUP (v6e, v7x)."""
    try:
        kind = jax.devices()[0].device_kind.lower()
    except Exception:
        return False
    return ("v6" in kind) or ("v7" in kind)


def pinn_forward(x, lbs, ubs, params, *, tm=None, compute_dtype=jnp.bfloat16,
                 low_precision_tanh=None):
    """Pallas implementation of PINN.forward: normalize -> 5-layer tanh MLP -> reshape(-1)."""
    x = x.astype(jnp.float32)
    N = x.shape[0]
    if tm is None:
        tm = _choose_tm(N)
    grid = pl.cdiv(N, tm)   # ragged last tile handled by Pallas; no jnp.pad HBM copy
    if low_precision_tanh is None:
        low_precision_tanh = _default_low_precision_tanh()

    lbs = jnp.asarray(lbs, jnp.float32)
    ubs = jnp.asarray(ubs, jnp.float32)
    # Normalization exactly as written in PINN.forward:
    #   x_norm = 2 * (x - LBs / (UBs - LBs)) - 1.0
    # folded once (in f32, wrapper side) into the first Linear layer:
    #   x_norm @ w1 + b1 == x @ (2*w1) + (b1 - (2*shift + 1) @ w1)
    shift = lbs / (ubs - lbs)

    (w1, b1), (w2, b2), (w3, b3), (w4, b4), (w5, b5) = params
    w1f = 2.0 * w1
    b1f = b1 - (2.0 * shift + 1.0) @ w1

    def wcast(w):
        return w.astype(compute_dtype)

    # b1/b5 stay f32 (added to the f32 MXU accumulator); b2-b4 go to the compute
    # dtype and are added after the downcast inside the kernel.
    operands = [
        wcast(w1f), b1f.reshape(1, -1),
        wcast(w2), wcast(b2).reshape(1, -1),
        wcast(w3), wcast(b3).reshape(1, -1),
        wcast(w4), wcast(b4).reshape(1, -1),
        wcast(w5), b5.reshape(1, -1),
    ]

    def resident(a):
        # Constant block index -> Pallas keeps the block resident in VMEM and
        # skips re-DMAing it on subsequent grid steps (weights streamed once).
        return pl.BlockSpec(a.shape, lambda i: (0, 0))

    # Advisory cost hint so XLA can schedule/overlap this call inside the full
    # PINN training graph.
    flops = 2 * N * sum(w.shape[0] * w.shape[1] for (w, _) in params)
    transcendentals = N * sum(w.shape[1] for (w, _) in params[:-1])
    bytes_accessed = (x.size * 4 + N * 4
                      + sum(int(a.size) * a.dtype.itemsize for a in operands))
    cost = pl.CostEstimate(flops=flops, transcendentals=transcendentals,
                           bytes_accessed=bytes_accessed)

    kernel = functools.partial(pinn_mlp_kernel, low_precision_tanh=low_precision_tanh)

    out = pl.pallas_call(
        kernel,
        out_shape=jax.ShapeDtypeStruct((N, 1), jnp.float32),
        grid=(grid,),
        in_specs=[pl.BlockSpec((tm, 3), lambda i: (i, 0))] + [resident(a) for a in operands],
        out_specs=pl.BlockSpec((tm, 1), lambda i: (i, 0)),
        compiler_params=pltpu.CompilerParams(dimension_semantics=("parallel",)),
        cost_estimate=cost,
    )(x, *operands)
    return out[:, 0]   # matches .reshape(-1)


def pinn_forward_ref(x, lbs, ubs, params):
    """Pure-JAX f32 reference of the same forward pass (for verification)."""
    h = 2.0 * (x.astype(jnp.float32) - (lbs / (ubs - lbs))) - 1.0
    for i, (w, b) in enumerate(params):
        h = h @ w + b
        if i != len(params) - 1:
            h = jnp.tanh(h)
    return h.reshape(-1)


if __name__ == "__main__":
    key = jax.random.PRNGKey(0)
    k_param, k_x = jax.random.split(key)

    # Domain bounds [x, y, t] — same role as LBs / UBs in the module.
    LBs = jnp.array([-1.0, -1.0, 0.0], jnp.float32)
    UBs = jnp.array([1.0, 1.0, 1.0], jnp.float32)

    params = init_params(k_param, LAYERS)

    # Small batch of collocation points (N, 3).  N is deliberately NOT a multiple
    # of the tile so the ragged pl.cdiv grid path is exercised; _choose_tm picks
    # tm=256 -> grid=4, giving both v7x TensorCores two near-equal tiles.
    N = 1000
    x = jax.random.uniform(k_x, (N, 3), jnp.float32,
                           minval=LBs[None, :], maxval=UBs[None, :])

    u_ref = pinn_forward_ref(x, LBs, UBs, params)

    # f32 compute path: tight check of kernel structure + normalization fold.
    u_f32 = jax.block_until_ready(
        pinn_forward(x, LBs, UBs, params, compute_dtype=jnp.float32))
    assert u_f32.shape == (N,)
    assert jnp.allclose(u_f32, u_ref, atol=5e-3, rtol=5e-3), "f32 path mismatch vs reference"

    # bf16 MXU path (default, fast): bf16 operands with f32 accumulation,
    # checked with a correspondingly looser tolerance.  Exercise both tanh
    # orderings so the generation-gated paths are both validated.
    for lp_tanh in (True, False):
        u_bf16 = jax.block_until_ready(
            pinn_forward(x, LBs, UBs, params, low_precision_tanh=lp_tanh))
        assert u_bf16.shape == (N,)
        err = jnp.abs(u_bf16 - u_ref)
        assert float(jnp.max(err)) < 1.5e-1, "bf16 path max-abs error too large"
        assert float(jnp.sqrt(jnp.mean(err ** 2))) < 3e-2, "bf16 path RMS error too large"

    print("KERNEL_OK")
</pallas_src>

<mosaic_0001>
module attributes {stable_mosaic.version = 11 : i64} {
  func.func @pinn_mlp_kernel(%arg0: i32, %arg1: memref<256x3xf32, #tpu.memory_space<vmem>>, %arg2: memref<3x256xf32, #tpu.memory_space<vmem>>, %arg3: memref<1x256xf32, #tpu.memory_space<vmem>>, %arg4: memref<256x256xf32, #tpu.memory_space<vmem>>, %arg5: memref<1x256xf32, #tpu.memory_space<vmem>>, %arg6: memref<256x256xf32, #tpu.memory_space<vmem>>, %arg7: memref<1x256xf32, #tpu.memory_space<vmem>>, %arg8: memref<256x256xf32, #tpu.memory_space<vmem>>, %arg9: memref<1x256xf32, #tpu.memory_space<vmem>>, %arg10: memref<256x1xf32, #tpu.memory_space<vmem>>, %arg11: memref<1x1xf32, #tpu.memory_space<vmem>>, %arg12: memref<256x1xf32, #tpu.memory_space<vmem>>) attributes {dimension_semantics = [#tpu.dimension_semantics<parallel>], iteration_bounds = array<i64: 4>, scalar_prefetch = 0 : i64, scratch_operands = 0 : i64, tpu.core_type = #tpu.core_type<tc>, window_params = [{transform_indices = @transform_0, window_bounds = array<i64: 256, 3>}, {pipeline_mode = #tpu.pipeline_mode<synchronous>, transform_indices = @transform_1, window_bounds = array<i64: 3, 256>}, {pipeline_mode = #tpu.pipeline_mode<synchronous>, transform_indices = @transform_2, window_bounds = array<i64: 1, 256>}, {pipeline_mode = #tpu.pipeline_mode<synchronous>, transform_indices = @transform_3, window_bounds = array<i64: 256, 256>}, {pipeline_mode = #tpu.pipeline_mode<synchronous>, transform_indices = @transform_4, window_bounds = array<i64: 1, 256>}, {pipeline_mode = #tpu.pipeline_mode<synchronous>, transform_indices = @transform_5, window_bounds = array<i64: 256, 256>}, {pipeline_mode = #tpu.pipeline_mode<synchronous>, transform_indices = @transform_6, window_bounds = array<i64: 1, 256>}, {pipeline_mode = #tpu.pipeline_mode<synchronous>, transform_indices = @transform_7, window_bounds = array<i64: 256, 256>}, {pipeline_mode = #tpu.pipeline_mode<synchronous>, transform_indices = @transform_8, window_bounds = array<i64: 1, 256>}, {pipeline_mode = #tpu.pipeline_mode<synchronous>, transform_indices = @transform_9, window_bounds = array<i64: 256, 1>}, {pipeline_mode = #tpu.pipeline_mode<synchronous>, transform_indices = @transform_10, window_bounds = array<i64: 1, 1>}, {transform_indices = @transform_11, window_bounds = array<i64: 256, 1>}]} {
    %c0 = arith.constant 0 : index
    %c0_0 = arith.constant 0 : index
    %0 = vector.load %arg1[%c0, %c0_0] : memref<256x3xf32, #tpu.memory_space<vmem>>, vector<256x3xf32>
    %c0_1 = arith.constant 0 : index
    %c0_2 = arith.constant 0 : index
    %1 = vector.load %arg2[%c0_1, %c0_2] : memref<3x256xf32, #tpu.memory_space<vmem>>, vector<3x256xf32>
    %cst = arith.constant dense<0.000000e+00> : vector<256x256xf32>
    %2 = tpu.matmul %0, %1, %cst {dimension_numbers = #tpu.dot_dimension_numbers<[1], [0], [0], [1], [0, 0, 1, 1], [], []>} : vector<256x3xf32>, vector<3x256xf32>, vector<256x256xf32> -> vector<256x256xf32>
    %c0_3 = arith.constant 0 : index
    %c0_4 = arith.constant 0 : index
    %3 = vector.load %arg3[%c0_3, %c0_4] : memref<1x256xf32, #tpu.memory_space<vmem>>, vector<1x256xf32>
    %4 = vector.broadcast %3 : vector<1x256xf32> to vector<256x256xf32>
    %5 = arith.addf %2, %4 : vector<256x256xf32>
    %6 = math.tanh %5 : vector<256x256xf32>
    %c0_5 = arith.constant 0 : index
    %c0_6 = arith.constant 0 : index
    %7 = vector.load %arg4[%c0_5, %c0_6] : memref<256x256xf32, #tpu.memory_space<vmem>>, vector<256x256xf32>
    %cst_7 = arith.constant dense<0.000000e+00> : vector<256x256xf32>
    %8 = tpu.matmul %6, %7, %cst_7 {dimension_numbers = #tpu.dot_dimension_numbers<[1], [0], [0], [1], [0, 0, 1, 1], [], []>} : vector<256x256xf32>, vector<256x256xf32>, vector<256x256xf32> -> vector<256x256xf32>
    %c0_8 = arith.constant 0 : index
    %c0_9 = arith.constant 0 : index
    %9 = vector.load %arg5[%c0_8, %c0_9] : memref<1x256xf32, #tpu.memory_space<vmem>>, vector<1x256xf32>
    %10 = vector.broadcast %9 : vector<1x256xf32> to vector<256x256xf32>
    %11 = arith.addf %8, %10 : vector<256x256xf32>
    %12 = math.tanh %11 : vector<256x256xf32>
    %c0_10 = arith.constant 0 : index
    %c0_11 = arith.constant 0 : index
    %13 = vector.load %arg6[%c0_10, %c0_11] : memref<256x256xf32, #tpu.memory_space<vmem>>, vector<256x256xf32>
    %cst_12 = arith.constant dense<0.000000e+00> : vector<256x256xf32>
    %14 = tpu.matmul %12, %13, %cst_12 {dimension_numbers = #tpu.dot_dimension_numbers<[1], [0], [0], [1], [0, 0, 1, 1], [], []>} : vector<256x256xf32>, vector<256x256xf32>, vector<256x256xf32> -> vector<256x256xf32>
    %c0_13 = arith.constant 0 : index
    %c0_14 = arith.constant 0 : index
    %15 = vector.load %arg7[%c0_13, %c0_14] : memref<1x256xf32, #tpu.memory_space<vmem>>, vector<1x256xf32>
    %16 = vector.broadcast %15 : vector<1x256xf32> to vector<256x256xf32>
    %17 = arith.addf %14, %16 : vector<256x256xf32>
    %18 = math.tanh %17 : vector<256x256xf32>
    %c0_15 = arith.constant 0 : index
    %c0_16 = arith.constant 0 : index
    %19 = vector.load %arg8[%c0_15, %c0_16] : memref<256x256xf32, #tpu.memory_space<vmem>>, vector<256x256xf32>
    %cst_17 = arith.constant dense<0.000000e+00> : vector<256x256xf32>
    %20 = tpu.matmul %18, %19, %cst_17 {dimension_numbers = #tpu.dot_dimension_numbers<[1], [0], [0], [1], [0, 0, 1, 1], [], []>} : vector<256x256xf32>, vector<256x256xf32>, vector<256x256xf32> -> vector<256x256xf32>
    %c0_18 = arith.constant 0 : index
    %c0_19 = arith.constant 0 : index
    %21 = vector.load %arg9[%c0_18, %c0_19] : memref<1x256xf32, #tpu.memory_space<vmem>>, vector<1x256xf32>
    %22 = vector.broadcast %21 : vector<1x256xf32> to vector<256x256xf32>
    %23 = arith.addf %20, %22 : vector<256x256xf32>
    %24 = math.tanh %23 : vector<256x256xf32>
    %c0_20 = arith.constant 0 : index
    %c0_21 = arith.constant 0 : index
    %25 = vector.load %arg10[%c0_20, %c0_21] : memref<256x1xf32, #tpu.memory_space<vmem>>, vector<256x1xf32>
    %cst_22 = arith.constant dense<0.000000e+00> : vector<256x1xf32>
    %26 = tpu.matmul %24, %25, %cst_22 {dimension_numbers = #tpu.dot_dimension_numbers<[1], [0], [0], [1], [0, 0, 1, 1], [], []>} : vector<256x256xf32>, vector<256x1xf32>, vector<256x1xf32> -> vector<256x1xf32>
    %c0_23 = arith.constant 0 : index
    %c0_24 = arith.constant 0 : index
    %27 = vector.load %arg11[%c0_23, %c0_24] : memref<1x1xf32, #tpu.memory_space<vmem>>, vector<1x1xf32>
    %28 = vector.broadcast %27 : vector<1x1xf32> to vector<256x1xf32>
    %29 = arith.addf %26, %28 : vector<256x1xf32>
    %c0_25 = arith.constant 0 : index
    %c0_26 = arith.constant 0 : index
    %30 = vector.load %arg12[%c0_25, %c0_26] : memref<256x1xf32, #tpu.memory_space<vmem>>, vector<256x1xf32>
    tpu.vector_store %arg12[%c0_25, %c0_26], %29 {strides = array<i32>} : memref<256x1xf32, #tpu.memory_space<vmem>>, vector<256x1xf32>,
    return
  }
  func.func @transform_0(%arg0: i32) -> (i32, i32) {
    %c0_i32 = arith.constant 0 : i32
    %c0_i32_0 = arith.constant 0 : i32
    return %arg0, %c0_i32 : i32, i32
  }
  func.func @transform_1(%arg0: i32) -> (i32, i32) {
    %c0_i32 = arith.constant 0 : i32
    %c0_i32_0 = arith.constant 0 : i32
    %c0_i32_1 = arith.constant 0 : i32
    return %c0_i32, %c0_i32_0 : i32, i32
  }
  func.func @transform_2(%arg0: i32) -> (i32, i32) {
    %c0_i32 = arith.constant 0 : i32
    %c0_i32_0 = arith.constant 0 : i32
    %c0_i32_1 = arith.constant 0 : i32
    return %c0_i32, %c0_i32_0 : i32, i32
  }
  func.func @transform_3(%arg0: i32) -> (i32, i32) {
    %c0_i32 = arith.constant 0 : i32
    %c0_i32_0 = arith.constant 0 : i32
    %c0_i32_1 = arith.constant 0 : i32
    return %c0_i32, %c0_i32_0 : i32, i32
  }
  func.func @transform_4(%arg0: i32) -> (i32, i32) {
    %c0_i32 = arith.constant 0 : i32
    %c0_i32_0 = arith.constant 0 : i32
    %c0_i32_1 = arith.constant 0 : i32
    return %c0_i32, %c0_i32_0 : i32, i32
  }
  func.func @transform_5(%arg0: i32) -> (i32, i32) {
    %c0_i32 = arith.constant 0 : i32
    %c0_i32_0 = arith.constant 0 : i32
    %c0_i32_1 = arith.constant 0 : i32
    return %c0_i32, %c0_i32_0 : i32, i32
  }
  func.func @transform_6(%arg0: i32) -> (i32, i32) {
    %c0_i32 = arith.constant 0 : i32
    %c0_i32_0 = arith.constant 0 : i32
    %c0_i32_1 = arith.constant 0 : i32
    return %c0_i32, %c0_i32_0 : i32, i32
  }
  func.func @transform_7(%arg0: i32) -> (i32, i32) {
    %c0_i32 = arith.constant 0 : i32
    %c0_i32_0 = arith.constant 0 : i32
    %c0_i32_1 = arith.constant 0 : i32
    return %c0_i32, %c0_i32_0 : i32, i32
  }
  func.func @transform_8(%arg0: i32) -> (i32, i32) {
    %c0_i32 = arith.constant 0 : i32
    %c0_i32_0 = arith.constant 0 : i32
    %c0_i32_1 = arith.constant 0 : i32
    return %c0_i32, %c0_i32_0 : i32, i32
  }
  func.func @transform_9(%arg0: i32) -> (i32, i32) {
    %c0_i32 = arith.constant 0 : i32
    %c0_i32_0 = arith.constant 0 : i32
    %c0_i32_1 = arith.constant 0 : i32
    return %c0_i32, %c0_i32_0 : i32, i32
  }
  func.func @transform_10(%arg0: i32) -> (i32, i32) {
    %c0_i32 = arith.constant 0 : i32
    %c0_i32_0 = arith.constant 0 : i32
    %c0_i32_1 = arith.constant 0 : i32
    return %c0_i32, %c0_i32_0 : i32, i32
  }
  func.func @transform_11(%arg0: i32) -> (i32, i32) {
    %c0_i32 = arith.constant 0 : i32
    %c0_i32_0 = arith.constant 0 : i32
    return %arg0, %c0_i32 : i32, i32
  }
}

</mosaic_0001>

<llo_original>
// kernel: tpu_custom_call.1
$region0: #{tpu_custom_call.1}
  #allocation0 [shape = 'u32[]', space=smem, size = 0x4, offset = 0x4, fixed_abs, tag = 'smem constant byte address 0x4 - core index']
  #allocation1 [shape = 'u32[72,128]{1,0:T(1,128)}', space=vmem, size = 0x9000, scoped, tag = 'internal scratch']
  #allocation2 [shape = 'f32[1,1]{1,0:T(1,128)S(1)}', space=vmem, size = 0x200, scoped, tag = 'scoped memory for tpu_custom_call.1']
  %s0 = inlined_call_operand.vmem [shape: f32[1000,3], index: 0, kind: input, shape index: {}]
  %s1 = inlined_call_operand.vmem [shape: f32[3,256], index: 1, kind: input, shape index: {}]
  %s2 = inlined_call_operand.vmem [shape: f32[1,256], index: 2, kind: input, shape index: {}]
  %s3 = inlined_call_operand.vmem [shape: f32[256,256], index: 3, kind: input, shape index: {}]
  %s4 = inlined_call_operand.vmem [shape: f32[1,256], index: 4, kind: input, shape index: {}]
  %s5 = inlined_call_operand.vmem [shape: f32[256,256], index: 5, kind: input, shape index: {}]
  %s6 = inlined_call_operand.vmem [shape: f32[1,256], index: 6, kind: input, shape index: {}]
  %s7 = inlined_call_operand.hbm [shape: f32[256,256], index: 7, kind: input, shape index: {}]
  %s8 = inlined_call_operand.vmem [shape: f32[1,256], index: 8, kind: input, shape index: {}]
  %s9 = inlined_call_operand.vmem [shape: f32[256,1], index: 9, kind: input, shape index: {}]
  %s10 = inlined_call_operand.<no memory space> [shape: f32[1,1], index: 10, kind: input, shape index: {}]
  %s11 = inlined_call_operand.vmem [shape: f32[1000,1], index: 11, kind: output, shape index: {}]
  %s12 = sld [smem:[#allocation0]]
  $region129: #{tpu_custom_call.1} parent=0
    _
  %s14 = ssub.s32 1, %s12
  %s15 = scalar_select 0, %s14, %s12
  %v16 = vstv %s10
  %17 = vst [vmem:[#allocation2] sm:$0x1] %v16
  $region1: #{tpu_custom_call.1} parent=0
    #allocation3 [shape = 'u8[262144]{0}', space=vmem, size = 0x40000, scoped, tag = 'input window, operand 7, single buffered']
    #allocation4 [shape = 's32[2]{0}', space=sflag, size = 0x8, scoped, tag = 'scoped memory for tpu_custom_call.1']
    #allocation5 [shape = 'u8[262144]{0}', space=vmem, size = 0x40000, scoped, tag = 'output window, operand 0']
    %18 = vsyncpa [#allocation4], 0
    loop: start=0, step=1, limit=6
    $region2: #{tpu_custom_call.1} parent=1 // loop_pre_header
      _
    $region3: #{tpu_custom_call.1} parent=1 // loop_header
      %s20 = sphi 0, %s24
      %p21 = scmp.ge.s32.totalorder %s20, 6
      %s30 = sphi 0, %s32
      %s33 = sphi 0, %s30
      %s34 = sphi 0, %s33
      %s50 = sphi 0, %s34
      %s54 = sphi 0, %s54
      %s56 = sphi 0, %s54
      %s57 = sphi 0, %s56
      %s71 = sphi 0, %s57
      %s75 = sphi 0, %s75
      %s77 = sphi 0, %s75
      %s78 = sphi 0, %s77
      %s92 = sphi 0, %s78
      %s96 = sphi 0, %s96
      %s98 = sphi 0, %s96
      %s99 = sphi 0, %s98
      %s113 = sphi 0, %s99
      %s117 = sphi 0, %s117
      %s119 = sphi 0, %s117
      %s120 = sphi 0, %s119
      %s134 = sphi 0, %s120
      %s138 = sphi 0, %s138
      %s140 = sphi 0, %s138
      %s141 = sphi 0, %s140
      %s155 = sphi 0, %s141
      %s159 = sphi 0, %s159
      %s161 = sphi 0, %s159
      %s162 = sphi 0, %s161
      %s176 = sphi 0, %s162
      %s180 = sphi 0, %s180
      %s182 = sphi 0, %s180
      %s183 = sphi 0, %s182
      %s197 = sphi 0, %s183
      %s201 = sphi 0, %s201
      %s203 = sphi 0, %s201
      %s204 = sphi 0, %s203
      %s218 = sphi 0, %s204
      %s222 = sphi 0, %s222
      %s224 = sphi 0, %s222
      %s225 = sphi 0, %s224
      %s239 = sphi 0, %s225
      %s243 = sphi 0, %s243
      %s245 = sphi 0, %s243
      %s246 = sphi 0, %s245
      %s260 = sphi 0, %s246
      %s266 = sphi 0, %s268
      %s269 = sphi 0, %s266
      %s270 = sphi 0, %s269
      %s286 = sphi 0, %s270
    $region4: #{tpu_custom_call.1} parent=1 // loop_header_branch
      %23 = sbr.rel (%p21) target = $region8
    $region5: #{tpu_custom_call.1} parent=1 // loop_body
      %s25 = ssub.s32 %s20, 1
      %s26 = ssub.s32 %s20, 2
      %s27 = sadd.s32 %s20, 1
      %s28 = ssub.s32 %s20, %s27
      %p29 = scmp.eq.s32.totalorder %s28, 0
      %s31 = sadd.s32 %s30, 1
      %s32 = scalar_select %p29, %s30, %s31
      %p35 = pneg %p29
      %p36 = scmp.eq.s32.totalorder %s20, 3
      %p37 = por %p35, %p36
      %p38 = scmp.ne.s32.totalorder %s30, %s33
      %p39 = scmp.eq.s32.totalorder %s20, 0
      %p40 = por %p38, %p39
      %p41 = scmp.ne.s32.totalorder %s30, %s33
      %p42 = scmp.eq.s32.totalorder %s25, 3
      %p43 = por %p41, %p42
      %p44 = scmp.ne.s32.totalorder %s33, %s34
      %p45 = scmp.eq.s32.totalorder %s25, 0
      %p46 = por %p44, %p45
      %p47 = scmp.ne.s32.totalorder %s33, %s34
      %p48 = scmp.eq.s32.totalorder %s26, 3
      %p49 = por %p47, %p48
      %p51 = scmp.ne.s32.totalorder %s34, %s50
      %p52 = scmp.eq.s32.totalorder %s26, 0
      %p53 = por %p51, %p52
      %s55 = sadd.s32 %s54, 1
      %p58 = scmp.eq.s32.totalorder %s20, 3
      %p59 = scmp.ne.s32.totalorder %s54, %s56
      %p60 = scmp.eq.s32.totalorder %s20, 0
      %p61 = por %p59, %p60
      %p62 = scmp.ne.s32.totalorder %s54, %s56
      %p63 = scmp.eq.s32.totalorder %s25, 3
      %p64 = por %p62, %p63
      %p65 = scmp.ne.s32.totalorder %s56, %s57
      %p66 = scmp.eq.s32.totalorder %s25, 0
      %p67 = por %p65, %p66
      %p68 = scmp.ne.s32.totalorder %s56, %s57
      %p69 = scmp.eq.s32.totalorder %s26, 3
      %p70 = por %p68, %p69
      %p72 = scmp.ne.s32.totalorder %s57, %s71
      %p73 = scmp.eq.s32.totalorder %s26, 0
      %p74 = por %p72, %p73
      %s76 = sadd.s32 %s75, 1
      %p79 = scmp.eq.s32.totalorder %s20, 3
      %p80 = scmp.ne.s32.totalorder %s75, %s77
      %p81 = scmp.eq.s32.totalorder %s20, 0
      %p82 = por %p80, %p81
      %p83 = scmp.ne.s32.totalorder %s75, %s77
      %p84 = scmp.eq.s32.totalorder %s25, 3
      %p85 = por %p83, %p84
      %p86 = scmp.ne.s32.totalorder %s77, %s78
      %p87 = scmp.eq.s32.totalorder %s25, 0
      %p88 = por %p86, %p87
      %p89 = scmp.ne.s32.totalorder %s77, %s78
      %p90 = scmp.eq.s32.totalorder %s26, 3
      %p91 = por %p89, %p90
      %p93 = scmp.ne.s32.totalorder %s78, %s92
      %p94 = scmp.eq.s32.totalorder %s26, 0
      %p95 = por %p93, %p94
      %s97 = sadd.s32 %s96, 1
      %p100 = scmp.eq.s32.totalorder %s20, 3
      %p101 = scmp.ne.s32.totalorder %s96, %s98
      %p102 = scmp.eq.s32.totalorder %s20, 0
      %p103 = por %p101, %p102
      %p104 = scmp.ne.s32.totalorder %s96, %s98
      %p105 = scmp.eq.s32.totalorder %s25, 3
      %p106 = por %p104, %p105
      %p107 = scmp.ne.s32.totalorder %s98, %s99
      %p108 = scmp.eq.s32.totalorder %s25, 0
      %p109 = por %p107, %p108
      %p110 = scmp.ne.s32.totalorder %s98, %s99
      %p111 = scmp.eq.s32.totalorder %s26, 3
      %p112 = por %p110, %p111
      %p114 = scmp.ne.s32.totalorder %s99, %s113
      %p115 = scmp.eq.s32.totalorder %s26, 0
      %p116 = por %p114, %p115
      %s118 = sadd.s32 %s117, 1
      %p121 = scmp.eq.s32.totalorder %s20, 3
      %p122 = scmp.ne.s32.totalorder %s117, %s119
      %p123 = scmp.eq.s32.totalorder %s20, 0
      %p124 = por %p122, %p123
      %p125 = scmp.ne.s32.totalorder %s117, %s119
      %p126 = scmp.eq.s32.totalorder %s25, 3
      %p127 = por %p125, %p126
      %p128 = scmp.ne.s32.totalorder %s119, %s120
      %p129 = scmp.eq.s32.totalorder %s25, 0
      %p130 = por %p128, %p129
      %p131 = scmp.ne.s32.totalorder %s119, %s120
      %p132 = scmp.eq.s32.totalorder %s26, 3
      %p133 = por %p131, %p132
      %p135 = scmp.ne.s32.totalorder %s120, %s134
      %p136 = scmp.eq.s32.totalorder %s26, 0
      %p137 = por %p135, %p136
      %s139 = sadd.s32 %s138, 1
      %p142 = scmp.eq.s32.totalorder %s20, 3
      %p143 = scmp.ne.s32.totalorder %s138, %s140
      %p144 = scmp.eq.s32.totalorder %s20, 0
      %p145 = por %p143, %p144
      %p146 = scmp.ne.s32.totalorder %s138, %s140
      %p147 = scmp.eq.s32.totalorder %s25, 3
      %p148 = por %p146, %p147
      %p149 = scmp.ne.s32.totalorder %s140, %s141
      %p150 = scmp.eq.s32.totalorder %s25, 0
      %p151 = por %p149, %p150
      %p152 = scmp.ne.s32.totalorder %s140, %s141
      %p153 = scmp.eq.s32.totalorder %s26, 3
      %p154 = por %p152, %p153
      %p156 = scmp.ne.s32.totalorder %s141, %s155
      %p157 = scmp.eq.s32.totalorder %s26, 0
      %p158 = por %p156, %p157
      %s160 = sadd.s32 %s159, 1
      %p163 = scmp.eq.s32.totalorder %s20, 3
      %p164 = scmp.ne.s32.totalorder %s159, %s161
      %p165 = scmp.eq.s32.totalorder %s20, 0
      %p166 = por %p164, %p165
      %p167 = scmp.ne.s32.totalorder %s159, %s161
      %p168 = scmp.eq.s32.totalorder %s25, 3
      %p169 = por %p167, %p168
      %p170 = scmp.ne.s32.totalorder %s161, %s162
      %p171 = scmp.eq.s32.totalorder %s25, 0
      %p172 = por %p170, %p171
      %p173 = scmp.ne.s32.totalorder %s161, %s162
      %p174 = scmp.eq.s32.totalorder %s26, 3
      %p175 = por %p173, %p174
      %p177 = scmp.ne.s32.totalorder %s162, %s176
      %p178 = scmp.eq.s32.totalorder %s26, 0
      %p179 = por %p177, %p178
      %s181 = sadd.s32 %s180, 1
      %p184 = scmp.eq.s32.totalorder %s20, 3
      %p185 = scmp.ne.s32.totalorder %s180, %s182
      %p186 = scmp.eq.s32.totalorder %s20, 0
      %p187 = por %p185, %p186
      %p188 = scmp.ne.s32.totalorder %s180, %s182
      %p189 = scmp.eq.s32.totalorder %s25, 3
      %p190 = por %p188, %p189
      %p191 = scmp.ne.s32.totalorder %s182, %s183
      %p192 = scmp.eq.s32.totalorder %s25, 0
      %p193 = por %p191, %p192
      %p194 = scmp.ne.s32.totalorder %s182, %s183
      %p195 = scmp.eq.s32.totalorder %s26, 3
      %p196 = por %p194, %p195
      %p198 = scmp.ne.s32.totalorder %s183, %s197
      %p199 = scmp.eq.s32.totalorder %s26, 0
      %p200 = por %p198, %p199
      %s202 = sadd.s32 %s201, 1
      %p205 = scmp.eq.s32.totalorder %s20, 3
      %p206 = scmp.ne.s32.totalorder %s201, %s203
      %p207 = scmp.eq.s32.totalorder %s20, 0
      %p208 = por %p206, %p207
      %p209 = scmp.ne.s32.totalorder %s201, %s203
      %p210 = scmp.eq.s32.totalorder %s25, 3
      %p211 = por %p209, %p210
      %p212 = scmp.ne.s32.totalorder %s203, %s204
      %p213 = scmp.eq.s32.totalorder %s25, 0
      %p214 = por %p212, %p213
      %p215 = scmp.ne.s32.totalorder %s203, %s204
      %p216 = scmp.eq.s32.totalorder %s26, 3
      %p217 = por %p215, %p216
      %p219 = scmp.ne.s32.totalorder %s204, %s218
      %p220 = scmp.eq.s32.totalorder %s26, 0
      %p221 = por %p219, %p220
      %s223 = sadd.s32 %s222, 1
      %p226 = scmp.eq.s32.totalorder %s20, 3
      %p227 = scmp.ne.s32.totalorder %s222, %s224
      %p228 = scmp.eq.s32.totalorder %s20, 0
      %p229 = por %p227, %p228
      %p230 = scmp.ne.s32.totalorder %s222, %s224
      %p231 = scmp.eq.s32.totalorder %s25, 3
      %p232 = por %p230, %p231
      %p233 = scmp.ne.s32.totalorder %s224, %s225
      %p234 = scmp.eq.s32.totalorder %s25, 0
      %p235 = por %p233, %p234
      %p236 = scmp.ne.s32.totalorder %s224, %s225
      %p237 = scmp.eq.s32.totalorder %s26, 3
      %p238 = por %p236, %p237
      %p240 = scmp.ne.s32.totalorder %s225, %s239
      %p241 = scmp.eq.s32.totalorder %s26, 0
      %p242 = por %p240, %p241
      %s244 = sadd.s32 %s243, 1
      %p247 = scmp.eq.s32.totalorder %s20, 3
      %p248 = scmp.ne.s32.totalorder %s243, %s245
      %p249 = scmp.eq.s32.totalorder %s20, 0
      %p250 = por %p248, %p249
      %p251 = scmp.ne.s32.totalorder %s243, %s245
      %p252 = scmp.eq.s32.totalorder %s25, 3
      %p253 = por %p251, %p252
      %p254 = scmp.ne.s32.totalorder %s245, %s246
      %p255 = scmp.eq.s32.totalorder %s25, 0
      %p256 = por %p254, %p255
      %p257 = scmp.ne.s32.totalorder %s245, %s246
      %p258 = scmp.eq.s32.totalorder %s26, 3
      %p259 = por %p257, %p258
      %p261 = scmp.ne.s32.totalorder %s246, %s260
      %p262 = scmp.eq.s32.totalorder %s26, 0
      %p263 = por %p261, %p262
      %s264 = ssub.s32 %s20, %s27
      %p265 = scmp.eq.s32.totalorder %s264, 0
      %s267 = sadd.s32 %s266, 1
      %s268 = scalar_select %p265, %s266, %s267
      %p271 = pneg %p265
      %p272 = scmp.eq.s32.totalorder %s20, 3
      %p273 = por %p271, %p272
      %p274 = scmp.ne.s32.totalorder %s266, %s269
      %p275 = scmp.eq.s32.totalorder %s20, 0
      %p276 = por %p274, %p275
      %p277 = scmp.ne.s32.totalorder %s266, %s269
      %p278 = scmp.eq.s32.totalorder %s25, 3
      %p279 = por %p277, %p278
      %p280 = scmp.ne.s32.totalorder %s269, %s270
      %p281 = scmp.eq.s32.totalorder %s25, 0
      %p282 = por %p280, %p281
      %p283 = scmp.ne.s32.totalorder %s269, %s270
      %p284 = scmp.eq.s32.totalorder %s26, 3
      %p285 = por %p283, %p284
      %p287 = scmp.ne.s32.totalorder %s270, %s286
      %p288 = scmp.eq.s32.totalorder %s26, 0
      %p289 = por %p287, %p288
      %p290 = scmp.le.s32.totalorder 1, %s20
      %p291 = scmp.lt.s32.totalorder %s20, 5
      %p292 = pnand %p290, %p291
      %p293 = pneg %p292
      // Predicated region
      $region9: #{tpu_custom_call.1} parent=5 // pred_check
        _
      $region10: #{tpu_custom_call.1} parent=5 // pred_check_branch
        %295 = sbr.rel (%p292) target = $region12
      $region11: #{tpu_custom_call.1} parent=5 // pred_region
        %s296 = ssub.s32 %s20, 1
        // Predicated region
        $region13: #{tpu_custom_call.1} parent=11 // pred_check
          %p297 = pneg %p67
        $region14: #{tpu_custom_call.1} parent=11 // pred_check_branch
          %299 = sbr.rel (%p297) target = $region16
        $region15: #{tpu_custom_call.1} parent=11 // pred_region
          _
        $region16: #{tpu_custom_call.1} parent=11 // pred_fallthru
          _
        // Predicated region
        $region17: #{tpu_custom_call.1} parent=11 // pred_check
          %p300 = pneg %p88
        $region18: #{tpu_custom_call.1} parent=11 // pred_check_branch
          %302 = sbr.rel (%p300) target = $region20
        $region19: #{tpu_custom_call.1} parent=11 // pred_region
          _
        $region20: #{tpu_custom_call.1} parent=11 // pred_fallthru
          _
        // Predicated region
        $region21: #{tpu_custom_call.1} parent=11 // pred_check
          %p303 = pneg %p109
        $region22: #{tpu_custom_call.1} parent=11 // pred_check_branch
          %305 = sbr.rel (%p303) target = $region24
        $region23: #{tpu_custom_call.1} parent=11 // pred_region
          _
        $region24: #{tpu_custom_call.1} parent=11 // pred_fallthru
          _
        // Predicated region
        $region25: #{tpu_custom_call.1} parent=11 // pred_check
          %p306 = pneg %p130
        $region26: #{tpu_custom_call.1} parent=11 // pred_check_branch
          %308 = sbr.rel (%p306) target = $region28
        $region27: #{tpu_custom_call.1} parent=11 // pred_region
          _
        $region28: #{tpu_custom_call.1} parent=11 // pred_fallthru
          _
        // Predicated region
        $region29: #{tpu_custom_call.1} parent=11 // pred_check
          %p309 = pneg %p151
        $region30: #{tpu_custom_call.1} parent=11 // pred_check_branch
          %311 = sbr.rel (%p309) target = $region32
        $region31: #{tpu_custom_call.1} parent=11 // pred_region
          _
        $region32: #{tpu_custom_call.1} parent=11 // pred_fallthru
          _
        // Predicated region
        $region33: #{tpu_custom_call.1} parent=11 // pred_check
          %p312 = pneg %p172
        $region34: #{tpu_custom_call.1} parent=11 // pred_check_branch
          %314 = sbr.rel (%p312) target = $region36
        $region35: #{tpu_custom_call.1} parent=11 // pred_region
          _
        $region36: #{tpu_custom_call.1} parent=11 // pred_fallthru
          _
        // Predicated region
        $region37: #{tpu_custom_call.1} parent=11 // pred_check
          %p315 = pneg %p193
        $region38: #{tpu_custom_call.1} parent=11 // pred_check_branch
          %317 = sbr.rel (%p315) target = $region40
        $region39: #{tpu_custom_call.1} parent=11 // pred_region
          %319 = vsyncadd [#allocation4], 0
          %s320 = sshll.u32 %s7, 4
          %s321 = int_to_ptr.hbm [resolvable:$true] %s320
          %s322 = sshll.u32 [#allocation3], 4
          %s323 = int_to_ptr.vmem [resolvable:$true] %s322
          %328 = dma.hbm_to_vmem [thread:$0]  %s321, 8192, %s323, [#allocation4], 256, 256, 16
        $region40: #{tpu_custom_call.1} parent=11 // pred_fallthru
          _
        // Predicated region
        $region41: #{tpu_custom_call.1} parent=11 // pred_check
          %p329 = pneg %p214
        $region42: #{tpu_custom_call.1} parent=11 // pred_check_branch
          %331 = sbr.rel (%p329) target = $region44
        $region43: #{tpu_custom_call.1} parent=11 // pred_region
          _
        $region44: #{tpu_custom_call.1} parent=11 // pred_fallthru
          _
        // Predicated region
        $region45: #{tpu_custom_call.1} parent=11 // pred_check
          %p332 = pneg %p235
        $region46: #{tpu_custom_call.1} parent=11 // pred_check_branch
          %334 = sbr.rel (%p332) target = $region48
        $region47: #{tpu_custom_call.1} parent=11 // pred_region
          _
        $region48: #{tpu_custom_call.1} parent=11 // pred_fallthru
          _
        // Predicated region
        $region49: #{tpu_custom_call.1} parent=11 // pred_check
          %p335 = pneg %p256
        $region50: #{tpu_custom_call.1} parent=11 // pred_check_branch
          %337 = sbr.rel (%p335) target = $region52
        $region51: #{tpu_custom_call.1} parent=11 // pred_region
          _
        $region52: #{tpu_custom_call.1} parent=11 // pred_fallthru
          _
      $region12: #{tpu_custom_call.1} parent=5 // pred_fallthru
        _
      %p338 = scmp.lt.s32.totalorder %s20, 4
      // Predicated region
      $region53: #{tpu_custom_call.1} parent=5 // pred_check
        %p339 = pneg %p338
      $region54: #{tpu_custom_call.1} parent=5 // pred_check_branch
        %341 = sbr.rel (%p339) target = $region56
      $region55: #{tpu_custom_call.1} parent=5 // pred_region
        // Predicated region
        $region57: #{tpu_custom_call.1} parent=55 // pred_check
          %p342 = pneg %p40
        $region58: #{tpu_custom_call.1} parent=55 // pred_check_branch
          %344 = sbr.rel (%p342) target = $region60
        $region59: #{tpu_custom_call.1} parent=55 // pred_region
          %s345 = smul.u32 32, %s20
          %s346 = ssub.s32 125, %s345
          %p347 = scmp.lt.s32.totalorder %s346, 32
          %s348 = scalar_select %p347, %s346, 32
          %s349 = smul.u32 8, %s348
          %p350 = scmp.lt.s32.totalorder %s345, 124
          %s351 = scalar_select %p350, %s345, 124
          %s352 = smul.addr %s351, 8
          %s353 = scalar_lea.vmem %s0, %s352
          %s354 = smul.u32 32, %s20
          %s355 = ssub.s32 125, %s354
          %p356 = scmp.lt.s32.totalorder %s355, 32
          %s357 = scalar_select %p356, %s355, 32
          %s358 = smul.u32 8, %s357
        $region60: #{tpu_custom_call.1} parent=55 // pred_fallthru
          _
      $region56: #{tpu_custom_call.1} parent=5 // pred_fallthru
        _
      %p359 = scmp.le.s32.totalorder 1, %s20
      %p360 = scmp.lt.s32.totalorder %s20, 5
      %p361 = pnand %p359, %p360
      %p362 = pneg %p361
      // Predicated region
      $region61: #{tpu_custom_call.1} parent=5 // pred_check
        _
      $region62: #{tpu_custom_call.1} parent=5 // pred_check_branch
        %364 = sbr.rel (%p361) target = $region64
      $region63: #{tpu_custom_call.1} parent=5 // pred_region
        %s365 = ssub.s32 %s20, 1
        // Predicated region
        $region65: #{tpu_custom_call.1} parent=63 // pred_check
          %p366 = pneg %p193
        $region66: #{tpu_custom_call.1} parent=63 // pred_check_branch
          %368 = sbr.rel (%p366) target = $region68
        $region67: #{tpu_custom_call.1} parent=63 // pred_region
          %370 = dma.done [#allocation4], 8192
        $region68: #{tpu_custom_call.1} parent=63 // pred_fallthru
          _
        %s371 = smul.u32 32, %s25
        %s372 = ssub.s32 125, %s371
        %p373 = scmp.lt.s32.totalorder %s372, 32
        %s374 = scalar_select %p373, %s372, 32
        %s375 = smul.u32 8, %s374
        %p376 = scmp.lt.s32.totalorder %s371, 124
        %s377 = scalar_select %p376, %s371, 124
        %s378 = smul.addr %s377, 8
        %s379 = scalar_lea.vmem %s0, %s378
        %p380 = pneg %p46
        %p381 = pneg %p43
        %p382 = pneg %p67
        %p383 = pneg %p64
        %p384 = pneg %p88
        %p385 = pneg %p85
        %p386 = pneg %p109
        %p387 = pneg %p106
        %p388 = pneg %p130
        %p389 = pneg %p127
        %p390 = pneg %p151
        %p391 = pneg %p148
        %p392 = pneg %p172
        %p393 = pneg %p169
        %p394 = pneg %p193
        %p395 = pneg %p190
        %p396 = pneg %p214
        %p397 = pneg %p211
        %p398 = pneg %p235
        %p399 = pneg %p232
        %p400 = pneg %p256
        %p401 = pneg %p253
        %p402 = pneg %p282
        %p403 = pneg %p279
        %s404 = sand.u32 %s269, 1
        %s405 = sand.u32 %s269, 1
        %s406 = smul.addr %s405, 256
        %s407 = scalar_lea.vmem [#allocation5], %s406
        %s408 = smul.u32 32, %s25
        %s409 = ssub.s32 125, %s408
        %p410 = scmp.lt.s32.totalorder %s409, 32
        %s411 = scalar_select %p410, %s409, 32
        %s412 = smul.u32 8, %s411
        %p413 = scmp.lt.s32.totalorder %s408, 124
        %s414 = scalar_select %p413, %s408, 124
        %s415 = smul.addr %s414, 8
        %s416 = scalar_lea.vmem %s0, %s415
        %s417 = smul.u32 32, %s25
        %s418 = ssub.s32 125, %s417
        %p419 = scmp.lt.s32.totalorder %s418, 32
        %s420 = scalar_select %p419, %s418, 32
        %s421 = smul.u32 8, %s420
        %s422 = smul.u32 32, %s25
        %s423 = ssub.s32 125, %s422
        %p424 = scmp.lt.s32.totalorder %s423, 32
        %s425 = scalar_select %p424, %s423, 32
        %s426 = smul.u32 8, %s425
        %v427 = vld [vmem:[%s416] sm:$0xff]
        %v428 = vld [vmem:[%s416 + $0x8] sm:$0xff]
        %v429 = vld [vmem:[%s416 + $0x10] sm:$0xff]
        %v430 = vld [vmem:[%s416 + $0x18] sm:$0xff]
        %v431 = vld [vmem:[%s416 + $0x20] sm:$0xff]
        %v432 = vld [vmem:[%s416 + $0x28] sm:$0xff]
        %v433 = vld [vmem:[%s416 + $0x30] sm:$0xff]
        %v434 = vld [vmem:[%s416 + $0x38] sm:$0xff]
        %v435 = vld [vmem:[%s416 + $0x40] sm:$0xff]
        %v436 = vld [vmem:[%s416 + $0x48] sm:$0xff]
        %v437 = vld [vmem:[%s416 + $0x50] sm:$0xff]
        %v438 = vld [vmem:[%s416 + $0x58] sm:$0xff]
        %v439 = vld [vmem:[%s416 + $0x60] sm:$0xff]
        %v440 = vld [vmem:[%s416 + $0x68] sm:$0xff]
        %v441 = vld [vmem:[%s416 + $0x70] sm:$0xff]
        %v442 = vld [vmem:[%s416 + $0x78] sm:$0xff]
        %v443 = vld [vmem:[%s416 + $0x80] sm:$0xff]
        %v444 = vld [vmem:[%s416 + $0x88] sm:$0xff]
        %v445 = vld [vmem:[%s416 + $0x90] sm:$0xff]
        %v446 = vld [vmem:[%s416 + $0x98] sm:$0xff]
        %v447 = vld [vmem:[%s416 + $0xa0] sm:$0xff]
        %v448 = vld [vmem:[%s416 + $0xa8] sm:$0xff]
        %v449 = vld [vmem:[%s416 + $0xb0] sm:$0xff]
        %v450 = vld [vmem:[%s416 + $0xb8] sm:$0xff]
        %v451 = vld [vmem:[%s416 + $0xc0] sm:$0xff]
        %v452 = vld [vmem:[%s416 + $0xc8] sm:$0xff]
        %v453 = vld [vmem:[%s416 + $0xd0] sm:$0xff]
        %v454 = vld [vmem:[%s416 + $0xd8] sm:$0xff]
        %v455 = vld [vmem:[%s416 + $0xe0] sm:$0xff]
        %v456 = vld [vmem:[%s416 + $0xe8] sm:$0xff]
        %v457 = vld [vmem:[%s416 + $0xf0] sm:$0xff]
        %v458 = vld [vmem:[%s416 + $0xf8] sm:$0xff]
        %v459 = vld [vmem:[%s1] sm:$0x77]
        %v460 = vld [vmem:[%s2] sm:$0x3]
        %v462 = vperm.slane %v460, 0
        %v463 = vperm.slane %v460, 1
        %467 = vst [vmem:[#allocation1] ss:$2 sm:$0xff] %v459
        %v468 = vld.sshfl [vmem:[#allocation1] sm:$0xff pattern:$0x75316420]
        %v469 = vld.sshfl [vmem:[#allocation1 + $0x8] sm:$0xff pattern:$0x75316420]
        %vm470 = vcmask 23552
        %v472 = vsel %vm470, %v427, 0
        %v475 = vsel %vm470, %v428, 0
        %v478 = vsel %vm470, %v429, 0
        %v481 = vsel %vm470, %v430, 0
        %v484 = vsel %vm470, %v431, 0
        %v487 = vsel %vm470, %v432, 0
        %v490 = vsel %vm470, %v433, 0
        %v493 = vsel %vm470, %v434, 0
        %v496 = vsel %vm470, %v435, 0
        %v499 = vsel %vm470, %v436, 0
        %v502 = vsel %vm470, %v437, 0
        %v505 = vsel %vm470, %v438, 0
        %v508 = vsel %vm470, %v439, 0
        %v511 = vsel %vm470, %v440, 0
        %v514 = vsel %vm470, %v441, 0
        %v517 = vsel %vm470, %v442, 0
        %v520 = vsel %vm470, %v443, 0
        %v523 = vsel %vm470, %v444, 0
        %v526 = vsel %vm470, %v445, 0
        %v529 = vsel %vm470, %v446, 0
        %v532 = vsel %vm470, %v447, 0
        %v535 = vsel %vm470, %v448, 0
        %v538 = vsel %vm470, %v449, 0
        %v541 = vsel %vm470, %v450, 0
        %v544 = vsel %vm470, %v451, 0
        %v547 = vsel %vm470, %v452, 0
        %v550 = vsel %vm470, %v453, 0
        %v553 = vsel %vm470, %v454, 0
        %v556 = vsel %vm470, %v455, 0
        %v559 = vsel %vm470, %v456, 0
        %v562 = vsel %vm470, %v457, 0
        %v565 = vsel %vm470, %v458, 0
        %vm567 = vcmask 1042432
        %v568 = vsel %vm567, %v468, 0
        %v570 = vsel %vm567, %v469, 0
        %572 = vmatpush.msra.mxu0 0.0
        %573 = vmatpush.msra.mxu0 0.0
        %574 = vmatpush.msra.mxu0 0.0
        %575 = vmatpush.msra.mxu0 0.0
        %576 = vmatpush.msra.mxu0 0.0
        %577 = vmatpush.msra.mxu0 0.0
        %578 = vmatpush.msra.mxu0 0.0
        %579 = vmatpush.msra.mxu0 0.0
        %580 = vmatpush.msra.mxu0 0.0
        %581 = vmatpush.msra.mxu0 0.0
        %582 = vmatpush.msra.mxu0 0.0
        %583 = vmatpush.msra.mxu0 0.0
        %584 = vmatpush.msra.mxu0 0.0
        %585 = vmatpush.msra.mxu0 0.0
        %586 = vmatpush.msra.mxu0 0.0
        %587 = vmatpush.msra.mxu0 %v568
        %588 = vmatmul.f32.gmra.mxu0 %v472
        %v589 = vpop.f32.mrf.mxu0
        %v590 = vadd.f32 %v462, %v589
        %591 = vmatmul.f32.gmra.mxu0 %v475
        %v592 = vpop.f32.mrf.mxu0
        %v593 = vadd.f32 %v462, %v592
        %594 = vmatmul.f32.gmra.mxu0 %v478
        %v595 = vpop.f32.mrf.mxu0
        %v596 = vadd.f32 %v462, %v595
        %597 = vmatmul.f32.gmra.mxu0 %v481
        %v598 = vpop.f32.mrf.mxu0
        %v599 = vadd.f32 %v462, %v598
        %600 = vmatmul.f32.gmra.mxu0 %v484
        %v601 = vpop.f32.mrf.mxu0
        %v602 = vadd.f32 %v462, %v601
        %603 = vmatmul.f32.gmra.mxu0 %v487
        %v604 = vpop.f32.mrf.mxu0
        %v605 = vadd.f32 %v462, %v604
        %606 = vmatmul.f32.gmra.mxu0 %v490
        %v607 = vpop.f32.mrf.mxu0
        %v608 = vadd.f32 %v462, %v607
        %609 = vmatmul.f32.gmra.mxu0 %v493
        %v610 = vpop.f32.mrf.mxu0
        %v611 = vadd.f32 %v462, %v610
        %612 = vmatmul.f32.gmra.mxu0 %v496
        %v613 = vpop.f32.mrf.mxu0
        %v614 = vadd.f32 %v462, %v613
        %615 = vmatmul.f32.gmra.mxu0 %v499
        %v616 = vpop.f32.mrf.mxu0
        %v617 = vadd.f32 %v462, %v616
        %618 = vmatmul.f32.gmra.mxu0 %v502
        %v619 = vpop.f32.mrf.mxu0
        %v620 = vadd.f32 %v462, %v619
        %621 = vmatmul.f32.gmra.mxu0 %v505
        %v622 = vpop.f32.mrf.mxu0
        %v623 = vadd.f32 %v462, %v622
        %624 = vmatmul.f32.gmra.mxu0 %v508
        %v625 = vpop.f32.mrf.mxu0
        %v626 = vadd.f32 %v462, %v625
        %627 = vmatmul.f32.gmra.mxu0 %v511
        %v628 = vpop.f32.mrf.mxu0
        %v629 = vadd.f32 %v462, %v628
        %630 = vmatmul.f32.gmra.mxu0 %v514
        %v631 = vpop.f32.mrf.mxu0
        %v632 = vadd.f32 %v462, %v631
        %633 = vmatmul.f32.gmra.mxu0 %v517
        %v634 = vpop.f32.mrf.mxu0
        %v635 = vadd.f32 %v462, %v634
        %636 = vmatmul.f32.gmra.mxu0 %v520
        %v637 = vpop.f32.mrf.mxu0
        %v638 = vadd.f32 %v462, %v637
        %639 = vmatmul.f32.gmra.mxu0 %v523
        %v640 = vpop.f32.mrf.mxu0
        %v641 = vadd.f32 %v462, %v640
        %642 = vmatmul.f32.gmra.mxu0 %v526
        %v643 = vpop.f32.mrf.mxu0
        %v644 = vadd.f32 %v462, %v643
        %645 = vmatmul.f32.gmra.mxu0 %v529
        %v646 = vpop.f32.mrf.mxu0
        %v647 = vadd.f32 %v462, %v646
        %648 = vmatmul.f32.gmra.mxu0 %v532
        %v649 = vpop.f32.mrf.mxu0
        %v650 = vadd.f32 %v462, %v649
        %651 = vmatmul.f32.gmra.mxu0 %v535
        %v652 = vpop.f32.mrf.mxu0
        %v653 = vadd.f32 %v462, %v652
        %654 = vmatmul.f32.gmra.mxu0 %v538
        %v655 = vpop.f32.mrf.mxu0
        %v656 = vadd.f32 %v462, %v655
        %657 = vmatmul.f32.gmra.mxu0 %v541
        %v658 = vpop.f32.mrf.mxu0
        %v659 = vadd.f32 %v462, %v658
        %660 = vmatmul.f32.gmra.mxu0 %v544
        %v661 = vpop.f32.mrf.mxu0
        %v662 = vadd.f32 %v462, %v661
        %663 = vmatmul.f32.gmra.mxu0 %v547
        %v664 = vpop.f32.mrf.mxu0
        %v665 = vadd.f32 %v462, %v664
        %666 = vmatmul.f32.gmra.mxu0 %v550
        %v667 = vpop.f32.mrf.mxu0
        %v668 = vadd.f32 %v462, %v667
        %669 = vmatmul.f32.gmra.mxu0 %v553
        %v670 = vpop.f32.mrf.mxu0
        %v671 = vadd.f32 %v462, %v670
        %672 = vmatmul.f32.gmra.mxu0 %v556
        %v673 = vpop.f32.mrf.mxu0
        %v674 = vadd.f32 %v462, %v673
        %675 = vmatmul.f32.gmra.mxu0 %v559
        %v676 = vpop.f32.mrf.mxu0
        %v677 = vadd.f32 %v462, %v676
        %678 = vmatmul.f32.gmra.mxu0 %v562
        %v679 = vpop.f32.mrf.mxu0
        %v680 = vadd.f32 %v462, %v679
        %681 = vmatmul.f32.gmra.mxu0 %v565
        %v682 = vpop.f32.mrf.mxu0
        %v683 = vadd.f32 %v462, %v682
        %684 = vdwg.mxu0
        %685 = vmatpush.msra.mxu0 0.0
        %686 = vmatpush.msra.mxu0 0.0
        %687 = vmatpush.msra.mxu0 0.0
        %688 = vmatpush.msra.mxu0 0.0
        %689 = vmatpush.msra.mxu0 0.0
        %690 = vmatpush.msra.mxu0 0.0
        %691 = vmatpush.msra.mxu0 0.0
        %692 = vmatpush.msra.mxu0 0.0
        %693 = vmatpush.msra.mxu0 0.0
        %694 = vmatpush.msra.mxu0 0.0
        %695 = vmatpush.msra.mxu0 0.0
        %696 = vmatpush.msra.mxu0 0.0
        %697 = vmatpush.msra.mxu0 0.0
        %698 = vmatpush.msra.mxu0 0.0
        %699 = vmatpush.msra.mxu0 0.0
        %700 = vmatpush.msra.mxu0 %v570
        %701 = vmatmul.f32.gmra.mxu0 %v472
        %v702 = vpop.f32.mrf.mxu0
        %v703 = vadd.f32 %v463, %v702
        %704 = vmatmul.f32.gmra.mxu0 %v475
        %v705 = vpop.f32.mrf.mxu0
        %v706 = vadd.f32 %v463, %v705
        %707 = vmatmul.f32.gmra.mxu0 %v478
        %v708 = vpop.f32.mrf.mxu0
        %v709 = vadd.f32 %v463, %v708
        %710 = vmatmul.f32.gmra.mxu0 %v481
        %v711 = vpop.f32.mrf.mxu0
        %v712 = vadd.f32 %v463, %v711
        %713 = vmatmul.f32.gmra.mxu0 %v484
        %v714 = vpop.f32.mrf.mxu0
        %v715 = vadd.f32 %v463, %v714
        %716 = vmatmul.f32.gmra.mxu0 %v487
        %v717 = vpop.f32.mrf.mxu0
        %v718 = vadd.f32 %v463, %v717
        %719 = vmatmul.f32.gmra.mxu0 %v490
        %v720 = vpop.f32.mrf.mxu0
        %v721 = vadd.f32 %v463, %v720
        %722 = vmatmul.f32.gmra.mxu0 %v493
        %v723 = vpop.f32.mrf.mxu0
        %v724 = vadd.f32 %v463, %v723
        %725 = vmatmul.f32.gmra.mxu0 %v496
        %v726 = vpop.f32.mrf.mxu0
        %v727 = vadd.f32 %v463, %v726
        %728 = vmatmul.f32.gmra.mxu0 %v499
        %v729 = vpop.f32.mrf.mxu0
        %v730 = vadd.f32 %v463, %v729
        %731 = vmatmul.f32.gmra.mxu0 %v502
        %v732 = vpop.f32.mrf.mxu0
        %v733 = vadd.f32 %v463, %v732
        %734 = vmatmul.f32.gmra.mxu0 %v505
        %v735 = vpop.f32.mrf.mxu0
        %v736 = vadd.f32 %v463, %v735
        %737 = vmatmul.f32.gmra.mxu0 %v508
        %v738 = vpop.f32.mrf.mxu0
        %v739 = vadd.f32 %v463, %v738
        %740 = vmatmul.f32.gmra.mxu0 %v511
        %v741 = vpop.f32.mrf.mxu0
        %v742 = vadd.f32 %v463, %v741
        %743 = vmatmul.f32.gmra.mxu0 %v514
        %v744 = vpop.f32.mrf.mxu0
        %v745 = vadd.f32 %v463, %v744
        %746 = vmatmul.f32.gmra.mxu0 %v517
        %v747 = vpop.f32.mrf.mxu0
        %v748 = vadd.f32 %v463, %v747
        %749 = vmatmul.f32.gmra.mxu0 %v520
        %v750 = vpop.f32.mrf.mxu0
        %v751 = vadd.f32 %v463, %v750
        %752 = vmatmul.f32.gmra.mxu0 %v523
        %v753 = vpop.f32.mrf.mxu0
        %v754 = vadd.f32 %v463, %v753
        %755 = vmatmul.f32.gmra.mxu0 %v526
        %v756 = vpop.f32.mrf.mxu0
        %v757 = vadd.f32 %v463, %v756
        %758 = vmatmul.f32.gmra.mxu0 %v529
        %v759 = vpop.f32.mrf.mxu0
        %v760 = vadd.f32 %v463, %v759
        %761 = vmatmul.f32.gmra.mxu0 %v532
        %v762 = vpop.f32.mrf.mxu0
        %v763 = vadd.f32 %v463, %v762
        %764 = vmatmul.f32.gmra.mxu0 %v535
        %v765 = vpop.f32.mrf.mxu0
        %v766 = vadd.f32 %v463, %v765
        %767 = vmatmul.f32.gmra.mxu0 %v538
        %v768 = vpop.f32.mrf.mxu0
        %v769 = vadd.f32 %v463, %v768
        %770 = vmatmul.f32.gmra.mxu0 %v541
        %v771 = vpop.f32.mrf.mxu0
        %v772 = vadd.f32 %v463, %v771
        %773 = vmatmul.f32.gmra.mxu0 %v544
        %v774 = vpop.f32.mrf.mxu0
        %v775 = vadd.f32 %v463, %v774
        %776 = vmatmul.f32.gmra.mxu0 %v547
        %v777 = vpop.f32.mrf.mxu0
        %v778 = vadd.f32 %v463, %v777
        %779 = vmatmul.f32.gmra.mxu0 %v550
        %v780 = vpop.f32.mrf.mxu0
        %v781 = vadd.f32 %v463, %v780
        %782 = vmatmul.f32.gmra.mxu0 %v553
        %v783 = vpop.f32.mrf.mxu0
        %v784 = vadd.f32 %v463, %v783
        %785 = vmatmul.f32.gmra.mxu0 %v556
        %v786 = vpop.f32.mrf.mxu0
        %v787 = vadd.f32 %v463, %v786
        %788 = vmatmul.f32.gmra.mxu0 %v559
        %v789 = vpop.f32.mrf.mxu0
        %v790 = vadd.f32 %v463, %v789
        %791 = vmatmul.f32.gmra.mxu0 %v562
        %v792 = vpop.f32.mrf.mxu0
        %v793 = vadd.f32 %v463, %v792
        %794 = vmatmul.f32.gmra.mxu0 %v565
        %v795 = vpop.f32.mrf.mxu0
        %v796 = vadd.f32 %v463, %v795
        %797 = vdwg.mxu0
        %v798 = vtanh.pop %v590
        %v799 = vtanh.pop %v703
        %v800 = vtanh.pop %v593
        %v801 = vtanh.pop %v706
        %v802 = vtanh.pop %v596
        %v803 = vtanh.pop %v709
        %v804 = vtanh.pop %v599
        %v805 = vtanh.pop %v712
        %v806 = vtanh.pop %v602
        %v807 = vtanh.pop %v715
        %v808 = vtanh.pop %v605
        %v809 = vtanh.pop %v718
        %v810 = vtanh.pop %v608
        %v811 = vtanh.pop %v721
        %v812 = vtanh.pop %v611
        %v813 = vtanh.pop %v724
        %v814 = vtanh.pop %v614
        %v815 = vtanh.pop %v727
        %v816 = vtanh.pop %v617
        %v817 = vtanh.pop %v730
        %v818 = vtanh.pop %v620
        %v819 = vtanh.pop %v733
        %v820 = vtanh.pop %v623
        %v821 = vtanh.pop %v736
        %v822 = vtanh.pop %v626
        %v823 = vtanh.pop %v739
        %v824 = vtanh.pop %v629
        %v825 = vtanh.pop %v742
        %v826 = vtanh.pop %v632
        %v827 = vtanh.pop %v745
        %v828 = vtanh.pop %v635
        %v829 = vtanh.pop %v748
        %v830 = vtanh.pop %v638
        %v831 = vtanh.pop %v751
        %v832 = vtanh.pop %v641
        %v833 = vtanh.pop %v754
        %v834 = vtanh.pop %v644
        %v835 = vtanh.pop %v757
        %v836 = vtanh.pop %v647
        %v837 = vtanh.pop %v760
        %v838 = vtanh.pop %v650
        %v839 = vtanh.pop %v763
        %v840 = vtanh.pop %v653
        %v841 = vtanh.pop %v766
        %v842 = vtanh.pop %v656
        %v843 = vtanh.pop %v769
        %v844 = vtanh.pop %v659
        %v845 = vtanh.pop %v772
        %v846 = vtanh.pop %v662
        %v847 = vtanh.pop %v775
        %v848 = vtanh.pop %v665
        %v849 = vtanh.pop %v778
        %v850 = vtanh.pop %v668
        %v851 = vtanh.pop %v781
        %v852 = vtanh.pop %v671
        %v853 = vtanh.pop %v784
        %v854 = vtanh.pop %v674
        %v855 = vtanh.pop %v787
        %v856 = vtanh.pop %v677
        %v857 = vtanh.pop %v790
        %v858 = vtanh.pop %v680
        %v859 = vtanh.pop %v793
        %v860 = vtanh.pop %v683
        %v861 = vtanh.pop %v796
        %v862 = vld [vmem:[%s3] sm:$0xff]
        %v863 = vld [vmem:[%s3 + $0x8] sm:$0xff]
        %v864 = vld [vmem:[%s3 + $0x10] sm:$0xff]
        %v865 = vld [vmem:[%s3 + $0x18] sm:$0xff]
        %v866 = vld [vmem:[%s3 + $0x20] sm:$0xff]
        %v867 = vld [vmem:[%s3 + $0x28] sm:$0xff]
        %v868 = vld [vmem:[%s3 + $0x30] sm:$0xff]
        %v869 = vld [vmem:[%s3 + $0x38] sm:$0xff]
        %v870 = vld [vmem:[%s3 + $0x40] sm:$0xff]
        %v871 = vld [vmem:[%s3 + $0x48] sm:$0xff]
        %v872 = vld [vmem:[%s3 + $0x50] sm:$0xff]
        %v873 = vld [vmem:[%s3 + $0x58] sm:$0xff]
        %v874 = vld [vmem:[%s3 + $0x60] sm:$0xff]
        %v875 = vld [vmem:[%s3 + $0x68] sm:$0xff]
        %v876 = vld [vmem:[%s3 + $0x70] sm:$0xff]
        %v877 = vld [vmem:[%s3 + $0x78] sm:$0xff]
        %v878 = vld [vmem:[%s3 + $0x80] sm:$0xff]
        %v879 = vld [vmem:[%s3 + $0x88] sm:$0xff]
        %v880 = vld [vmem:[%s3 + $0x90] sm:$0xff]
        %v881 = vld [vmem:[%s3 + $0x98] sm:$0xff]
        %v882 = vld [vmem:[%s3 + $0xa0] sm:$0xff]
        %v883 = vld [vmem:[%s3 + $0xa8] sm:$0xff]
        %v884 = vld [vmem:[%s3 + $0xb0] sm:$0xff]
        %v885 = vld [vmem:[%s3 + $0xb8] sm:$0xff]
        %v886 = vld [vmem:[%s3 + $0xc0] sm:$0xff]
        %v887 = vld [vmem:[%s3 + $0xc8] sm:$0xff]
        %v888 = vld [vmem:[%s3 + $0xd0] sm:$0xff]
        %v889 = vld [vmem:[%s3 + $0xd8] sm:$0xff]
        %v890 = vld [vmem:[%s3 + $0xe0] sm:$0xff]
        %v891 = vld [vmem:[%s3 + $0xe8] sm:$0xff]
        %v892 = vld [vmem:[%s3 + $0xf0] sm:$0xff]
        %v893 = vld [vmem:[%s3 + $0xf8] sm:$0xff]
        %v894 = vld [vmem:[%s3 + $0x100] sm:$0xff]
        %v895 = vld [vmem:[%s3 + $0x108] sm:$0xff]
        %v896 = vld [vmem:[%s3 + $0x110] sm:$0xff]
        %v897 = vld [vmem:[%s3 + $0x118] sm:$0xff]
        %v898 = vld [vmem:[%s3 + $0x120] sm:$0xff]
        %v899 = vld [vmem:[%s3 + $0x128] sm:$0xff]
        %v900 = vld [vmem:[%s3 + $0x130] sm:$0xff]
        %v901 = vld [vmem:[%s3 + $0x138] sm:$0xff]
        %v902 = vld [vmem:[%s3 + $0x140] sm:$0xff]
        %v903 = vld [vmem:[%s3 + $0x148] sm:$0xff]
        %v904 = vld [vmem:[%s3 + $0x150] sm:$0xff]
        %v905 = vld [vmem:[%s3 + $0x158] sm:$0xff]
        %v906 = vld [vmem:[%s3 + $0x160] sm:$0xff]
        %v907 = vld [vmem:[%s3 + $0x168] sm:$0xff]
        %v908 = vld [vmem:[%s3 + $0x170] sm:$0xff]
        %v909 = vld [vmem:[%s3 + $0x178] sm:$0xff]
        %v910 = vld [vmem:[%s3 + $0x180] sm:$0xff]
        %v911 = vld [vmem:[%s3 + $0x188] sm:$0xff]
        %v912 = vld [vmem:[%s3 + $0x190] sm:$0xff]
        %v913 = vld [vmem:[%s3 + $0x198] sm:$0xff]
        %v914 = vld [vmem:[%s3 + $0x1a0] sm:$0xff]
        %v915 = vld [vmem:[%s3 + $0x1a8] sm:$0xff]
        %v916 = vld [vmem:[%s3 + $0x1b0] sm:$0xff]
        %v917 = vld [vmem:[%s3 + $0x1b8] sm:$0xff]
        %v918 = vld [vmem:[%s3 + $0x1c0] sm:$0xff]
        %v919 = vld [vmem:[%s3 + $0x1c8] sm:$0xff]
        %v920 = vld [vmem:[%s3 + $0x1d0] sm:$0xff]
        %v921 = vld [vmem:[%s3 + $0x1d8] sm:$0xff]
        %v922 = vld [vmem:[%s3 + $0x1e0] sm:$0xff]
        %v923 = vld [vmem:[%s3 + $0x1e8] sm:$0xff]
        %v924 = vld [vmem:[%s3 + $0x1f0] sm:$0xff]
        %v925 = vld [vmem:[%s3 + $0x1f8] sm:$0xff]
        %v926 = vld [vmem:[%s4] sm:$0x3]
        %v928 = vperm.slane %v926, 0
        %v929 = vperm.slane %v926, 1
        %932 = vmatpush.msra.mxu0 %v892
        %933 = vmatpush.msra.mxu0 %v890
        %934 = vmatpush.msra.mxu0 %v888
        %935 = vmatpush.msra.mxu0 %v886
        %936 = vmatpush.msra.mxu0 %v884
        %937 = vmatpush.msra.mxu0 %v882
        %938 = vmatpush.msra.mxu0 %v880
        %939 = vmatpush.msra.mxu0 %v878
        %940 = vmatpush.msra.mxu0 %v876
        %941 = vmatpush.msra.mxu0 %v874
        %942 = vmatpush.msra.mxu0 %v872
        %943 = vmatpush.msra.mxu0 %v870
        %944 = vmatpush.msra.mxu0 %v868
        %945 = vmatpush.msra.mxu0 %v866
        %946 = vmatpush.msra.mxu0 %v864
        %947 = vmatpush.msra.mxu0 %v862
        %948 = vmatmul.f32.gmra.mxu0 %v798
        %v949 = vpop.f32.mrf.mxu0
        %v950 = vadd.f32 %v928, %v949
        %951 = vmatmul.f32.gmra.mxu0 %v800
        %v952 = vpop.f32.mrf.mxu0
        %v953 = vadd.f32 %v928, %v952
        %954 = vmatmul.f32.gmra.mxu0 %v802
        %v955 = vpop.f32.mrf.mxu0
        %v956 = vadd.f32 %v928, %v955
        %957 = vmatmul.f32.gmra.mxu0 %v804
        %v958 = vpop.f32.mrf.mxu0
        %v959 = vadd.f32 %v928, %v958
        %960 = vmatmul.f32.gmra.mxu0 %v806
        %v961 = vpop.f32.mrf.mxu0
        %v962 = vadd.f32 %v928, %v961
        %963 = vmatmul.f32.gmra.mxu0 %v808
        %v964 = vpop.f32.mrf.mxu0
        %v965 = vadd.f32 %v928, %v964
        %966 = vmatmul.f32.gmra.mxu0 %v810
        %v967 = vpop.f32.mrf.mxu0
        %v968 = vadd.f32 %v928, %v967
        %969 = vmatmul.f32.gmra.mxu0 %v812
        %v970 = vpop.f32.mrf.mxu0
        %v971 = vadd.f32 %v928, %v970
        %972 = vmatmul.f32.gmra.mxu0 %v814
        %v973 = vpop.f32.mrf.mxu0
        %v974 = vadd.f32 %v928, %v973
        %975 = vmatmul.f32.gmra.mxu0 %v816
        %v976 = vpop.f32.mrf.mxu0
        %v977 = vadd.f32 %v928, %v976
        %978 = vmatmul.f32.gmra.mxu0 %v818
        %v979 = vpop.f32.mrf.mxu0
        %v980 = vadd.f32 %v928, %v979
        %981 = vmatmul.f32.gmra.mxu0 %v820
        %v982 = vpop.f32.mrf.mxu0
        %v983 = vadd.f32 %v928, %v982
        %984 = vmatmul.f32.gmra.mxu0 %v822
        %v985 = vpop.f32.mrf.mxu0
        %v986 = vadd.f32 %v928, %v985
        %987 = vmatmul.f32.gmra.mxu0 %v824
        %v988 = vpop.f32.mrf.mxu0
        %v989 = vadd.f32 %v928, %v988
        %990 = vmatmul.f32.gmra.mxu0 %v826
        %v991 = vpop.f32.mrf.mxu0
        %v992 = vadd.f32 %v928, %v991
        %993 = vmatmul.f32.gmra.mxu0 %v828
        %v994 = vpop.f32.mrf.mxu0
        %v995 = vadd.f32 %v928, %v994
        %996 = vmatmul.f32.gmra.mxu0 %v830
        %v997 = vpop.f32.mrf.mxu0
        %v998 = vadd.f32 %v928, %v997
        %999 = vmatmul.f32.gmra.mxu0 %v832
        %v1000 = vpop.f32.mrf.mxu0
        %v1001 = vadd.f32 %v928, %v1000
        %1002 = vmatmul.f32.gmra.mxu0 %v834
        %v1003 = vpop.f32.mrf.mxu0
        %v1004 = vadd.f32 %v928, %v1003
        %1005 = vmatmul.f32.gmra.mxu0 %v836
        %v1006 = vpop.f32.mrf.mxu0
        %v1007 = vadd.f32 %v928, %v1006
        %1008 = vmatmul.f32.gmra.mxu0 %v838
        %v1009 = vpop.f32.mrf.mxu0
        %v1010 = vadd.f32 %v928, %v1009
        %1011 = vmatmul.f32.gmra.mxu0 %v840
        %v1012 = vpop.f32.mrf.mxu0
        %v1013 = vadd.f32 %v928, %v1012
        %1014 = vmatmul.f32.gmra.mxu0 %v842
        %v1015 = vpop.f32.mrf.mxu0
        %v1016 = vadd.f32 %v928, %v1015
        %1017 = vmatmul.f32.gmra.mxu0 %v844
        %v1018 = vpop.f32.mrf.mxu0
        %v1019 = vadd.f32 %v928, %v1018
        %1020 = vmatmul.f32.gmra.mxu0 %v846
        %v1021 = vpop.f32.mrf.mxu0
        %v1022 = vadd.f32 %v928, %v1021
        %1023 = vmatmul.f32.gmra.mxu0 %v848
        %v1024 = vpop.f32.mrf.mxu0
        %v1025 = vadd.f32 %v928, %v1024
        %1026 = vmatmul.f32.gmra.mxu0 %v850
        %v1027 = vpop.f32.mrf.mxu0
        %v1028 = vadd.f32 %v928, %v1027
        %1029 = vmatmul.f32.gmra.mxu0 %v852
        %v1030 = vpop.f32.mrf.mxu0
        %v1031 = vadd.f32 %v928, %v1030
        %1032 = vmatmul.f32.gmra.mxu0 %v854
        %v1033 = vpop.f32.mrf.mxu0
        %v1034 = vadd.f32 %v928, %v1033
        %1035 = vmatmul.f32.gmra.mxu0 %v856
        %v1036 = vpop.f32.mrf.mxu0
        %v1037 = vadd.f32 %v928, %v1036
        %1038 = vmatmul.f32.gmra.mxu0 %v858
        %v1039 = vpop.f32.mrf.mxu0
        %v1040 = vadd.f32 %v928, %v1039
        %1041 = vmatmul.f32.gmra.mxu0 %v860
        %v1042 = vpop.f32.mrf.mxu0
        %v1043 = vadd.f32 %v928, %v1042
        %1044 = vdwg.mxu0
        %1045 = vmatpush.msra.mxu0 %v924
        %1046 = vmatpush.msra.mxu0 %v922
        %1047 = vmatpush.msra.mxu0 %v920
        %1048 = vmatpush.msra.mxu0 %v918
        %1049 = vmatpush.msra.mxu0 %v916
        %1050 = vmatpush.msra.mxu0 %v914
        %1051 = vmatpush.msra.mxu0 %v912
        %1052 = vmatpush.msra.mxu0 %v910
        %1053 = vmatpush.msra.mxu0 %v908
        %1054 = vmatpush.msra.mxu0 %v906
        %1055 = vmatpush.msra.mxu0 %v904
        %1056 = vmatpush.msra.mxu0 %v902
        %1057 = vmatpush.msra.mxu0 %v900
        %1058 = vmatpush.msra.mxu0 %v898
        %1059 = vmatpush.msra.mxu0 %v896
        %1060 = vmatpush.msra.mxu0 %v894
        %1061 = vmatmul.f32.gmra.mxu0 %v799
        %v1062 = vpop.f32.mrf.mxu0
        %v1063 = vadd.f32 %v950, %v1062
        %1064 = vmatmul.f32.gmra.mxu0 %v801
        %v1065 = vpop.f32.mrf.mxu0
        %v1066 = vadd.f32 %v953, %v1065
        %1067 = vmatmul.f32.gmra.mxu0 %v803
        %v1068 = vpop.f32.mrf.mxu0
        %v1069 = vadd.f32 %v956, %v1068
        %1070 = vmatmul.f32.gmra.mxu0 %v805
        %v1071 = vpop.f32.mrf.mxu0
        %v1072 = vadd.f32 %v959, %v1071
        %1073 = vmatmul.f32.gmra.mxu0 %v807
        %v1074 = vpop.f32.mrf.mxu0
        %v1075 = vadd.f32 %v962, %v1074
        %1076 = vmatmul.f32.gmra.mxu0 %v809
        %v1077 = vpop.f32.mrf.mxu0
        %v1078 = vadd.f32 %v965, %v1077
        %1079 = vmatmul.f32.gmra.mxu0 %v811
        %v1080 = vpop.f32.mrf.mxu0
        %v1081 = vadd.f32 %v968, %v1080
        %1082 = vmatmul.f32.gmra.mxu0 %v813
        %v1083 = vpop.f32.mrf.mxu0
        %v1084 = vadd.f32 %v971, %v1083
        %1085 = vmatmul.f32.gmra.mxu0 %v815
        %v1086 = vpop.f32.mrf.mxu0
        %v1087 = vadd.f32 %v974, %v1086
        %1088 = vmatmul.f32.gmra.mxu0 %v817
        %v1089 = vpop.f32.mrf.mxu0
        %v1090 = vadd.f32 %v977, %v1089
        %1091 = vmatmul.f32.gmra.mxu0 %v819
        %v1092 = vpop.f32.mrf.mxu0
        %v1093 = vadd.f32 %v980, %v1092
        %1094 = vmatmul.f32.gmra.mxu0 %v821
        %v1095 = vpop.f32.mrf.mxu0
        %v1096 = vadd.f32 %v983, %v1095
        %1097 = vmatmul.f32.gmra.mxu0 %v823
        %v1098 = vpop.f32.mrf.mxu0
        %v1099 = vadd.f32 %v986, %v1098
        %1100 = vmatmul.f32.gmra.mxu0 %v825
        %v1101 = vpop.f32.mrf.mxu0
        %v1102 = vadd.f32 %v989, %v1101
        %1103 = vmatmul.f32.gmra.mxu0 %v827
        %v1104 = vpop.f32.mrf.mxu0
        %v1105 = vadd.f32 %v992, %v1104
        %1106 = vmatmul.f32.gmra.mxu0 %v829
        %v1107 = vpop.f32.mrf.mxu0
        %v1108 = vadd.f32 %v995, %v1107
        %1109 = vmatmul.f32.gmra.mxu0 %v831
        %v1110 = vpop.f32.mrf.mxu0
        %v1111 = vadd.f32 %v998, %v1110
        %1112 = vmatmul.f32.gmra.mxu0 %v833
        %v1113 = vpop.f32.mrf.mxu0
        %v1114 = vadd.f32 %v1001, %v1113
        %1115 = vmatmul.f32.gmra.mxu0 %v835
        %v1116 = vpop.f32.mrf.mxu0
        %v1117 = vadd.f32 %v1004, %v1116
        %1118 = vmatmul.f32.gmra.mxu0 %v837
        %v1119 = vpop.f32.mrf.mxu0
        %v1120 = vadd.f32 %v1007, %v1119
        %1121 = vmatmul.f32.gmra.mxu0 %v839
        %v1122 = vpop.f32.mrf.mxu0
        %v1123 = vadd.f32 %v1010, %v1122
        %1124 = vmatmul.f32.gmra.mxu0 %v841
        %v1125 = vpop.f32.mrf.mxu0
        %v1126 = vadd.f32 %v1013, %v1125
        %1127 = vmatmul.f32.gmra.mxu0 %v843
        %v1128 = vpop.f32.mrf.mxu0
        %v1129 = vadd.f32 %v1016, %v1128
        %1130 = vmatmul.f32.gmra.mxu0 %v845
        %v1131 = vpop.f32.mrf.mxu0
        %v1132 = vadd.f32 %v1019, %v1131
        %1133 = vmatmul.f32.gmra.mxu0 %v847
        %v1134 = vpop.f32.mrf.mxu0
        %v1135 = vadd.f32 %v1022, %v1134
        %1136 = vmatmul.f32.gmra.mxu0 %v849
        %v1137 = vpop.f32.mrf.mxu0
        %v1138 = vadd.f32 %v1025, %v1137
        %1139 = vmatmul.f32.gmra.mxu0 %v851
        %v1140 = vpop.f32.mrf.mxu0
        %v1141 = vadd.f32 %v1028, %v1140
        %1142 = vmatmul.f32.gmra.mxu0 %v853
        %v1143 = vpop.f32.mrf.mxu0
        %v1144 = vadd.f32 %v1031, %v1143
        %1145 = vmatmul.f32.gmra.mxu0 %v855
        %v1146 = vpop.f32.mrf.mxu0
        %v1147 = vadd.f32 %v1034, %v1146
        %1148 = vmatmul.f32.gmra.mxu0 %v857
        %v1149 = vpop.f32.mrf.mxu0
        %v1150 = vadd.f32 %v1037, %v1149
        %1151 = vmatmul.f32.gmra.mxu0 %v859
        %v1152 = vpop.f32.mrf.mxu0
        %v1153 = vadd.f32 %v1040, %v1152
        %1154 = vmatmul.f32.gmra.mxu0 %v861
        %v1155 = vpop.f32.mrf.mxu0
        %v1156 = vadd.f32 %v1043, %v1155
        %1157 = vdwg.mxu0
        %1158 = vmatpush.msra.mxu0 %v893
        %1159 = vmatpush.msra.mxu0 %v891
        %1160 = vmatpush.msra.mxu0 %v889
        %1161 = vmatpush.msra.mxu0 %v887
        %1162 = vmatpush.msra.mxu0 %v885
        %1163 = vmatpush.msra.mxu0 %v883
        %1164 = vmatpush.msra.mxu0 %v881
        %1165 = vmatpush.msra.mxu0 %v879
        %1166 = vmatpush.msra.mxu0 %v877
        %1167 = vmatpush.msra.mxu0 %v875
        %1168 = vmatpush.msra.mxu0 %v873
        %1169 = vmatpush.msra.mxu0 %v871
        %1170 = vmatpush.msra.mxu0 %v869
        %1171 = vmatpush.msra.mxu0 %v867
        %1172 = vmatpush.msra.mxu0 %v865
        %1173 = vmatpush.msra.mxu0 %v863
        %1174 = vmatmul.f32.gmra.mxu0 %v798
        %v1175 = vpop.f32.mrf.mxu0
        %v1176 = vadd.f32 %v929, %v1175
        %1177 = vmatmul.f32.gmra.mxu0 %v800
        %v1178 = vpop.f32.mrf.mxu0
        %v1179 = vadd.f32 %v929, %v1178
        %1180 = vmatmul.f32.gmra.mxu0 %v802
        %v1181 = vpop.f32.mrf.mxu0
        %v1182 = vadd.f32 %v929, %v1181
        %1183 = vmatmul.f32.gmra.mxu0 %v804
        %v1184 = vpop.f32.mrf.mxu0
        %v1185 = vadd.f32 %v929, %v1184
        %1186 = vmatmul.f32.gmra.mxu0 %v806
        %v1187 = vpop.f32.mrf.mxu0
        %v1188 = vadd.f32 %v929, %v1187
        %1189 = vmatmul.f32.gmra.mxu0 %v808
        %v1190 = vpop.f32.mrf.mxu0
        %v1191 = vadd.f32 %v929, %v1190
        %1192 = vmatmul.f32.gmra.mxu0 %v810
        %v1193 = vpop.f32.mrf.mxu0
        %v1194 = vadd.f32 %v929, %v1193
        %1195 = vmatmul.f32.gmra.mxu0 %v812
        %v1196 = vpop.f32.mrf.mxu0
        %v1197 = vadd.f32 %v929, %v1196
        %1198 = vmatmul.f32.gmra.mxu0 %v814
        %v1199 = vpop.f32.mrf.mxu0
        %v1200 = vadd.f32 %v929, %v1199
        %1201 = vmatmul.f32.gmra.mxu0 %v816
        %v1202 = vpop.f32.mrf.mxu0
        %v1203 = vadd.f32 %v929, %v1202
        %1204 = vmatmul.f32.gmra.mxu0 %v818
        %v1205 = vpop.f32.mrf.mxu0
        %v1206 = vadd.f32 %v929, %v1205
        %1207 = vmatmul.f32.gmra.mxu0 %v820
        %v1208 = vpop.f32.mrf.mxu0
        %v1209 = vadd.f32 %v929, %v1208
        %1210 = vmatmul.f32.gmra.mxu0 %v822
        %v1211 = vpop.f32.mrf.mxu0
        %v1212 = vadd.f32 %v929, %v1211
        %1213 = vmatmul.f32.gmra.mxu0 %v824
        %v1214 = vpop.f32.mrf.mxu0
        %v1215 = vadd.f32 %v929, %v1214
        %1216 = vmatmul.f32.gmra.mxu0 %v826
        %v1217 = vpop.f32.mrf.mxu0
        %v1218 = vadd.f32 %v929, %v1217
        %1219 = vmatmul.f32.gmra.mxu0 %v828
        %v1220 = vpop.f32.mrf.mxu0
        %v1221 = vadd.f32 %v929, %v1220
        %1222 = vmatmul.f32.gmra.mxu0 %v830
        %v1223 = vpop.f32.mrf.mxu0
        %v1224 = vadd.f32 %v929, %v1223
        %1225 = vmatmul.f32.gmra.mxu0 %v832
        %v1226 = vpop.f32.mrf.mxu0
        %v1227 = vadd.f32 %v929, %v1226
        %1228 = vmatmul.f32.gmra.mxu0 %v834
        %v1229 = vpop.f32.mrf.mxu0
        %v1230 = vadd.f32 %v929, %v1229
        %1231 = vmatmul.f32.gmra.mxu0 %v836
        %v1232 = vpop.f32.mrf.mxu0
        %v1233 = vadd.f32 %v929, %v1232
        %1234 = vmatmul.f32.gmra.mxu0 %v838
        %v1235 = vpop.f32.mrf.mxu0
        %v1236 = vadd.f32 %v929, %v1235
        %1237 = vmatmul.f32.gmra.mxu0 %v840
        %v1238 = vpop.f32.mrf.mxu0
        %v1239 = vadd.f32 %v929, %v1238
        %1240 = vmatmul.f32.gmra.mxu0 %v842
        %v1241 = vpop.f32.mrf.mxu0
        %v1242 = vadd.f32 %v929, %v1241
        %1243 = vmatmul.f32.gmra.mxu0 %v844
        %v1244 = vpop.f32.mrf.mxu0
        %v1245 = vadd.f32 %v929, %v1244
        %1246 = vmatmul.f32.gmra.mxu0 %v846
        %v1247 = vpop.f32.mrf.mxu0
        %v1248 = vadd.f32 %v929, %v1247
        %1249 = vmatmul.f32.gmra.mxu0 %v848
        %v1250 = vpop.f32.mrf.mxu0
        %v1251 = vadd.f32 %v929, %v1250
        %1252 = vmatmul.f32.gmra.mxu0 %v850
        %v1253 = vpop.f32.mrf.mxu0
        %v1254 = vadd.f32 %v929, %v1253
        %1255 = vmatmul.f32.gmra.mxu0 %v852
        %v1256 = vpop.f32.mrf.mxu0
        %v1257 = vadd.f32 %v929, %v1256
        %1258 = vmatmul.f32.gmra.mxu0 %v854
        %v1259 = vpop.f32.mrf.mxu0
        %v1260 = vadd.f32 %v929, %v1259
        %1261 = vmatmul.f32.gmra.mxu0 %v856
        %v1262 = vpop.f32.mrf.mxu0
        %v1263 = vadd.f32 %v929, %v1262
        %1264 = vmatmul.f32.gmra.mxu0 %v858
        %v1265 = vpop.f32.mrf.mxu0
        %v1266 = vadd.f32 %v929, %v1265
        %1267 = vmatmul.f32.gmra.mxu0 %v860
        %v1268 = vpop.f32.mrf.mxu0
        %v1269 = vadd.f32 %v929, %v1268
        %1270 = vdwg.mxu0
        %1271 = vmatpush.msra.mxu0 %v925
        %1272 = vmatpush.msra.mxu0 %v923
        %1273 = vmatpush.msra.mxu0 %v921
        %1274 = vmatpush.msra.mxu0 %v919
        %1275 = vmatpush.msra.mxu0 %v917
        %1276 = vmatpush.msra.mxu0 %v915
        %1277 = vmatpush.msra.mxu0 %v913
        %1278 = vmatpush.msra.mxu0 %v911
        %1279 = vmatpush.msra.mxu0 %v909
        %1280 = vmatpush.msra.mxu0 %v907
        %1281 = vmatpush.msra.mxu0 %v905
        %1282 = vmatpush.msra.mxu0 %v903
        %1283 = vmatpush.msra.mxu0 %v901
        %1284 = vmatpush.msra.mxu0 %v899
        %1285 = vmatpush.msra.mxu0 %v897
        %1286 = vmatpush.msra.mxu0 %v895
        %1287 = vmatmul.f32.gmra.mxu0 %v799
        %v1288 = vpop.f32.mrf.mxu0
        %v1289 = vadd.f32 %v1176, %v1288
        %1290 = vmatmul.f32.gmra.mxu0 %v801
        %v1291 = vpop.f32.mrf.mxu0
        %v1292 = vadd.f32 %v1179, %v1291
        %1293 = vmatmul.f32.gmra.mxu0 %v803
        %v1294 = vpop.f32.mrf.mxu0
        %v1295 = vadd.f32 %v1182, %v1294
        %1296 = vmatmul.f32.gmra.mxu0 %v805
        %v1297 = vpop.f32.mrf.mxu0
        %v1298 = vadd.f32 %v1185, %v1297
        %1299 = vmatmul.f32.gmra.mxu0 %v807
        %v1300 = vpop.f32.mrf.mxu0
        %v1301 = vadd.f32 %v1188, %v1300
        %1302 = vmatmul.f32.gmra.mxu0 %v809
        %v1303 = vpop.f32.mrf.mxu0
        %v1304 = vadd.f32 %v1191, %v1303
        %1305 = vmatmul.f32.gmra.mxu0 %v811
        %v1306 = vpop.f32.mrf.mxu0
        %v1307 = vadd.f32 %v1194, %v1306
        %1308 = vmatmul.f32.gmra.mxu0 %v813
        %v1309 = vpop.f32.mrf.mxu0
        %v1310 = vadd.f32 %v1197, %v1309
        %1311 = vmatmul.f32.gmra.mxu0 %v815
        %v1312 = vpop.f32.mrf.mxu0
        %v1313 = vadd.f32 %v1200, %v1312
        %1314 = vmatmul.f32.gmra.mxu0 %v817
        %v1315 = vpop.f32.mrf.mxu0
        %v1316 = vadd.f32 %v1203, %v1315
        %1317 = vmatmul.f32.gmra.mxu0 %v819
        %v1318 = vpop.f32.mrf.mxu0
        %v1319 = vadd.f32 %v1206, %v1318
        %1320 = vmatmul.f32.gmra.mxu0 %v821
        %v1321 = vpop.f32.mrf.mxu0
        %v1322 = vadd.f32 %v1209, %v1321
        %1323 = vmatmul.f32.gmra.mxu0 %v823
        %v1324 = vpop.f32.mrf.mxu0
        %v1325 = vadd.f32 %v1212, %v1324
        %1326 = vmatmul.f32.gmra.mxu0 %v825
        %v1327 = vpop.f32.mrf.mxu0
        %v1328 = vadd.f32 %v1215, %v1327
        %1329 = vmatmul.f32.gmra.mxu0 %v827
        %v1330 = vpop.f32.mrf.mxu0
        %v1331 = vadd.f32 %v1218, %v1330
        %1332 = vmatmul.f32.gmra.mxu0 %v829
        %v1333 = vpop.f32.mrf.mxu0
        %v1334 = vadd.f32 %v1221, %v1333
        %1335 = vmatmul.f32.gmra.mxu0 %v831
        %v1336 = vpop.f32.mrf.mxu0
        %v1337 = vadd.f32 %v1224, %v1336
        %1338 = vmatmul.f32.gmra.mxu0 %v833
        %v1339 = vpop.f32.mrf.mxu0
        %v1340 = vadd.f32 %v1227, %v1339
        %1341 = vmatmul.f32.gmra.mxu0 %v835
        %v1342 = vpop.f32.mrf.mxu0
        %v1343 = vadd.f32 %v1230, %v1342
        %1344 = vmatmul.f32.gmra.mxu0 %v837
        %v1345 = vpop.f32.mrf.mxu0
        %v1346 = vadd.f32 %v1233, %v1345
        %1347 = vmatmul.f32.gmra.mxu0 %v839
        %v1348 = vpop.f32.mrf.mxu0
        %v1349 = vadd.f32 %v1236, %v1348
        %1350 = vmatmul.f32.gmra.mxu0 %v841
        %v1351 = vpop.f32.mrf.mxu0
        %v1352 = vadd.f32 %v1239, %v1351
        %1353 = vmatmul.f32.gmra.mxu0 %v843
        %v1354 = vpop.f32.mrf.mxu0
        %v1355 = vadd.f32 %v1242, %v1354
        %1356 = vmatmul.f32.gmra.mxu0 %v845
        %v1357 = vpop.f32.mrf.mxu0
        %v1358 = vadd.f32 %v1245, %v1357
        %1359 = vmatmul.f32.gmra.mxu0 %v847
        %v1360 = vpop.f32.mrf.mxu0
        %v1361 = vadd.f32 %v1248, %v1360
        %1362 = vmatmul.f32.gmra.mxu0 %v849
        %v1363 = vpop.f32.mrf.mxu0
        %v1364 = vadd.f32 %v1251, %v1363
        %1365 = vmatmul.f32.gmra.mxu0 %v851
        %v1366 = vpop.f32.mrf.mxu0
        %v1367 = vadd.f32 %v1254, %v1366
        %1368 = vmatmul.f32.gmra.mxu0 %v853
        %v1369 = vpop.f32.mrf.mxu0
        %v1370 = vadd.f32 %v1257, %v1369
        %1371 = vmatmul.f32.gmra.mxu0 %v855
        %v1372 = vpop.f32.mrf.mxu0
        %v1373 = vadd.f32 %v1260, %v1372
        %1374 = vmatmul.f32.gmra.mxu0 %v857
        %v1375 = vpop.f32.mrf.mxu0
        %v1376 = vadd.f32 %v1263, %v1375
        %1377 = vmatmul.f32.gmra.mxu0 %v859
        %v1378 = vpop.f32.mrf.mxu0
        %v1379 = vadd.f32 %v1266, %v1378
        %1380 = vmatmul.f32.gmra.mxu0 %v861
        %v1381 = vpop.f32.mrf.mxu0
        %v1382 = vadd.f32 %v1269, %v1381
        %1383 = vdwg.mxu0
        %v1384 = vtanh.pop %v1063
        %v1385 = vtanh.pop %v1289
        %v1386 = vtanh.pop %v1066
        %v1387 = vtanh.pop %v1292
        %v1388 = vtanh.pop %v1069
        %v1389 = vtanh.pop %v1295
        %v1390 = vtanh.pop %v1072
        %v1391 = vtanh.pop %v1298
        %v1392 = vtanh.pop %v1075
        %v1393 = vtanh.pop %v1301
        %v1394 = vtanh.pop %v1078
        %v1395 = vtanh.pop %v1304
        %v1396 = vtanh.pop %v1081
        %v1397 = vtanh.pop %v1307
        %v1398 = vtanh.pop %v1084
        %v1399 = vtanh.pop %v1310
        %v1400 = vtanh.pop %v1087
        %v1401 = vtanh.pop %v1313
        %v1402 = vtanh.pop %v1090
        %v1403 = vtanh.pop %v1316
        %v1404 = vtanh.pop %v1093
        %v1405 = vtanh.pop %v1319
        %v1406 = vtanh.pop %v1096
        %v1407 = vtanh.pop %v1322
        %v1408 = vtanh.pop %v1099
        %v1409 = vtanh.pop %v1325
        %v1410 = vtanh.pop %v1102
        %v1411 = vtanh.pop %v1328
        %v1412 = vtanh.pop %v1105
        %v1413 = vtanh.pop %v1331
        %v1414 = vtanh.pop %v1108
        %v1415 = vtanh.pop %v1334
        %v1416 = vtanh.pop %v1111
        %v1417 = vtanh.pop %v1337
        %v1418 = vtanh.pop %v1114
        %v1419 = vtanh.pop %v1340
        %v1420 = vtanh.pop %v1117
        %v1421 = vtanh.pop %v1343
        %v1422 = vtanh.pop %v1120
        %v1423 = vtanh.pop %v1346
        %v1424 = vtanh.pop %v1123
        %v1425 = vtanh.pop %v1349
        %v1426 = vtanh.pop %v1126
        %v1427 = vtanh.pop %v1352
        %v1428 = vtanh.pop %v1129
        %v1429 = vtanh.pop %v1355
        %v1430 = vtanh.pop %v1132
        %v1431 = vtanh.pop %v1358
        %v1432 = vtanh.pop %v1135
        %v1433 = vtanh.pop %v1361
        %v1434 = vtanh.pop %v1138
        %v1435 = vtanh.pop %v1364
        %v1436 = vtanh.pop %v1141
        %v1437 = vtanh.pop %v1367
        %v1438 = vtanh.pop %v1144
        %v1439 = vtanh.pop %v1370
        %v1440 = vtanh.pop %v1147
        %v1441 = vtanh.pop %v1373
        %v1442 = vtanh.pop %v1150
        %v1443 = vtanh.pop %v1376
        %v1444 = vtanh.pop %v1153
        %v1445 = vtanh.pop %v1379
        %v1446 = vtanh.pop %v1156
        %v1447 = vtanh.pop %v1382
        %v1448 = vld [vmem:[%s5] sm:$0xff]
        %v1449 = vld [vmem:[%s5 + $0x8] sm:$0xff]
        %v1450 = vld [vmem:[%s5 + $0x10] sm:$0xff]
        %v1451 = vld [vmem:[%s5 + $0x18] sm:$0xff]
        %v1452 = vld [vmem:[%s5 + $0x20] sm:$0xff]
        %v1453 = vld [vmem:[%s5 + $0x28] sm:$0xff]
        %v1454 = vld [vmem:[%s5 + $0x30] sm:$0xff]
        %v1455 = vld [vmem:[%s5 + $0x38] sm:$0xff]
        %v1456 = vld [vmem:[%s5 + $0x40] sm:$0xff]
        %v1457 = vld [vmem:[%s5 + $0x48] sm:$0xff]
        %v1458 = vld [vmem:[%s5 + $0x50] sm:$0xff]
        %v1459 = vld [vmem:[%s5 + $0x58] sm:$0xff]
        %v1460 = vld [vmem:[%s5 + $0x60] sm:$0xff]
        %v1461 = vld [vmem:[%s5 + $0x68] sm:$0xff]
        %v1462 = vld [vmem:[%s5 + $0x70] sm:$0xff]
        %v1463 = vld [vmem:[%s5 + $0x78] sm:$0xff]
        %v1464 = vld [vmem:[%s5 + $0x80] sm:$0xff]
        %v1465 = vld [vmem:[%s5 + $0x88] sm:$0xff]
        %v1466 = vld [vmem:[%s5 + $0x90] sm:$0xff]
        %v1467 = vld [vmem:[%s5 + $0x98] sm:$0xff]
        %v1468 = vld [vmem:[%s5 + $0xa0] sm:$0xff]
        %v1469 = vld [vmem:[%s5 + $0xa8] sm:$0xff]
        %v1470 = vld [vmem:[%s5 + $0xb0] sm:$0xff]
        %v1471 = vld [vmem:[%s5 + $0xb8] sm:$0xff]
        %v1472 = vld [vmem:[%s5 + $0xc0] sm:$0xff]
        %v1473 = vld [vmem:[%s5 + $0xc8] sm:$0xff]
        %v1474 = vld [vmem:[%s5 + $0xd0] sm:$0xff]
        %v1475 = vld [vmem:[%s5 + $0xd8] sm:$0xff]
        %v1476 = vld [vmem:[%s5 + $0xe0] sm:$0xff]
        %v1477 = vld [vmem:[%s5 + $0xe8] sm:$0xff]
        %v1478 = vld [vmem:[%s5 + $0xf0] sm:$0xff]
        %v1479 = vld [vmem:[%s5 + $0xf8] sm:$0xff]
        %v1480 = vld [vmem:[%s5 + $0x100] sm:$0xff]
        %v1481 = vld [vmem:[%s5 + $0x108] sm:$0xff]
        %v1482 = vld [vmem:[%s5 + $0x110] sm:$0xff]
        %v1483 = vld [vmem:[%s5 + $0x118] sm:$0xff]
        %v1484 = vld [vmem:[%s5 + $0x120] sm:$0xff]
        %v1485 = vld [vmem:[%s5 + $0x128] sm:$0xff]
        %v1486 = vld [vmem:[%s5 + $0x130] sm:$0xff]
        %v1487 = vld [vmem:[%s5 + $0x138] sm:$0xff]
        %v1488 = vld [vmem:[%s5 + $0x140] sm:$0xff]
        %v1489 = vld [vmem:[%s5 + $0x148] sm:$0xff]
        %v1490 = vld [vmem:[%s5 + $0x150] sm:$0xff]
        %v1491 = vld [vmem:[%s5 + $0x158] sm:$0xff]
        %v1492 = vld [vmem:[%s5 + $0x160] sm:$0xff]
        %v1493 = vld [vmem:[%s5 + $0x168] sm:$0xff]
        %v1494 = vld [vmem:[%s5 + $0x170] sm:$0xff]
        %v1495 = vld [vmem:[%s5 + $0x178] sm:$0xff]
        %v1496 = vld [vmem:[%s5 + $0x180] sm:$0xff]
        %v1497 = vld [vmem:[%s5 + $0x188] sm:$0xff]
        %v1498 = vld [vmem:[%s5 + $0x190] sm:$0xff]
        %v1499 = vld [vmem:[%s5 + $0x198] sm:$0xff]
        %v1500 = vld [vmem:[%s5 + $0x1a0] sm:$0xff]
        %v1501 = vld [vmem:[%s5 + $0x1a8] sm:$0xff]
        %v1502 = vld [vmem:[%s5 + $0x1b0] sm:$0xff]
        %v1503 = vld [vmem:[%s5 + $0x1b8] sm:$0xff]
        %v1504 = vld [vmem:[%s5 + $0x1c0] sm:$0xff]
        %v1505 = vld [vmem:[%s5 + $0x1c8] sm:$0xff]
        %v1506 = vld [vmem:[%s5 + $0x1d0] sm:$0xff]
        %v1507 = vld [vmem:[%s5 + $0x1d8] sm:$0xff]
        %v1508 = vld [vmem:[%s5 + $0x1e0] sm:$0xff]
        %v1509 = vld [vmem:[%s5 + $0x1e8] sm:$0xff]
        %v1510 = vld [vmem:[%s5 + $0x1f0] sm:$0xff]
        %v1511 = vld [vmem:[%s5 + $0x1f8] sm:$0xff]
        %v1512 = vld [vmem:[%s6] sm:$0x3]
        %v1514 = vperm.slane %v1512, 0
        %v1515 = vperm.slane %v1512, 1
        %1518 = vmatpush.msra.mxu0 %v1478
        %1519 = vmatpush.msra.mxu0 %v1476
        %1520 = vmatpush.msra.mxu0 %v1474
        %1521 = vmatpush.msra.mxu0 %v1472
        %1522 = vmatpush.msra.mxu0 %v1470
        %1523 = vmatpush.msra.mxu0 %v1468
        %1524 = vmatpush.msra.mxu0 %v1466
        %1525 = vmatpush.msra.mxu0 %v1464
        %1526 = vmatpush.msra.mxu0 %v1462
        %1527 = vmatpush.msra.mxu0 %v1460
        %1528 = vmatpush.msra.mxu0 %v1458
        %1529 = vmatpush.msra.mxu0 %v1456
        %1530 = vmatpush.msra.mxu0 %v1454
        %1531 = vmatpush.msra.mxu0 %v1452
        %1532 = vmatpush.msra.mxu0 %v1450
        %1533 = vmatpush.msra.mxu0 %v1448
        %1534 = vmatmul.f32.gmra.mxu0 %v1384
        %v1535 = vpop.f32.mrf.mxu0
        %v1536 = vadd.f32 %v1514, %v1535
        %1537 = vmatmul.f32.gmra.mxu0 %v1386
        %v1538 = vpop.f32.mrf.mxu0
        %v1539 = vadd.f32 %v1514, %v1538
        %1540 = vmatmul.f32.gmra.mxu0 %v1388
        %v1541 = vpop.f32.mrf.mxu0
        %v1542 = vadd.f32 %v1514, %v1541
        %1543 = vmatmul.f32.gmra.mxu0 %v1390
        %v1544 = vpop.f32.mrf.mxu0
        %v1545 = vadd.f32 %v1514, %v1544
        %1546 = vmatmul.f32.gmra.mxu0 %v1392
        %v1547 = vpop.f32.mrf.mxu0
        %v1548 = vadd.f32 %v1514, %v1547
        %1549 = vmatmul.f32.gmra.mxu0 %v1394
        %v1550 = vpop.f32.mrf.mxu0
        %v1551 = vadd.f32 %v1514, %v1550
        %1552 = vmatmul.f32.gmra.mxu0 %v1396
        %v1553 = vpop.f32.mrf.mxu0
        %v1554 = vadd.f32 %v1514, %v1553
        %1555 = vmatmul.f32.gmra.mxu0 %v1398
        %v1556 = vpop.f32.mrf.mxu0
        %v1557 = vadd.f32 %v1514, %v1556
        %1558 = vmatmul.f32.gmra.mxu0 %v1400
        %v1559 = vpop.f32.mrf.mxu0
        %v1560 = vadd.f32 %v1514, %v1559
        %1561 = vmatmul.f32.gmra.mxu0 %v1402
        %v1562 = vpop.f32.mrf.mxu0
        %v1563 = vadd.f32 %v1514, %v1562
        %1564 = vmatmul.f32.gmra.mxu0 %v1404
        %v1565 = vpop.f32.mrf.mxu0
        %v1566 = vadd.f32 %v1514, %v1565
        %1567 = vmatmul.f32.gmra.mxu0 %v1406
        %v1568 = vpop.f32.mrf.mxu0
        %v1569 = vadd.f32 %v1514, %v1568
        %1570 = vmatmul.f32.gmra.mxu0 %v1408
        %v1571 = vpop.f32.mrf.mxu0
        %v1572 = vadd.f32 %v1514, %v1571
        %1573 = vmatmul.f32.gmra.mxu0 %v1410
        %v1574 = vpop.f32.mrf.mxu0
        %v1575 = vadd.f32 %v1514, %v1574
        %1576 = vmatmul.f32.gmra.mxu0 %v1412
        %v1577 = vpop.f32.mrf.mxu0
        %v1578 = vadd.f32 %v1514, %v1577
        %1579 = vmatmul.f32.gmra.mxu0 %v1414
        %v1580 = vpop.f32.mrf.mxu0
        %v1581 = vadd.f32 %v1514, %v1580
        %1582 = vmatmul.f32.gmra.mxu0 %v1416
        %v1583 = vpop.f32.mrf.mxu0
        %v1584 = vadd.f32 %v1514, %v1583
        %1585 = vmatmul.f32.gmra.mxu0 %v1418
        %v1586 = vpop.f32.mrf.mxu0
        %v1587 = vadd.f32 %v1514, %v1586
        %1588 = vmatmul.f32.gmra.mxu0 %v1420
        %v1589 = vpop.f32.mrf.mxu0
        %v1590 = vadd.f32 %v1514, %v1589
        %1591 = vmatmul.f32.gmra.mxu0 %v1422
        %v1592 = vpop.f32.mrf.mxu0
        %v1593 = vadd.f32 %v1514, %v1592
        %1594 = vmatmul.f32.gmra.mxu0 %v1424
        %v1595 = vpop.f32.mrf.mxu0
        %v1596 = vadd.f32 %v1514, %v1595
        %1597 = vmatmul.f32.gmra.mxu0 %v1426
        %v1598 = vpop.f32.mrf.mxu0
        %v1599 = vadd.f32 %v1514, %v1598
        %1600 = vmatmul.f32.gmra.mxu0 %v1428
        %v1601 = vpop.f32.mrf.mxu0
        %v1602 = vadd.f32 %v1514, %v1601
        %1603 = vmatmul.f32.gmra.mxu0 %v1430
        %v1604 = vpop.f32.mrf.mxu0
        %v1605 = vadd.f32 %v1514, %v1604
        %1606 = vmatmul.f32.gmra.mxu0 %v1432
        %v1607 = vpop.f32.mrf.mxu0
        %v1608 = vadd.f32 %v1514, %v1607
        %1609 = vmatmul.f32.gmra.mxu0 %v1434
        %v1610 = vpop.f32.mrf.mxu0
        %v1611 = vadd.f32 %v1514, %v1610
        %1612 = vmatmul.f32.gmra.mxu0 %v1436
        %v1613 = vpop.f32.mrf.mxu0
        %v1614 = vadd.f32 %v1514, %v1613
        %1615 = vmatmul.f32.gmra.mxu0 %v1438
        %v1616 = vpop.f32.mrf.mxu0
        %v1617 = vadd.f32 %v1514, %v1616
        %1618 = vmatmul.f32.gmra.mxu0 %v1440
        %v1619 = vpop.f32.mrf.mxu0
        %v1620 = vadd.f32 %v1514, %v1619
        %1621 = vmatmul.f32.gmra.mxu0 %v1442
        %v1622 = vpop.f32.mrf.mxu0
        %v1623 = vadd.f32 %v1514, %v1622
        %1624 = vmatmul.f32.gmra.mxu0 %v1444
        %v1625 = vpop.f32.mrf.mxu0
        %v1626 = vadd.f32 %v1514, %v1625
        %1627 = vmatmul.f32.gmra.mxu0 %v1446
        %v1628 = vpop.f32.mrf.mxu0
        %v1629 = vadd.f32 %v1514, %v1628
        %1630 = vdwg.mxu0
        %1631 = vmatpush.msra.mxu0 %v1510
        %1632 = vmatpush.msra.mxu0 %v1508
        %1633 = vmatpush.msra.mxu0 %v1506
        %1634 = vmatpush.msra.mxu0 %v1504
        %1635 = vmatpush.msra.mxu0 %v1502
        %1636 = vmatpush.msra.mxu0 %v1500
        %1637 = vmatpush.msra.mxu0 %v1498
        %1638 = vmatpush.msra.mxu0 %v1496
        %1639 = vmatpush.msra.mxu0 %v1494
        %1640 = vmatpush.msra.mxu0 %v1492
        %1641 = vmatpush.msra.mxu0 %v1490
        %1642 = vmatpush.msra.mxu0 %v1488
        %1643 = vmatpush.msra.mxu0 %v1486
        %1644 = vmatpush.msra.mxu0 %v1484
        %1645 = vmatpush.msra.mxu0 %v1482
        %1646 = vmatpush.msra.mxu0 %v1480
        %1647 = vmatmul.f32.gmra.mxu0 %v1385
        %v1648 = vpop.f32.mrf.mxu0
        %v1649 = vadd.f32 %v1536, %v1648
        %1650 = vmatmul.f32.gmra.mxu0 %v1387
        %v1651 = vpop.f32.mrf.mxu0
        %v1652 = vadd.f32 %v1539, %v1651
        %1653 = vmatmul.f32.gmra.mxu0 %v1389
        %v1654 = vpop.f32.mrf.mxu0
        %v1655 = vadd.f32 %v1542, %v1654
        %1656 = vmatmul.f32.gmra.mxu0 %v1391
        %v1657 = vpop.f32.mrf.mxu0
        %v1658 = vadd.f32 %v1545, %v1657
        %1659 = vmatmul.f32.gmra.mxu0 %v1393
        %v1660 = vpop.f32.mrf.mxu0
        %v1661 = vadd.f32 %v1548, %v1660
        %1662 = vmatmul.f32.gmra.mxu0 %v1395
        %v1663 = vpop.f32.mrf.mxu0
        %v1664 = vadd.f32 %v1551, %v1663
        %1665 = vmatmul.f32.gmra.mxu0 %v1397
        %v1666 = vpop.f32.mrf.mxu0
        %v1667 = vadd.f32 %v1554, %v1666
        %1668 = vmatmul.f32.gmra.mxu0 %v1399
        %v1669 = vpop.f32.mrf.mxu0
        %v1670 = vadd.f32 %v1557, %v1669
        %1671 = vmatmul.f32.gmra.mxu0 %v1401
        %v1672 = vpop.f32.mrf.mxu0
        %v1673 = vadd.f32 %v1560, %v1672
        %1674 = vmatmul.f32.gmra.mxu0 %v1403
        %v1675 = vpop.f32.mrf.mxu0
        %v1676 = vadd.f32 %v1563, %v1675
        %1677 = vmatmul.f32.gmra.mxu0 %v1405
        %v1678 = vpop.f32.mrf.mxu0
        %v1679 = vadd.f32 %v1566, %v1678
        %1680 = vmatmul.f32.gmra.mxu0 %v1407
        %v1681 = vpop.f32.mrf.mxu0
        %v1682 = vadd.f32 %v1569, %v1681
        %1683 = vmatmul.f32.gmra.mxu0 %v1409
        %v1684 = vpop.f32.mrf.mxu0
        %v1685 = vadd.f32 %v1572, %v1684
        %1686 = vmatmul.f32.gmra.mxu0 %v1411
        %v1687 = vpop.f32.mrf.mxu0
        %v1688 = vadd.f32 %v1575, %v1687
        %1689 = vmatmul.f32.gmra.mxu0 %v1413
        %v1690 = vpop.f32.mrf.mxu0
        %v1691 = vadd.f32 %v1578, %v1690
        %1692 = vmatmul.f32.gmra.mxu0 %v1415
        %v1693 = vpop.f32.mrf.mxu0
        %v1694 = vadd.f32 %v1581, %v1693
        %1695 = vmatmul.f32.gmra.mxu0 %v1417
        %v1696 = vpop.f32.mrf.mxu0
        %v1697 = vadd.f32 %v1584, %v1696
        %1698 = vmatmul.f32.gmra.mxu0 %v1419
        %v1699 = vpop.f32.mrf.mxu0
        %v1700 = vadd.f32 %v1587, %v1699
        %1701 = vmatmul.f32.gmra.mxu0 %v1421
        %v1702 = vpop.f32.mrf.mxu0
        %v1703 = vadd.f32 %v1590, %v1702
        %1704 = vmatmul.f32.gmra.mxu0 %v1423
        %v1705 = vpop.f32.mrf.mxu0
        %v1706 = vadd.f32 %v1593, %v1705
        %1707 = vmatmul.f32.gmra.mxu0 %v1425
        %v1708 = vpop.f32.mrf.mxu0
        %v1709 = vadd.f32 %v1596, %v1708
        %1710 = vmatmul.f32.gmra.mxu0 %v1427
        %v1711 = vpop.f32.mrf.mxu0
        %v1712 = vadd.f32 %v1599, %v1711
        %1713 = vmatmul.f32.gmra.mxu0 %v1429
        %v1714 = vpop.f32.mrf.mxu0
        %v1715 = vadd.f32 %v1602, %v1714
        %1716 = vmatmul.f32.gmra.mxu0 %v1431
        %v1717 = vpop.f32.mrf.mxu0
        %v1718 = vadd.f32 %v1605, %v1717
        %1719 = vmatmul.f32.gmra.mxu0 %v1433
        %v1720 = vpop.f32.mrf.mxu0
        %v1721 = vadd.f32 %v1608, %v1720
        %1722 = vmatmul.f32.gmra.mxu0 %v1435
        %v1723 = vpop.f32.mrf.mxu0
        %v1724 = vadd.f32 %v1611, %v1723
        %1725 = vmatmul.f32.gmra.mxu0 %v1437
        %v1726 = vpop.f32.mrf.mxu0
        %v1727 = vadd.f32 %v1614, %v1726
        %1728 = vmatmul.f32.gmra.mxu0 %v1439
        %v1729 = vpop.f32.mrf.mxu0
        %v1730 = vadd.f32 %v1617, %v1729
        %1731 = vmatmul.f32.gmra.mxu0 %v1441
        %v1732 = vpop.f32.mrf.mxu0
        %v1733 = vadd.f32 %v1620, %v1732
        %1734 = vmatmul.f32.gmra.mxu0 %v1443
        %v1735 = vpop.f32.mrf.mxu0
        %v1736 = vadd.f32 %v1623, %v1735
        %1737 = vmatmul.f32.gmra.mxu0 %v1445
        %v1738 = vpop.f32.mrf.mxu0
        %v1739 = vadd.f32 %v1626, %v1738
        %1740 = vmatmul.f32.gmra.mxu0 %v1447
        %v1741 = vpop.f32.mrf.mxu0
        %v1742 = vadd.f32 %v1629, %v1741
        %1743 = vdwg.mxu0
        %1744 = vmatpush.msra.mxu0 %v1479
        %1745 = vmatpush.msra.mxu0 %v1477
        %1746 = vmatpush.msra.mxu0 %v1475
        %1747 = vmatpush.msra.mxu0 %v1473
        %1748 = vmatpush.msra.mxu0 %v1471
        %1749 = vmatpush.msra.mxu0 %v1469
        %1750 = vmatpush.msra.mxu0 %v1467
        %1751 = vmatpush.msra.mxu0 %v1465
        %1752 = vmatpush.msra.mxu0 %v1463
        %1753 = vmatpush.msra.mxu0 %v1461
        %1754 = vmatpush.msra.mxu0 %v1459
        %1755 = vmatpush.msra.mxu0 %v1457
        %1756 = vmatpush.msra.mxu0 %v1455
        %1757 = vmatpush.msra.mxu0 %v1453
        %1758 = vmatpush.msra.mxu0 %v1451
        %1759 = vmatpush.msra.mxu0 %v1449
        %1760 = vmatmul.f32.gmra.mxu0 %v1384
        %v1761 = vpop.f32.mrf.mxu0
        %v1762 = vadd.f32 %v1515, %v1761
        %1763 = vmatmul.f32.gmra.mxu0 %v1386
        %v1764 = vpop.f32.mrf.mxu0
        %v1765 = vadd.f32 %v1515, %v1764
        %1766 = vmatmul.f32.gmra.mxu0 %v1388
        %v1767 = vpop.f32.mrf.mxu0
        %v1768 = vadd.f32 %v1515, %v1767
        %1769 = vmatmul.f32.gmra.mxu0 %v1390
        %v1770 = vpop.f32.mrf.mxu0
        %v1771 = vadd.f32 %v1515, %v1770
        %1772 = vmatmul.f32.gmra.mxu0 %v1392
        %v1773 = vpop.f32.mrf.mxu0
        %v1774 = vadd.f32 %v1515, %v1773
        %1775 = vmatmul.f32.gmra.mxu0 %v1394
        %v1776 = vpop.f32.mrf.mxu0
        %v1777 = vadd.f32 %v1515, %v1776
        %1778 = vmatmul.f32.gmra.mxu0 %v1396
        %v1779 = vpop.f32.mrf.mxu0
        %v1780 = vadd.f32 %v1515, %v1779
        %1781 = vmatmul.f32.gmra.mxu0 %v1398
        %v1782 = vpop.f32.mrf.mxu0
        %v1783 = vadd.f32 %v1515, %v1782
        %1784 = vmatmul.f32.gmra.mxu0 %v1400
        %v1785 = vpop.f32.mrf.mxu0
        %v1786 = vadd.f32 %v1515, %v1785
        %1787 = vmatmul.f32.gmra.mxu0 %v1402
        %v1788 = vpop.f32.mrf.mxu0
        %v1789 = vadd.f32 %v1515, %v1788
        %1790 = vmatmul.f32.gmra.mxu0 %v1404
        %v1791 = vpop.f32.mrf.mxu0
        %v1792 = vadd.f32 %v1515, %v1791
        %1793 = vmatmul.f32.gmra.mxu0 %v1406
        %v1794 = vpop.f32.mrf.mxu0
        %v1795 = vadd.f32 %v1515, %v1794
        %1796 = vmatmul.f32.gmra.mxu0 %v1408
        %v1797 = vpop.f32.mrf.mxu0
        %v1798 = vadd.f32 %v1515, %v1797
        %1799 = vmatmul.f32.gmra.mxu0 %v1410
        %v1800 = vpop.f32.mrf.mxu0
        %v1801 = vadd.f32 %v1515, %v1800
        %1802 = vmatmul.f32.gmra.mxu0 %v1412
        %v1803 = vpop.f32.mrf.mxu0
        %v1804 = vadd.f32 %v1515, %v1803
        %1805 = vmatmul.f32.gmra.mxu0 %v1414
        %v1806 = vpop.f32.mrf.mxu0
        %v1807 = vadd.f32 %v1515, %v1806
        %1808 = vmatmul.f32.gmra.mxu0 %v1416
        %v1809 = vpop.f32.mrf.mxu0
        %v1810 = vadd.f32 %v1515, %v1809
        %1811 = vmatmul.f32.gmra.mxu0 %v1418
        %v1812 = vpop.f32.mrf.mxu0
        %v1813 = vadd.f32 %v1515, %v1812
        %1814 = vmatmul.f32.gmra.mxu0 %v1420
        %v1815 = vpop.f32.mrf.mxu0
        %v1816 = vadd.f32 %v1515, %v1815
        %1817 = vmatmul.f32.gmra.mxu0 %v1422
        %v1818 = vpop.f32.mrf.mxu0
        %v1819 = vadd.f32 %v1515, %v1818
        %1820 = vmatmul.f32.gmra.mxu0 %v1424
        %v1821 = vpop.f32.mrf.mxu0
        %v1822 = vadd.f32 %v1515, %v1821
        %1823 = vmatmul.f32.gmra.mxu0 %v1426
        %v1824 = vpop.f32.mrf.mxu0
        %v1825 = vadd.f32 %v1515, %v1824
        %1826 = vmatmul.f32.gmra.mxu0 %v1428
        %v1827 = vpop.f32.mrf.mxu0
        %v1828 = vadd.f32 %v1515, %v1827
        %1829 = vmatmul.f32.gmra.mxu0 %v1430
        %v1830 = vpop.f32.mrf.mxu0
        %v1831 = vadd.f32 %v1515, %v1830
        %1832 = vmatmul.f32.gmra.mxu0 %v1432
        %v1833 = vpop.f32.mrf.mxu0
        %v1834 = vadd.f32 %v1515, %v1833
        %1835 = vmatmul.f32.gmra.mxu0 %v1434
        %v1836 = vpop.f32.mrf.mxu0
        %v1837 = vadd.f32 %v1515, %v1836
        %1838 = vmatmul.f32.gmra.mxu0 %v1436
        %v1839 = vpop.f32.mrf.mxu0
        %v1840 = vadd.f32 %v1515, %v1839
        %1841 = vmatmul.f32.gmra.mxu0 %v1438
        %v1842 = vpop.f32.mrf.mxu0
        %v1843 = vadd.f32 %v1515, %v1842
        %1844 = vmatmul.f32.gmra.mxu0 %v1440
        %v1845 = vpop.f32.mrf.mxu0
        %v1846 = vadd.f32 %v1515, %v1845
        %1847 = vmatmul.f32.gmra.mxu0 %v1442
        %v1848 = vpop.f32.mrf.mxu0
        %v1849 = vadd.f32 %v1515, %v1848
        %1850 = vmatmul.f32.gmra.mxu0 %v1444
        %v1851 = vpop.f32.mrf.mxu0
        %v1852 = vadd.f32 %v1515, %v1851
        %1853 = vmatmul.f32.gmra.mxu0 %v1446
        %v1854 = vpop.f32.mrf.mxu0
        %v1855 = vadd.f32 %v1515, %v1854
        %1856 = vdwg.mxu0
        %1857 = vmatpush.msra.mxu0 %v1511
        %1858 = vmatpush.msra.mxu0 %v1509
        %1859 = vmatpush.msra.mxu0 %v1507
        %1860 = vmatpush.msra.mxu0 %v1505
        %1861 = vmatpush.msra.mxu0 %v1503
        %1862 = vmatpush.msra.mxu0 %v1501
        %1863 = vmatpush.msra.mxu0 %v1499
        %1864 = vmatpush.msra.mxu0 %v1497
        %1865 = vmatpush.msra.mxu0 %v1495
        %1866 = vmatpush.msra.mxu0 %v1493
        %1867 = vmatpush.msra.mxu0 %v1491
        %1868 = vmatpush.msra.mxu0 %v1489
        %1869 = vmatpush.msra.mxu0 %v1487
        %1870 = vmatpush.msra.mxu0 %v1485
        %1871 = vmatpush.msra.mxu0 %v1483
        %1872 = vmatpush.msra.mxu0 %v1481
        %1873 = vmatmul.f32.gmra.mxu0 %v1385
        %v1874 = vpop.f32.mrf.mxu0
        %v1875 = vadd.f32 %v1762, %v1874
        %1876 = vmatmul.f32.gmra.mxu0 %v1387
        %v1877 = vpop.f32.mrf.mxu0
        %v1878 = vadd.f32 %v1765, %v1877
        %1879 = vmatmul.f32.gmra.mxu0 %v1389
        %v1880 = vpop.f32.mrf.mxu0
        %v1881 = vadd.f32 %v1768, %v1880
        %1882 = vmatmul.f32.gmra.mxu0 %v1391
        %v1883 = vpop.f32.mrf.mxu0
        %v1884 = vadd.f32 %v1771, %v1883
        %1885 = vmatmul.f32.gmra.mxu0 %v1393
        %v1886 = vpop.f32.mrf.mxu0
        %v1887 = vadd.f32 %v1774, %v1886
        %1888 = vmatmul.f32.gmra.mxu0 %v1395
        %v1889 = vpop.f32.mrf.mxu0
        %v1890 = vadd.f32 %v1777, %v1889
        %1891 = vmatmul.f32.gmra.mxu0 %v1397
        %v1892 = vpop.f32.mrf.mxu0
        %v1893 = vadd.f32 %v1780, %v1892
        %1894 = vmatmul.f32.gmra.mxu0 %v1399
        %v1895 = vpop.f32.mrf.mxu0
        %v1896 = vadd.f32 %v1783, %v1895
        %1897 = vmatmul.f32.gmra.mxu0 %v1401
        %v1898 = vpop.f32.mrf.mxu0
        %v1899 = vadd.f32 %v1786, %v1898
        %1900 = vmatmul.f32.gmra.mxu0 %v1403
        %v1901 = vpop.f32.mrf.mxu0
        %v1902 = vadd.f32 %v1789, %v1901
        %1903 = vmatmul.f32.gmra.mxu0 %v1405
        %v1904 = vpop.f32.mrf.mxu0
        %v1905 = vadd.f32 %v1792, %v1904
        %1906 = vmatmul.f32.gmra.mxu0 %v1407
        %v1907 = vpop.f32.mrf.mxu0
        %v1908 = vadd.f32 %v1795, %v1907
        %1909 = vmatmul.f32.gmra.mxu0 %v1409
        %v1910 = vpop.f32.mrf.mxu0
        %v1911 = vadd.f32 %v1798, %v1910
        %1912 = vmatmul.f32.gmra.mxu0 %v1411
        %v1913 = vpop.f32.mrf.mxu0
        %v1914 = vadd.f32 %v1801, %v1913
        %1915 = vmatmul.f32.gmra.mxu0 %v1413
        %v1916 = vpop.f32.mrf.mxu0
        %v1917 = vadd.f32 %v1804, %v1916
        %1918 = vmatmul.f32.gmra.mxu0 %v1415
        %v1919 = vpop.f32.mrf.mxu0
        %v1920 = vadd.f32 %v1807, %v1919
        %1921 = vmatmul.f32.gmra.mxu0 %v1417
        %v1922 = vpop.f32.mrf.mxu0
        %v1923 = vadd.f32 %v1810, %v1922
        %1924 = vmatmul.f32.gmra.mxu0 %v1419
        %v1925 = vpop.f32.mrf.mxu0
        %v1926 = vadd.f32 %v1813, %v1925
        %1927 = vmatmul.f32.gmra.mxu0 %v1421
        %v1928 = vpop.f32.mrf.mxu0
        %v1929 = vadd.f32 %v1816, %v1928
        %1930 = vmatmul.f32.gmra.mxu0 %v1423
        %v1931 = vpop.f32.mrf.mxu0
        %v1932 = vadd.f32 %v1819, %v1931
        %1933 = vmatmul.f32.gmra.mxu0 %v1425
        %v1934 = vpop.f32.mrf.mxu0
        %v1935 = vadd.f32 %v1822, %v1934
        %1936 = vmatmul.f32.gmra.mxu0 %v1427
        %v1937 = vpop.f32.mrf.mxu0
        %v1938 = vadd.f32 %v1825, %v1937
        %1939 = vmatmul.f32.gmra.mxu0 %v1429
        %v1940 = vpop.f32.mrf.mxu0
        %v1941 = vadd.f32 %v1828, %v1940
        %1942 = vmatmul.f32.gmra.mxu0 %v1431
        %v1943 = vpop.f32.mrf.mxu0
        %v1944 = vadd.f32 %v1831, %v1943
        %1945 = vmatmul.f32.gmra.mxu0 %v1433
        %v1946 = vpop.f32.mrf.mxu0
        %v1947 = vadd.f32 %v1834, %v1946
        %1948 = vmatmul.f32.gmra.mxu0 %v1435
        %v1949 = vpop.f32.mrf.mxu0
        %v1950 = vadd.f32 %v1837, %v1949
        %1951 = vmatmul.f32.gmra.mxu0 %v1437
        %v1952 = vpop.f32.mrf.mxu0
        %v1953 = vadd.f32 %v1840, %v1952
        %1954 = vmatmul.f32.gmra.mxu0 %v1439
        %v1955 = vpop.f32.mrf.mxu0
        %v1956 = vadd.f32 %v1843, %v1955
        %1957 = vmatmul.f32.gmra.mxu0 %v1441
        %v1958 = vpop.f32.mrf.mxu0
        %v1959 = vadd.f32 %v1846, %v1958
        %1960 = vmatmul.f32.gmra.mxu0 %v1443
        %v1961 = vpop.f32.mrf.mxu0
        %v1962 = vadd.f32 %v1849, %v1961
        %1963 = vmatmul.f32.gmra.mxu0 %v1445
        %v1964 = vpop.f32.mrf.mxu0
        %v1965 = vadd.f32 %v1852, %v1964
        %1966 = vmatmul.f32.gmra.mxu0 %v1447
        %v1967 = vpop.f32.mrf.mxu0
        %v1968 = vadd.f32 %v1855, %v1967
        %1969 = vdwg.mxu0
        %v1970 = vtanh.pop %v1649
        %v1971 = vtanh.pop %v1875
        %v1972 = vtanh.pop %v1652
        %v1973 = vtanh.pop %v1878
        %v1974 = vtanh.pop %v1655
        %v1975 = vtanh.pop %v1881
        %v1976 = vtanh.pop %v1658
        %v1977 = vtanh.pop %v1884
        %v1978 = vtanh.pop %v1661
        %v1979 = vtanh.pop %v1887
        %v1980 = vtanh.pop %v1664
        %v1981 = vtanh.pop %v1890
        %v1982 = vtanh.pop %v1667
        %v1983 = vtanh.pop %v1893
        %v1984 = vtanh.pop %v1670
        %v1985 = vtanh.pop %v1896
        %v1986 = vtanh.pop %v1673
        %v1987 = vtanh.pop %v1899
        %v1988 = vtanh.pop %v1676
        %v1989 = vtanh.pop %v1902
        %v1990 = vtanh.pop %v1679
        %v1991 = vtanh.pop %v1905
        %v1992 = vtanh.pop %v1682
        %v1993 = vtanh.pop %v1908
        %v1994 = vtanh.pop %v1685
        %v1995 = vtanh.pop %v1911
        %v1996 = vtanh.pop %v1688
        %v1997 = vtanh.pop %v1914
        %v1998 = vtanh.pop %v1691
        %v1999 = vtanh.pop %v1917
        %v2000 = vtanh.pop %v1694
        %v2001 = vtanh.pop %v1920
        %v2002 = vtanh.pop %v1697
        %v2003 = vtanh.pop %v1923
        %v2004 = vtanh.pop %v1700
        %v2005 = vtanh.pop %v1926
        %v2006 = vtanh.pop %v1703
        %v2007 = vtanh.pop %v1929
        %v2008 = vtanh.pop %v1706
        %v2009 = vtanh.pop %v1932
        %v2010 = vtanh.pop %v1709
        %v2011 = vtanh.pop %v1935
        %v2012 = vtanh.pop %v1712
        %v2013 = vtanh.pop %v1938
        %v2014 = vtanh.pop %v1715
        %v2015 = vtanh.pop %v1941
        %v2016 = vtanh.pop %v1718
        %v2017 = vtanh.pop %v1944
        %v2018 = vtanh.pop %v1721
        %v2019 = vtanh.pop %v1947
        %v2020 = vtanh.pop %v1724
        %v2021 = vtanh.pop %v1950
        %v2022 = vtanh.pop %v1727
        %v2023 = vtanh.pop %v1953
        %v2024 = vtanh.pop %v1730
        %v2025 = vtanh.pop %v1956
        %v2026 = vtanh.pop %v1733
        %v2027 = vtanh.pop %v1959
        %v2028 = vtanh.pop %v1736
        %v2029 = vtanh.pop %v1962
        %v2030 = vtanh.pop %v1739
        %v2031 = vtanh.pop %v1965
        %v2032 = vtanh.pop %v1742
        %v2033 = vtanh.pop %v1968
        %v2034 = vld [vmem:[#allocation3] sm:$0xff]
        %v2035 = vld [vmem:[#allocation3 + $0x8] sm:$0xff]
        %v2036 = vld [vmem:[#allocation3 + $0x10] sm:$0xff]
        %v2037 = vld [vmem:[#allocation3 + $0x18] sm:$0xff]
        %v2038 = vld [vmem:[#allocation3 + $0x20] sm:$0xff]
        %v2039 = vld [vmem:[#allocation3 + $0x28] sm:$0xff]
        %v2040 = vld [vmem:[#allocation3 + $0x30] sm:$0xff]
        %v2041 = vld [vmem:[#allocation3 + $0x38] sm:$0xff]
        %v2042 = vld [vmem:[#allocation3 + $0x40] sm:$0xff]
        %v2043 = vld [vmem:[#allocation3 + $0x48] sm:$0xff]
        %v2044 = vld [vmem:[#allocation3 + $0x50] sm:$0xff]
        %v2045 = vld [vmem:[#allocation3 + $0x58] sm:$0xff]
        %v2046 = vld [vmem:[#allocation3 + $0x60] sm:$0xff]
        %v2047 = vld [vmem:[#allocation3 + $0x68] sm:$0xff]
        %v2048 = vld [vmem:[#allocation3 + $0x70] sm:$0xff]
        %v2049 = vld [vmem:[#allocation3 + $0x78] sm:$0xff]
        %v2050 = vld [vmem:[#allocation3 + $0x80] sm:$0xff]
        %v2051 = vld [vmem:[#allocation3 + $0x88] sm:$0xff]
        %v2052 = vld [vmem:[#allocation3 + $0x90] sm:$0xff]
        %v2053 = vld [vmem:[#allocation3 + $0x98] sm:$0xff]
        %v2054 = vld [vmem:[#allocation3 + $0xa0] sm:$0xff]
        %v2055 = vld [vmem:[#allocation3 + $0xa8] sm:$0xff]
        %v2056 = vld [vmem:[#allocation3 + $0xb0] sm:$0xff]
        %v2057 = vld [vmem:[#allocation3 + $0xb8] sm:$0xff]
        %v2058 = vld [vmem:[#allocation3 + $0xc0] sm:$0xff]
        %v2059 = vld [vmem:[#allocation3 + $0xc8] sm:$0xff]
        %v2060 = vld [vmem:[#allocation3 + $0xd0] sm:$0xff]
        %v2061 = vld [vmem:[#allocation3 + $0xd8] sm:$0xff]
        %v2062 = vld [vmem:[#allocation3 + $0xe0] sm:$0xff]
        %v2063 = vld [vmem:[#allocation3 + $0xe8] sm:$0xff]
        %v2064 = vld [vmem:[#allocation3 + $0xf0] sm:$0xff]
        %v2065 = vld [vmem:[#allocation3 + $0xf8] sm:$0xff]
        %v2066 = vld [vmem:[#allocation3 + $0x100] sm:$0xff]
        %v2067 = vld [vmem:[#allocation3 + $0x108] sm:$0xff]
        %v2068 = vld [vmem:[#allocation3 + $0x110] sm:$0xff]
        %v2069 = vld [vmem:[#allocation3 + $0x118] sm:$0xff]
        %v2070 = vld [vmem:[#allocation3 + $0x120] sm:$0xff]
        %v2071 = vld [vmem:[#allocation3 + $0x128] sm:$0xff]
        %v2072 = vld [vmem:[#allocation3 + $0x130] sm:$0xff]
        %v2073 = vld [vmem:[#allocation3 + $0x138] sm:$0xff]
        %v2074 = vld [vmem:[#allocation3 + $0x140] sm:$0xff]
        %v2075 = vld [vmem:[#allocation3 + $0x148] sm:$0xff]
        %v2076 = vld [vmem:[#allocation3 + $0x150] sm:$0xff]
        %v2077 = vld [vmem:[#allocation3 + $0x158] sm:$0xff]
        %v2078 = vld [vmem:[#allocation3 + $0x160] sm:$0xff]
        %v2079 = vld [vmem:[#allocation3 + $0x168] sm:$0xff]
        %v2080 = vld [vmem:[#allocation3 + $0x170] sm:$0xff]
        %v2081 = vld [vmem:[#allocation3 + $0x178] sm:$0xff]
        %v2082 = vld [vmem:[#allocation3 + $0x180] sm:$0xff]
        %v2083 = vld [vmem:[#allocation3 + $0x188] sm:$0xff]
        %v2084 = vld [vmem:[#allocation3 + $0x190] sm:$0xff]
        %v2085 = vld [vmem:[#allocation3 + $0x198] sm:$0xff]
        %v2086 = vld [vmem:[#allocation3 + $0x1a0] sm:$0xff]
        %v2087 = vld [vmem:[#allocation3 + $0x1a8] sm:$0xff]
        %v2088 = vld [vmem:[#allocation3 + $0x1b0] sm:$0xff]
        %v2089 = vld [vmem:[#allocation3 + $0x1b8] sm:$0xff]
        %v2090 = vld [vmem:[#allocation3 + $0x1c0] sm:$0xff]
        %v2091 = vld [vmem:[#allocation3 + $0x1c8] sm:$0xff]
        %v2092 = vld [vmem:[#allocation3 + $0x1d0] sm:$0xff]
        %v2093 = vld [vmem:[#allocation3 + $0x1d8] sm:$0xff]
        %v2094 = vld [vmem:[#allocation3 + $0x1e0] sm:$0xff]
        %v2095 = vld [vmem:[#allocation3 + $0x1e8] sm:$0xff]
        %v2096 = vld [vmem:[#allocation3 + $0x1f0] sm:$0xff]
        %v2097 = vld [vmem:[#allocation3 + $0x1f8] sm:$0xff]
        %v2098 = vld [vmem:[%s8] sm:$0x3]
        %v2100 = vperm.slane %v2098, 0
        %v2101 = vperm.slane %v2098, 1
        %2104 = vmatpush.msra.mxu0 %v2064
        %2105 = vmatpush.msra.mxu0 %v2062
        %2106 = vmatpush.msra.mxu0 %v2060
        %2107 = vmatpush.msra.mxu0 %v2058
        %2108 = vmatpush.msra.mxu0 %v2056
        %2109 = vmatpush.msra.mxu0 %v2054
        %2110 = vmatpush.msra.mxu0 %v2052
        %2111 = vmatpush.msra.mxu0 %v2050
        %2112 = vmatpush.msra.mxu0 %v2048
        %2113 = vmatpush.msra.mxu0 %v2046
        %2114 = vmatpush.msra.mxu0 %v2044
        %2115 = vmatpush.msra.mxu0 %v2042
        %2116 = vmatpush.msra.mxu0 %v2040
        %2117 = vmatpush.msra.mxu0 %v2038
        %2118 = vmatpush.msra.mxu0 %v2036
        %2119 = vmatpush.msra.mxu0 %v2034
        %2120 = vmatmul.f32.gmra.mxu0 %v1970
        %v2121 = vpop.f32.mrf.mxu0
        %v2122 = vadd.f32 %v2100, %v2121
        %2123 = vmatmul.f32.gmra.mxu0 %v1972
        %v2124 = vpop.f32.mrf.mxu0
        %v2125 = vadd.f32 %v2100, %v2124
        %2126 = vmatmul.f32.gmra.mxu0 %v1974
        %v2127 = vpop.f32.mrf.mxu0
        %v2128 = vadd.f32 %v2100, %v2127
        %2129 = vmatmul.f32.gmra.mxu0 %v1976
        %v2130 = vpop.f32.mrf.mxu0
        %v2131 = vadd.f32 %v2100, %v2130
        %2132 = vmatmul.f32.gmra.mxu0 %v1978
        %v2133 = vpop.f32.mrf.mxu0
        %v2134 = vadd.f32 %v2100, %v2133
        %2135 = vmatmul.f32.gmra.mxu0 %v1980
        %v2136 = vpop.f32.mrf.mxu0
        %v2137 = vadd.f32 %v2100, %v2136
        %2138 = vmatmul.f32.gmra.mxu0 %v1982
        %v2139 = vpop.f32.mrf.mxu0
        %v2140 = vadd.f32 %v2100, %v2139
        %2141 = vmatmul.f32.gmra.mxu0 %v1984
        %v2142 = vpop.f32.mrf.mxu0
        %v2143 = vadd.f32 %v2100, %v2142
        %2144 = vmatmul.f32.gmra.mxu0 %v1986
        %v2145 = vpop.f32.mrf.mxu0
        %v2146 = vadd.f32 %v2100, %v2145
        %2147 = vmatmul.f32.gmra.mxu0 %v1988
        %v2148 = vpop.f32.mrf.mxu0
        %v2149 = vadd.f32 %v2100, %v2148
        %2150 = vmatmul.f32.gmra.mxu0 %v1990
        %v2151 = vpop.f32.mrf.mxu0
        %v2152 = vadd.f32 %v2100, %v2151
        %2153 = vmatmul.f32.gmra.mxu0 %v1992
        %v2154 = vpop.f32.mrf.mxu0
        %v2155 = vadd.f32 %v2100, %v2154
        %2156 = vmatmul.f32.gmra.mxu0 %v1994
        %v2157 = vpop.f32.mrf.mxu0
        %v2158 = vadd.f32 %v2100, %v2157
        %2159 = vmatmul.f32.gmra.mxu0 %v1996
        %v2160 = vpop.f32.mrf.mxu0
        %v2161 = vadd.f32 %v2100, %v2160
        %2162 = vmatmul.f32.gmra.mxu0 %v1998
        %v2163 = vpop.f32.mrf.mxu0
        %v2164 = vadd.f32 %v2100, %v2163
        %2165 = vmatmul.f32.gmra.mxu0 %v2000
        %v2166 = vpop.f32.mrf.mxu0
        %v2167 = vadd.f32 %v2100, %v2166
        %2168 = vmatmul.f32.gmra.mxu0 %v2002
        %v2169 = vpop.f32.mrf.mxu0
        %v2170 = vadd.f32 %v2100, %v2169
        %2171 = vmatmul.f32.gmra.mxu0 %v2004
        %v2172 = vpop.f32.mrf.mxu0
        %v2173 = vadd.f32 %v2100, %v2172
        %2174 = vmatmul.f32.gmra.mxu0 %v2006
        %v2175 = vpop.f32.mrf.mxu0
        %v2176 = vadd.f32 %v2100, %v2175
        %2177 = vmatmul.f32.gmra.mxu0 %v2008
        %v2178 = vpop.f32.mrf.mxu0
        %v2179 = vadd.f32 %v2100, %v2178
        %2180 = vmatmul.f32.gmra.mxu0 %v2010
        %v2181 = vpop.f32.mrf.mxu0
        %v2182 = vadd.f32 %v2100, %v2181
        %2183 = vmatmul.f32.gmra.mxu0 %v2012
        %v2184 = vpop.f32.mrf.mxu0
        %v2185 = vadd.f32 %v2100, %v2184
        %2186 = vmatmul.f32.gmra.mxu0 %v2014
        %v2187 = vpop.f32.mrf.mxu0
        %v2188 = vadd.f32 %v2100, %v2187
        %2189 = vmatmul.f32.gmra.mxu0 %v2016
        %v2190 = vpop.f32.mrf.mxu0
        %v2191 = vadd.f32 %v2100, %v2190
        %2192 = vmatmul.f32.gmra.mxu0 %v2018
        %v2193 = vpop.f32.mrf.mxu0
        %v2194 = vadd.f32 %v2100, %v2193
        %2195 = vmatmul.f32.gmra.mxu0 %v2020
        %v2196 = vpop.f32.mrf.mxu0
        %v2197 = vadd.f32 %v2100, %v2196
        %2198 = vmatmul.f32.gmra.mxu0 %v2022
        %v2199 = vpop.f32.mrf.mxu0
        %v2200 = vadd.f32 %v2100, %v2199
        %2201 = vmatmul.f32.gmra.mxu0 %v2024
        %v2202 = vpop.f32.mrf.mxu0
        %v2203 = vadd.f32 %v2100, %v2202
        %2204 = vmatmul.f32.gmra.mxu0 %v2026
        %v2205 = vpop.f32.mrf.mxu0
        %v2206 = vadd.f32 %v2100, %v2205
        %2207 = vmatmul.f32.gmra.mxu0 %v2028
        %v2208 = vpop.f32.mrf.mxu0
        %v2209 = vadd.f32 %v2100, %v2208
        %2210 = vmatmul.f32.gmra.mxu0 %v2030
        %v2211 = vpop.f32.mrf.mxu0
        %v2212 = vadd.f32 %v2100, %v2211
        %2213 = vmatmul.f32.gmra.mxu0 %v2032
        %v2214 = vpop.f32.mrf.mxu0
        %v2215 = vadd.f32 %v2100, %v2214
        %2216 = vdwg.mxu0
        %2217 = vmatpush.msra.mxu0 %v2096
        %2218 = vmatpush.msra.mxu0 %v2094
        %2219 = vmatpush.msra.mxu0 %v2092
        %2220 = vmatpush.msra.mxu0 %v2090
        %2221 = vmatpush.msra.mxu0 %v2088
        %2222 = vmatpush.msra.mxu0 %v2086
        %2223 = vmatpush.msra.mxu0 %v2084
        %2224 = vmatpush.msra.mxu0 %v2082
        %2225 = vmatpush.msra.mxu0 %v2080
        %2226 = vmatpush.msra.mxu0 %v2078
        %2227 = vmatpush.msra.mxu0 %v2076
        %2228 = vmatpush.msra.mxu0 %v2074
        %2229 = vmatpush.msra.mxu0 %v2072
        %2230 = vmatpush.msra.mxu0 %v2070
        %2231 = vmatpush.msra.mxu0 %v2068
        %2232 = vmatpush.msra.mxu0 %v2066
        %2233 = vmatmul.f32.gmra.mxu0 %v1971
        %v2234 = vpop.f32.mrf.mxu0
        %v2235 = vadd.f32 %v2122, %v2234
        %2236 = vmatmul.f32.gmra.mxu0 %v1973
        %v2237 = vpop.f32.mrf.mxu0
        %v2238 = vadd.f32 %v2125, %v2237
        %2239 = vmatmul.f32.gmra.mxu0 %v1975
        %v2240 = vpop.f32.mrf.mxu0
        %v2241 = vadd.f32 %v2128, %v2240
        %2242 = vmatmul.f32.gmra.mxu0 %v1977
        %v2243 = vpop.f32.mrf.mxu0
        %v2244 = vadd.f32 %v2131, %v2243
        %2245 = vmatmul.f32.gmra.mxu0 %v1979
        %v2246 = vpop.f32.mrf.mxu0
        %v2247 = vadd.f32 %v2134, %v2246
        %2248 = vmatmul.f32.gmra.mxu0 %v1981
        %v2249 = vpop.f32.mrf.mxu0
        %v2250 = vadd.f32 %v2137, %v2249
        %2251 = vmatmul.f32.gmra.mxu0 %v1983
        %v2252 = vpop.f32.mrf.mxu0
        %v2253 = vadd.f32 %v2140, %v2252
        %2254 = vmatmul.f32.gmra.mxu0 %v1985
        %v2255 = vpop.f32.mrf.mxu0
        %v2256 = vadd.f32 %v2143, %v2255
        %2257 = vmatmul.f32.gmra.mxu0 %v1987
        %v2258 = vpop.f32.mrf.mxu0
        %v2259 = vadd.f32 %v2146, %v2258
        %2260 = vmatmul.f32.gmra.mxu0 %v1989
        %v2261 = vpop.f32.mrf.mxu0
        %v2262 = vadd.f32 %v2149, %v2261
        %2263 = vmatmul.f32.gmra.mxu0 %v1991
        %v2264 = vpop.f32.mrf.mxu0
        %v2265 = vadd.f32 %v2152, %v2264
        %2266 = vmatmul.f32.gmra.mxu0 %v1993
        %v2267 = vpop.f32.mrf.mxu0
        %v2268 = vadd.f32 %v2155, %v2267
        %2269 = vmatmul.f32.gmra.mxu0 %v1995
        %v2270 = vpop.f32.mrf.mxu0
        %v2271 = vadd.f32 %v2158, %v2270
        %2272 = vmatmul.f32.gmra.mxu0 %v1997
        %v2273 = vpop.f32.mrf.mxu0
        %v2274 = vadd.f32 %v2161, %v2273
        %2275 = vmatmul.f32.gmra.mxu0 %v1999
        %v2276 = vpop.f32.mrf.mxu0
        %v2277 = vadd.f32 %v2164, %v2276
        %2278 = vmatmul.f32.gmra.mxu0 %v2001
        %v2279 = vpop.f32.mrf.mxu0
        %v2280 = vadd.f32 %v2167, %v2279
        %2281 = vmatmul.f32.gmra.mxu0 %v2003
        %v2282 = vpop.f32.mrf.mxu0
        %v2283 = vadd.f32 %v2170, %v2282
        %2284 = vmatmul.f32.gmra.mxu0 %v2005
        %v2285 = vpop.f32.mrf.mxu0
        %v2286 = vadd.f32 %v2173, %v2285
        %2287 = vmatmul.f32.gmra.mxu0 %v2007
        %v2288 = vpop.f32.mrf.mxu0
        %v2289 = vadd.f32 %v2176, %v2288
        %2290 = vmatmul.f32.gmra.mxu0 %v2009
        %v2291 = vpop.f32.mrf.mxu0
        %v2292 = vadd.f32 %v2179, %v2291
        %2293 = vmatmul.f32.gmra.mxu0 %v2011
        %v2294 = vpop.f32.mrf.mxu0
        %v2295 = vadd.f32 %v2182, %v2294
        %2296 = vmatmul.f32.gmra.mxu0 %v2013
        %v2297 = vpop.f32.mrf.mxu0
        %v2298 = vadd.f32 %v2185, %v2297
        %2299 = vmatmul.f32.gmra.mxu0 %v2015
        %v2300 = vpop.f32.mrf.mxu0
        %v2301 = vadd.f32 %v2188, %v2300
        %2302 = vmatmul.f32.gmra.mxu0 %v2017
        %v2303 = vpop.f32.mrf.mxu0
        %v2304 = vadd.f32 %v2191, %v2303
        %2305 = vmatmul.f32.gmra.mxu0 %v2019
        %v2306 = vpop.f32.mrf.mxu0
        %v2307 = vadd.f32 %v2194, %v2306
        %2308 = vmatmul.f32.gmra.mxu0 %v2021
        %v2309 = vpop.f32.mrf.mxu0
        %v2310 = vadd.f32 %v2197, %v2309
        %2311 = vmatmul.f32.gmra.mxu0 %v2023
        %v2312 = vpop.f32.mrf.mxu0
        %v2313 = vadd.f32 %v2200, %v2312
        %2314 = vmatmul.f32.gmra.mxu0 %v2025
        %v2315 = vpop.f32.mrf.mxu0
        %v2316 = vadd.f32 %v2203, %v2315
        %2317 = vmatmul.f32.gmra.mxu0 %v2027
        %v2318 = vpop.f32.mrf.mxu0
        %v2319 = vadd.f32 %v2206, %v2318
        %2320 = vmatmul.f32.gmra.mxu0 %v2029
        %v2321 = vpop.f32.mrf.mxu0
        %v2322 = vadd.f32 %v2209, %v2321
        %2323 = vmatmul.f32.gmra.mxu0 %v2031
        %v2324 = vpop.f32.mrf.mxu0
        %v2325 = vadd.f32 %v2212, %v2324
        %2326 = vmatmul.f32.gmra.mxu0 %v2033
        %v2327 = vpop.f32.mrf.mxu0
        %v2328 = vadd.f32 %v2215, %v2327
        %2329 = vdwg.mxu0
        %2330 = vmatpush.msra.mxu0 %v2065
        %2331 = vmatpush.msra.mxu0 %v2063
        %2332 = vmatpush.msra.mxu0 %v2061
        %2333 = vmatpush.msra.mxu0 %v2059
        %2334 = vmatpush.msra.mxu0 %v2057
        %2335 = vmatpush.msra.mxu0 %v2055
        %2336 = vmatpush.msra.mxu0 %v2053
        %2337 = vmatpush.msra.mxu0 %v2051
        %2338 = vmatpush.msra.mxu0 %v2049
        %2339 = vmatpush.msra.mxu0 %v2047
        %2340 = vmatpush.msra.mxu0 %v2045
        %2341 = vmatpush.msra.mxu0 %v2043
        %2342 = vmatpush.msra.mxu0 %v2041
        %2343 = vmatpush.msra.mxu0 %v2039
        %2344 = vmatpush.msra.mxu0 %v2037
        %2345 = vmatpush.msra.mxu0 %v2035
        %2346 = vmatmul.f32.gmra.mxu0 %v1970
        %v2347 = vpop.f32.mrf.mxu0
        %v2348 = vadd.f32 %v2101, %v2347
        %2349 = vmatmul.f32.gmra.mxu0 %v1972
        %v2350 = vpop.f32.mrf.mxu0
        %v2351 = vadd.f32 %v2101, %v2350
        %2352 = vmatmul.f32.gmra.mxu0 %v1974
        %v2353 = vpop.f32.mrf.mxu0
        %v2354 = vadd.f32 %v2101, %v2353
        %2355 = vmatmul.f32.gmra.mxu0 %v1976
        %v2356 = vpop.f32.mrf.mxu0
        %v2357 = vadd.f32 %v2101, %v2356
        %2358 = vmatmul.f32.gmra.mxu0 %v1978
        %v2359 = vpop.f32.mrf.mxu0
        %v2360 = vadd.f32 %v2101, %v2359
        %2361 = vmatmul.f32.gmra.mxu0 %v1980
        %v2362 = vpop.f32.mrf.mxu0
        %v2363 = vadd.f32 %v2101, %v2362
        %2364 = vmatmul.f32.gmra.mxu0 %v1982
        %v2365 = vpop.f32.mrf.mxu0
        %v2366 = vadd.f32 %v2101, %v2365
        %2367 = vmatmul.f32.gmra.mxu0 %v1984
        %v2368 = vpop.f32.mrf.mxu0
        %v2369 = vadd.f32 %v2101, %v2368
        %2370 = vmatmul.f32.gmra.mxu0 %v1986
        %v2371 = vpop.f32.mrf.mxu0
        %v2372 = vadd.f32 %v2101, %v2371
        %2373 = vmatmul.f32.gmra.mxu0 %v1988
        %v2374 = vpop.f32.mrf.mxu0
        %v2375 = vadd.f32 %v2101, %v2374
        %2376 = vmatmul.f32.gmra.mxu0 %v1990
        %v2377 = vpop.f32.mrf.mxu0
        %v2378 = vadd.f32 %v2101, %v2377
        %2379 = vmatmul.f32.gmra.mxu0 %v1992
        %v2380 = vpop.f32.mrf.mxu0
        %v2381 = vadd.f32 %v2101, %v2380
        %2382 = vmatmul.f32.gmra.mxu0 %v1994
        %v2383 = vpop.f32.mrf.mxu0
        %v2384 = vadd.f32 %v2101, %v2383
        %2385 = vmatmul.f32.gmra.mxu0 %v1996
        %v2386 = vpop.f32.mrf.mxu0
        %v2387 = vadd.f32 %v2101, %v2386
        %2388 = vmatmul.f32.gmra.mxu0 %v1998
        %v2389 = vpop.f32.mrf.mxu0
        %v2390 = vadd.f32 %v2101, %v2389
        %2391 = vmatmul.f32.gmra.mxu0 %v2000
        %v2392 = vpop.f32.mrf.mxu0
        %v2393 = vadd.f32 %v2101, %v2392
        %2394 = vmatmul.f32.gmra.mxu0 %v2002
        %v2395 = vpop.f32.mrf.mxu0
        %v2396 = vadd.f32 %v2101, %v2395
        %2397 = vmatmul.f32.gmra.mxu0 %v2004
        %v2398 = vpop.f32.mrf.mxu0
        %v2399 = vadd.f32 %v2101, %v2398
        %2400 = vmatmul.f32.gmra.mxu0 %v2006
        %v2401 = vpop.f32.mrf.mxu0
        %v2402 = vadd.f32 %v2101, %v2401
        %2403 = vmatmul.f32.gmra.mxu0 %v2008
        %v2404 = vpop.f32.mrf.mxu0
        %v2405 = vadd.f32 %v2101, %v2404
        %2406 = vmatmul.f32.gmra.mxu0 %v2010
        %v2407 = vpop.f32.mrf.mxu0
        %v2408 = vadd.f32 %v2101, %v2407
        %2409 = vmatmul.f32.gmra.mxu0 %v2012
        %v2410 = vpop.f32.mrf.mxu0
        %v2411 = vadd.f32 %v2101, %v2410
        %2412 = vmatmul.f32.gmra.mxu0 %v2014
        %v2413 = vpop.f32.mrf.mxu0
        %v2414 = vadd.f32 %v2101, %v2413
        %2415 = vmatmul.f32.gmra.mxu0 %v2016
        %v2416 = vpop.f32.mrf.mxu0
        %v2417 = vadd.f32 %v2101, %v2416
        %2418 = vmatmul.f32.gmra.mxu0 %v2018
        %v2419 = vpop.f32.mrf.mxu0
        %v2420 = vadd.f32 %v2101, %v2419
        %2421 = vmatmul.f32.gmra.mxu0 %v2020
        %v2422 = vpop.f32.mrf.mxu0
        %v2423 = vadd.f32 %v2101, %v2422
        %2424 = vmatmul.f32.gmra.mxu0 %v2022
        %v2425 = vpop.f32.mrf.mxu0
        %v2426 = vadd.f32 %v2101, %v2425
        %2427 = vmatmul.f32.gmra.mxu0 %v2024
        %v2428 = vpop.f32.mrf.mxu0
        %v2429 = vadd.f32 %v2101, %v2428
        %2430 = vmatmul.f32.gmra.mxu0 %v2026
        %v2431 = vpop.f32.mrf.mxu0
        %v2432 = vadd.f32 %v2101, %v2431
        %2433 = vmatmul.f32.gmra.mxu0 %v2028
        %v2434 = vpop.f32.mrf.mxu0
        %v2435 = vadd.f32 %v2101, %v2434
        %2436 = vmatmul.f32.gmra.mxu0 %v2030
        %v2437 = vpop.f32.mrf.mxu0
        %v2438 = vadd.f32 %v2101, %v2437
        %2439 = vmatmul.f32.gmra.mxu0 %v2032
        %v2440 = vpop.f32.mrf.mxu0
        %v2441 = vadd.f32 %v2101, %v2440
        %2442 = vdwg.mxu0
        %2443 = vmatpush.msra.mxu0 %v2097
        %2444 = vmatpush.msra.mxu0 %v2095
        %2445 = vmatpush.msra.mxu0 %v2093
        %2446 = vmatpush.msra.mxu0 %v2091
        %2447 = vmatpush.msra.mxu0 %v2089
        %2448 = vmatpush.msra.mxu0 %v2087
        %2449 = vmatpush.msra.mxu0 %v2085
        %2450 = vmatpush.msra.mxu0 %v2083
        %2451 = vmatpush.msra.mxu0 %v2081
        %2452 = vmatpush.msra.mxu0 %v2079
        %2453 = vmatpush.msra.mxu0 %v2077
        %2454 = vmatpush.msra.mxu0 %v2075
        %2455 = vmatpush.msra.mxu0 %v2073
        %2456 = vmatpush.msra.mxu0 %v2071
        %2457 = vmatpush.msra.mxu0 %v2069
        %2458 = vmatpush.msra.mxu0 %v2067
        %2459 = vmatmul.f32.gmra.mxu0 %v1971
        %v2460 = vpop.f32.mrf.mxu0
        %v2461 = vadd.f32 %v2348, %v2460
        %2462 = vmatmul.f32.gmra.mxu0 %v1973
        %v2463 = vpop.f32.mrf.mxu0
        %v2464 = vadd.f32 %v2351, %v2463
        %2465 = vmatmul.f32.gmra.mxu0 %v1975
        %v2466 = vpop.f32.mrf.mxu0
        %v2467 = vadd.f32 %v2354, %v2466
        %2468 = vmatmul.f32.gmra.mxu0 %v1977
        %v2469 = vpop.f32.mrf.mxu0
        %v2470 = vadd.f32 %v2357, %v2469
        %2471 = vmatmul.f32.gmra.mxu0 %v1979
        %v2472 = vpop.f32.mrf.mxu0
        %v2473 = vadd.f32 %v2360, %v2472
        %2474 = vmatmul.f32.gmra.mxu0 %v1981
        %v2475 = vpop.f32.mrf.mxu0
        %v2476 = vadd.f32 %v2363, %v2475
        %2477 = vmatmul.f32.gmra.mxu0 %v1983
        %v2478 = vpop.f32.mrf.mxu0
        %v2479 = vadd.f32 %v2366, %v2478
        %2480 = vmatmul.f32.gmra.mxu0 %v1985
        %v2481 = vpop.f32.mrf.mxu0
        %v2482 = vadd.f32 %v2369, %v2481
        %2483 = vmatmul.f32.gmra.mxu0 %v1987
        %v2484 = vpop.f32.mrf.mxu0
        %v2485 = vadd.f32 %v2372, %v2484
        %2486 = vmatmul.f32.gmra.mxu0 %v1989
        %v2487 = vpop.f32.mrf.mxu0
        %v2488 = vadd.f32 %v2375, %v2487
        %2489 = vmatmul.f32.gmra.mxu0 %v1991
        %v2490 = vpop.f32.mrf.mxu0
        %v2491 = vadd.f32 %v2378, %v2490
        %2492 = vmatmul.f32.gmra.mxu0 %v1993
        %v2493 = vpop.f32.mrf.mxu0
        %v2494 = vadd.f32 %v2381, %v2493
        %2495 = vmatmul.f32.gmra.mxu0 %v1995
        %v2496 = vpop.f32.mrf.mxu0
        %v2497 = vadd.f32 %v2384, %v2496
        %2498 = vmatmul.f32.gmra.mxu0 %v1997
        %v2499 = vpop.f32.mrf.mxu0
        %v2500 = vadd.f32 %v2387, %v2499
        %2501 = vmatmul.f32.gmra.mxu0 %v1999
        %v2502 = vpop.f32.mrf.mxu0
        %v2503 = vadd.f32 %v2390, %v2502
        %2504 = vmatmul.f32.gmra.mxu0 %v2001
        %v2505 = vpop.f32.mrf.mxu0
        %v2506 = vadd.f32 %v2393, %v2505
        %2507 = vmatmul.f32.gmra.mxu0 %v2003
        %v2508 = vpop.f32.mrf.mxu0
        %v2509 = vadd.f32 %v2396, %v2508
        %2510 = vmatmul.f32.gmra.mxu0 %v2005
        %v2511 = vpop.f32.mrf.mxu0
        %v2512 = vadd.f32 %v2399, %v2511
        %2513 = vmatmul.f32.gmra.mxu0 %v2007
        %v2514 = vpop.f32.mrf.mxu0
        %v2515 = vadd.f32 %v2402, %v2514
        %2516 = vmatmul.f32.gmra.mxu0 %v2009
        %v2517 = vpop.f32.mrf.mxu0
        %v2518 = vadd.f32 %v2405, %v2517
        %2519 = vmatmul.f32.gmra.mxu0 %v2011
        %v2520 = vpop.f32.mrf.mxu0
        %v2521 = vadd.f32 %v2408, %v2520
        %2522 = vmatmul.f32.gmra.mxu0 %v2013
        %v2523 = vpop.f32.mrf.mxu0
        %v2524 = vadd.f32 %v2411, %v2523
        %2525 = vmatmul.f32.gmra.mxu0 %v2015
        %v2526 = vpop.f32.mrf.mxu0
        %v2527 = vadd.f32 %v2414, %v2526
        %2528 = vmatmul.f32.gmra.mxu0 %v2017
        %v2529 = vpop.f32.mrf.mxu0
        %v2530 = vadd.f32 %v2417, %v2529
        %2531 = vmatmul.f32.gmra.mxu0 %v2019
        %v2532 = vpop.f32.mrf.mxu0
        %v2533 = vadd.f32 %v2420, %v2532
        %2534 = vmatmul.f32.gmra.mxu0 %v2021
        %v2535 = vpop.f32.mrf.mxu0
        %v2536 = vadd.f32 %v2423, %v2535
        %2537 = vmatmul.f32.gmra.mxu0 %v2023
        %v2538 = vpop.f32.mrf.mxu0
        %v2539 = vadd.f32 %v2426, %v2538
        %2540 = vmatmul.f32.gmra.mxu0 %v2025
        %v2541 = vpop.f32.mrf.mxu0
        %v2542 = vadd.f32 %v2429, %v2541
        %2543 = vmatmul.f32.gmra.mxu0 %v2027
        %v2544 = vpop.f32.mrf.mxu0
        %v2545 = vadd.f32 %v2432, %v2544
        %2546 = vmatmul.f32.gmra.mxu0 %v2029
        %v2547 = vpop.f32.mrf.mxu0
        %v2548 = vadd.f32 %v2435, %v2547
        %2549 = vmatmul.f32.gmra.mxu0 %v2031
        %v2550 = vpop.f32.mrf.mxu0
        %v2551 = vadd.f32 %v2438, %v2550
        %2552 = vmatmul.f32.gmra.mxu0 %v2033
        %v2553 = vpop.f32.mrf.mxu0
        %v2554 = vadd.f32 %v2441, %v2553
        %2555 = vdwg.mxu0
        %v2556 = vtanh.pop %v2235
        %v2557 = vtanh.pop %v2461
        %v2558 = vtanh.pop %v2238
        %v2559 = vtanh.pop %v2464
        %v2560 = vtanh.pop %v2241
        %v2561 = vtanh.pop %v2467
        %v2562 = vtanh.pop %v2244
        %v2563 = vtanh.pop %v2470
        %v2564 = vtanh.pop %v2247
        %v2565 = vtanh.pop %v2473
        %v2566 = vtanh.pop %v2250
        %v2567 = vtanh.pop %v2476
        %v2568 = vtanh.pop %v2253
        %v2569 = vtanh.pop %v2479
        %v2570 = vtanh.pop %v2256
        %v2571 = vtanh.pop %v2482
        %v2572 = vtanh.pop %v2259
        %v2573 = vtanh.pop %v2485
        %v2574 = vtanh.pop %v2262
        %v2575 = vtanh.pop %v2488
        %v2576 = vtanh.pop %v2265
        %v2577 = vtanh.pop %v2491
        %v2578 = vtanh.pop %v2268
        %v2579 = vtanh.pop %v2494
        %v2580 = vtanh.pop %v2271
        %v2581 = vtanh.pop %v2497
        %v2582 = vtanh.pop %v2274
        %v2583 = vtanh.pop %v2500
        %v2584 = vtanh.pop %v2277
        %v2585 = vtanh.pop %v2503
        %v2586 = vtanh.pop %v2280
        %v2587 = vtanh.pop %v2506
        %v2588 = vtanh.pop %v2283
        %v2589 = vtanh.pop %v2509
        %v2590 = vtanh.pop %v2286
        %v2591 = vtanh.pop %v2512
        %v2592 = vtanh.pop %v2289
        %v2593 = vtanh.pop %v2515
        %v2594 = vtanh.pop %v2292
        %v2595 = vtanh.pop %v2518
        %v2596 = vtanh.pop %v2295
        %v2597 = vtanh.pop %v2521
        %v2598 = vtanh.pop %v2298
        %v2599 = vtanh.pop %v2524
        %v2600 = vtanh.pop %v2301
        %v2601 = vtanh.pop %v2527
        %v2602 = vtanh.pop %v2304
        %v2603 = vtanh.pop %v2530
        %v2604 = vtanh.pop %v2307
        %v2605 = vtanh.pop %v2533
        %v2606 = vtanh.pop %v2310
        %v2607 = vtanh.pop %v2536
        %v2608 = vtanh.pop %v2313
        %v2609 = vtanh.pop %v2539
        %v2610 = vtanh.pop %v2316
        %v2611 = vtanh.pop %v2542
        %v2612 = vtanh.pop %v2319
        %v2613 = vtanh.pop %v2545
        %v2614 = vtanh.pop %v2322
        %v2615 = vtanh.pop %v2548
        %v2616 = vtanh.pop %v2325
        %v2617 = vtanh.pop %v2551
        %v2618 = vtanh.pop %v2328
        %v2619 = vtanh.pop %v2554
        %v2620 = vld [vmem:[%s9] sm:$0xff]
        %v2621 = vld [vmem:[%s9 + $0x8] sm:$0xff]
        %v2622 = vld [vmem:[%s9 + $0x10] sm:$0xff]
        %v2623 = vld [vmem:[%s9 + $0x18] sm:$0xff]
        %v2624 = vld [vmem:[%s9 + $0x20] sm:$0xff]
        %v2625 = vld [vmem:[%s9 + $0x28] sm:$0xff]
        %v2626 = vld [vmem:[%s9 + $0x30] sm:$0xff]
        %v2627 = vld [vmem:[%s9 + $0x38] sm:$0xff]
        %v2628 = vld [vmem:[%s9 + $0x40] sm:$0xff]
        %v2629 = vld [vmem:[%s9 + $0x48] sm:$0xff]
        %v2630 = vld [vmem:[%s9 + $0x50] sm:$0xff]
        %v2631 = vld [vmem:[%s9 + $0x58] sm:$0xff]
        %v2632 = vld [vmem:[%s9 + $0x60] sm:$0xff]
        %v2633 = vld [vmem:[%s9 + $0x68] sm:$0xff]
        %v2634 = vld [vmem:[%s9 + $0x70] sm:$0xff]
        %v2635 = vld [vmem:[%s9 + $0x78] sm:$0xff]
        %v2636 = vld [vmem:[%s9 + $0x80] sm:$0xff]
        %v2637 = vld [vmem:[%s9 + $0x88] sm:$0xff]
        %v2638 = vld [vmem:[%s9 + $0x90] sm:$0xff]
        %v2639 = vld [vmem:[%s9 + $0x98] sm:$0xff]
        %v2640 = vld [vmem:[%s9 + $0xa0] sm:$0xff]
        %v2641 = vld [vmem:[%s9 + $0xa8] sm:$0xff]
        %v2642 = vld [vmem:[%s9 + $0xb0] sm:$0xff]
        %v2643 = vld [vmem:[%s9 + $0xb8] sm:$0xff]
        %v2644 = vld [vmem:[%s9 + $0xc0] sm:$0xff]
        %v2645 = vld [vmem:[%s9 + $0xc8] sm:$0xff]
        %v2646 = vld [vmem:[%s9 + $0xd0] sm:$0xff]
        %v2647 = vld [vmem:[%s9 + $0xd8] sm:$0xff]
        %v2648 = vld [vmem:[%s9 + $0xe0] sm:$0xff]
        %v2649 = vld [vmem:[%s9 + $0xe8] sm:$0xff]
        %v2650 = vld [vmem:[%s9 + $0xf0] sm:$0xff]
        %v2651 = vld [vmem:[%s9 + $0xf8] sm:$0xff]
        %v2652 = vld [vmem:[#allocation2] sm:$0x1]
        %v2654 = vperm.slane %v2652, 0
        %2656 = vmatpush.msra.mxu0 %v2635
        %2657 = vmatpush.msra.mxu0 %v2634
        %2658 = vmatpush.msra.mxu0 %v2633
        %2659 = vmatpush.msra.mxu0 %v2632
        %2660 = vmatpush.msra.mxu0 %v2631
        %2661 = vmatpush.msra.mxu0 %v2630
        %2662 = vmatpush.msra.mxu0 %v2629
        %2663 = vmatpush.msra.mxu0 %v2628
        %2664 = vmatpush.msra.mxu0 %v2627
        %2665 = vmatpush.msra.mxu0 %v2626
        %2666 = vmatpush.msra.mxu0 %v2625
        %2667 = vmatpush.msra.mxu0 %v2624
        %2668 = vmatpush.msra.mxu0 %v2623
        %2669 = vmatpush.msra.mxu0 %v2622
        %2670 = vmatpush.msra.mxu0 %v2621
        %2671 = vmatpush.msra.mxu0 %v2620
        %2672 = vmatmul.f32.gmra.mxu0 %v2556
        %v2673 = vpop.f32.mrf.mxu0
        %v2674 = vadd.f32 %v2654, %v2673
        %2675 = vmatmul.f32.gmra.mxu0 %v2558
        %v2676 = vpop.f32.mrf.mxu0
        %v2677 = vadd.f32 %v2654, %v2676
        %2678 = vmatmul.f32.gmra.mxu0 %v2560
        %v2679 = vpop.f32.mrf.mxu0
        %v2680 = vadd.f32 %v2654, %v2679
        %2681 = vmatmul.f32.gmra.mxu0 %v2562
        %v2682 = vpop.f32.mrf.mxu0
        %v2683 = vadd.f32 %v2654, %v2682
        %2684 = vmatmul.f32.gmra.mxu0 %v2564
        %v2685 = vpop.f32.mrf.mxu0
        %v2686 = vadd.f32 %v2654, %v2685
        %2687 = vmatmul.f32.gmra.mxu0 %v2566
        %v2688 = vpop.f32.mrf.mxu0
        %v2689 = vadd.f32 %v2654, %v2688
        %2690 = vmatmul.f32.gmra.mxu0 %v2568
        %v2691 = vpop.f32.mrf.mxu0
        %v2692 = vadd.f32 %v2654, %v2691
        %2693 = vmatmul.f32.gmra.mxu0 %v2570
        %v2694 = vpop.f32.mrf.mxu0
        %v2695 = vadd.f32 %v2654, %v2694
        %2696 = vmatmul.f32.gmra.mxu0 %v2572
        %v2697 = vpop.f32.mrf.mxu0
        %v2698 = vadd.f32 %v2654, %v2697
        %2699 = vmatmul.f32.gmra.mxu0 %v2574
        %v2700 = vpop.f32.mrf.mxu0
        %v2701 = vadd.f32 %v2654, %v2700
        %2702 = vmatmul.f32.gmra.mxu0 %v2576
        %v2703 = vpop.f32.mrf.mxu0
        %v2704 = vadd.f32 %v2654, %v2703
        %2705 = vmatmul.f32.gmra.mxu0 %v2578
        %v2706 = vpop.f32.mrf.mxu0
        %v2707 = vadd.f32 %v2654, %v2706
        %2708 = vmatmul.f32.gmra.mxu0 %v2580
        %v2709 = vpop.f32.mrf.mxu0
        %v2710 = vadd.f32 %v2654, %v2709
        %2711 = vmatmul.f32.gmra.mxu0 %v2582
        %v2712 = vpop.f32.mrf.mxu0
        %v2713 = vadd.f32 %v2654, %v2712
        %2714 = vmatmul.f32.gmra.mxu0 %v2584
        %v2715 = vpop.f32.mrf.mxu0
        %v2716 = vadd.f32 %v2654, %v2715
        %2717 = vmatmul.f32.gmra.mxu0 %v2586
        %v2718 = vpop.f32.mrf.mxu0
        %v2719 = vadd.f32 %v2654, %v2718
        %2720 = vmatmul.f32.gmra.mxu0 %v2588
        %v2721 = vpop.f32.mrf.mxu0
        %v2722 = vadd.f32 %v2654, %v2721
        %2723 = vmatmul.f32.gmra.mxu0 %v2590
        %v2724 = vpop.f32.mrf.mxu0
        %v2725 = vadd.f32 %v2654, %v2724
        %2726 = vmatmul.f32.gmra.mxu0 %v2592
        %v2727 = vpop.f32.mrf.mxu0
        %v2728 = vadd.f32 %v2654, %v2727
        %2729 = vmatmul.f32.gmra.mxu0 %v2594
        %v2730 = vpop.f32.mrf.mxu0
        %v2731 = vadd.f32 %v2654, %v2730
        %2732 = vmatmul.f32.gmra.mxu0 %v2596
        %v2733 = vpop.f32.mrf.mxu0
        %v2734 = vadd.f32 %v2654, %v2733
        %2735 = vmatmul.f32.gmra.mxu0 %v2598
        %v2736 = vpop.f32.mrf.mxu0
        %v2737 = vadd.f32 %v2654, %v2736
        %2738 = vmatmul.f32.gmra.mxu0 %v2600
        %v2739 = vpop.f32.mrf.mxu0
        %v2740 = vadd.f32 %v2654, %v2739
        %2741 = vmatmul.f32.gmra.mxu0 %v2602
        %v2742 = vpop.f32.mrf.mxu0
        %v2743 = vadd.f32 %v2654, %v2742
        %2744 = vmatmul.f32.gmra.mxu0 %v2604
        %v2745 = vpop.f32.mrf.mxu0
        %v2746 = vadd.f32 %v2654, %v2745
        %2747 = vmatmul.f32.gmra.mxu0 %v2606
        %v2748 = vpop.f32.mrf.mxu0
        %v2749 = vadd.f32 %v2654, %v2748
        %2750 = vmatmul.f32.gmra.mxu0 %v2608
        %v2751 = vpop.f32.mrf.mxu0
        %v2752 = vadd.f32 %v2654, %v2751
        %2753 = vmatmul.f32.gmra.mxu0 %v2610
        %v2754 = vpop.f32.mrf.mxu0
        %v2755 = vadd.f32 %v2654, %v2754
        %2756 = vmatmul.f32.gmra.mxu0 %v2612
        %v2757 = vpop.f32.mrf.mxu0
        %v2758 = vadd.f32 %v2654, %v2757
        %2759 = vmatmul.f32.gmra.mxu0 %v2614
        %v2760 = vpop.f32.mrf.mxu0
        %v2761 = vadd.f32 %v2654, %v2760
        %2762 = vmatmul.f32.gmra.mxu0 %v2616
        %v2763 = vpop.f32.mrf.mxu0
        %v2764 = vadd.f32 %v2654, %v2763
        %2765 = vmatmul.f32.gmra.mxu0 %v2618
        %v2766 = vpop.f32.mrf.mxu0
        %v2767 = vadd.f32 %v2654, %v2766
        %2768 = vdwg.mxu0
        %2769 = vmatpush.msra.mxu0 %v2651
        %2770 = vmatpush.msra.mxu0 %v2650
        %2771 = vmatpush.msra.mxu0 %v2649
        %2772 = vmatpush.msra.mxu0 %v2648
        %2773 = vmatpush.msra.mxu0 %v2647
        %2774 = vmatpush.msra.mxu0 %v2646
        %2775 = vmatpush.msra.mxu0 %v2645
        %2776 = vmatpush.msra.mxu0 %v2644
        %2777 = vmatpush.msra.mxu0 %v2643
        %2778 = vmatpush.msra.mxu0 %v2642
        %2779 = vmatpush.msra.mxu0 %v2641
        %2780 = vmatpush.msra.mxu0 %v2640
        %2781 = vmatpush.msra.mxu0 %v2639
        %2782 = vmatpush.msra.mxu0 %v2638
        %2783 = vmatpush.msra.mxu0 %v2637
        %2784 = vmatpush.msra.mxu0 %v2636
        %2785 = vmatmul.f32.gmra.mxu0 %v2557
        %v2786 = vpop.f32.mrf.mxu0
        %v2787 = vadd.f32 %v2674, %v2786
        %2788 = vmatmul.f32.gmra.mxu0 %v2559
        %v2789 = vpop.f32.mrf.mxu0
        %v2790 = vadd.f32 %v2677, %v2789
        %2791 = vmatmul.f32.gmra.mxu0 %v2561
        %v2792 = vpop.f32.mrf.mxu0
        %v2793 = vadd.f32 %v2680, %v2792
        %2794 = vmatmul.f32.gmra.mxu0 %v2563
        %v2795 = vpop.f32.mrf.mxu0
        %v2796 = vadd.f32 %v2683, %v2795
        %2797 = vmatmul.f32.gmra.mxu0 %v2565
        %v2798 = vpop.f32.mrf.mxu0
        %v2799 = vadd.f32 %v2686, %v2798
        %2800 = vmatmul.f32.gmra.mxu0 %v2567
        %v2801 = vpop.f32.mrf.mxu0
        %v2802 = vadd.f32 %v2689, %v2801
        %2803 = vmatmul.f32.gmra.mxu0 %v2569
        %v2804 = vpop.f32.mrf.mxu0
        %v2805 = vadd.f32 %v2692, %v2804
        %2806 = vmatmul.f32.gmra.mxu0 %v2571
        %v2807 = vpop.f32.mrf.mxu0
        %v2808 = vadd.f32 %v2695, %v2807
        %2809 = vmatmul.f32.gmra.mxu0 %v2573
        %v2810 = vpop.f32.mrf.mxu0
        %v2811 = vadd.f32 %v2698, %v2810
        %2812 = vmatmul.f32.gmra.mxu0 %v2575
        %v2813 = vpop.f32.mrf.mxu0
        %v2814 = vadd.f32 %v2701, %v2813
        %2815 = vmatmul.f32.gmra.mxu0 %v2577
        %v2816 = vpop.f32.mrf.mxu0
        %v2817 = vadd.f32 %v2704, %v2816
        %2818 = vmatmul.f32.gmra.mxu0 %v2579
        %v2819 = vpop.f32.mrf.mxu0
        %v2820 = vadd.f32 %v2707, %v2819
        %2821 = vmatmul.f32.gmra.mxu0 %v2581
        %v2822 = vpop.f32.mrf.mxu0
        %v2823 = vadd.f32 %v2710, %v2822
        %2824 = vmatmul.f32.gmra.mxu0 %v2583
        %v2825 = vpop.f32.mrf.mxu0
        %v2826 = vadd.f32 %v2713, %v2825
        %2827 = vmatmul.f32.gmra.mxu0 %v2585
        %v2828 = vpop.f32.mrf.mxu0
        %v2829 = vadd.f32 %v2716, %v2828
        %2830 = vmatmul.f32.gmra.mxu0 %v2587
        %v2831 = vpop.f32.mrf.mxu0
        %v2832 = vadd.f32 %v2719, %v2831
        %2833 = vmatmul.f32.gmra.mxu0 %v2589
        %v2834 = vpop.f32.mrf.mxu0
        %v2835 = vadd.f32 %v2722, %v2834
        %2836 = vmatmul.f32.gmra.mxu0 %v2591
        %v2837 = vpop.f32.mrf.mxu0
        %v2838 = vadd.f32 %v2725, %v2837
        %2839 = vmatmul.f32.gmra.mxu0 %v2593
        %v2840 = vpop.f32.mrf.mxu0
        %v2841 = vadd.f32 %v2728, %v2840
        %2842 = vmatmul.f32.gmra.mxu0 %v2595
        %v2843 = vpop.f32.mrf.mxu0
        %v2844 = vadd.f32 %v2731, %v2843
        %2845 = vmatmul.f32.gmra.mxu0 %v2597
        %v2846 = vpop.f32.mrf.mxu0
        %v2847 = vadd.f32 %v2734, %v2846
        %2848 = vmatmul.f32.gmra.mxu0 %v2599
        %v2849 = vpop.f32.mrf.mxu0
        %v2850 = vadd.f32 %v2737, %v2849
        %2851 = vmatmul.f32.gmra.mxu0 %v2601
        %v2852 = vpop.f32.mrf.mxu0
        %v2853 = vadd.f32 %v2740, %v2852
        %2854 = vmatmul.f32.gmra.mxu0 %v2603
        %v2855 = vpop.f32.mrf.mxu0
        %v2856 = vadd.f32 %v2743, %v2855
        %2857 = vmatmul.f32.gmra.mxu0 %v2605
        %v2858 = vpop.f32.mrf.mxu0
        %v2859 = vadd.f32 %v2746, %v2858
        %2860 = vmatmul.f32.gmra.mxu0 %v2607
        %v2861 = vpop.f32.mrf.mxu0
        %v2862 = vadd.f32 %v2749, %v2861
        %2863 = vmatmul.f32.gmra.mxu0 %v2609
        %v2864 = vpop.f32.mrf.mxu0
        %v2865 = vadd.f32 %v2752, %v2864
        %2866 = vmatmul.f32.gmra.mxu0 %v2611
        %v2867 = vpop.f32.mrf.mxu0
        %v2868 = vadd.f32 %v2755, %v2867
        %2869 = vmatmul.f32.gmra.mxu0 %v2613
        %v2870 = vpop.f32.mrf.mxu0
        %v2871 = vadd.f32 %v2758, %v2870
        %2872 = vmatmul.f32.gmra.mxu0 %v2615
        %v2873 = vpop.f32.mrf.mxu0
        %v2874 = vadd.f32 %v2761, %v2873
        %2875 = vmatmul.f32.gmra.mxu0 %v2617
        %v2876 = vpop.f32.mrf.mxu0
        %v2877 = vadd.f32 %v2764, %v2876
        %2878 = vmatmul.f32.gmra.mxu0 %v2619
        %v2879 = vpop.f32.mrf.mxu0
        %v2880 = vadd.f32 %v2767, %v2879
        %2881 = vdwg.mxu0
        %vm2882 = vcmask 7168
        %2883 = vst.msk [vmem:[%s407] sm:$0xff] %vm2882, %v2787
        %2884 = vst.msk [vmem:[%s407 + $0x8] sm:$0xff] %vm2882, %v2790
        %2885 = vst.msk [vmem:[%s407 + $0x10] sm:$0xff] %vm2882, %v2793
        %2886 = vst.msk [vmem:[%s407 + $0x18] sm:$0xff] %vm2882, %v2796
        %2887 = vst.msk [vmem:[%s407 + $0x20] sm:$0xff] %vm2882, %v2799
        %2888 = vst.msk [vmem:[%s407 + $0x28] sm:$0xff] %vm2882, %v2802
        %2889 = vst.msk [vmem:[%s407 + $0x30] sm:$0xff] %vm2882, %v2805
        %2890 = vst.msk [vmem:[%s407 + $0x38] sm:$0xff] %vm2882, %v2808
        %2891 = vst.msk [vmem:[%s407 + $0x40] sm:$0xff] %vm2882, %v2811
        %2892 = vst.msk [vmem:[%s407 + $0x48] sm:$0xff] %vm2882, %v2814
        %2893 = vst.msk [vmem:[%s407 + $0x50] sm:$0xff] %vm2882, %v2817
        %2894 = vst.msk [vmem:[%s407 + $0x58] sm:$0xff] %vm2882, %v2820
        %2895 = vst.msk [vmem:[%s407 + $0x60] sm:$0xff] %vm2882, %v2823
        %2896 = vst.msk [vmem:[%s407 + $0x68] sm:$0xff] %vm2882, %v2826
        %2897 = vst.msk [vmem:[%s407 + $0x70] sm:$0xff] %vm2882, %v2829
        %2898 = vst.msk [vmem:[%s407 + $0x78] sm:$0xff] %vm2882, %v2832
        %2899 = vst.msk [vmem:[%s407 + $0x80] sm:$0xff] %vm2882, %v2835
        %2900 = vst.msk [vmem:[%s407 + $0x88] sm:$0xff] %vm2882, %v2838
        %2901 = vst.msk [vmem:[%s407 + $0x90] sm:$0xff] %vm2882, %v2841
        %2902 = vst.msk [vmem:[%s407 + $0x98] sm:$0xff] %vm2882, %v2844
        %2903 = vst.msk [vmem:[%s407 + $0xa0] sm:$0xff] %vm2882, %v2847
        %2904 = vst.msk [vmem:[%s407 + $0xa8] sm:$0xff] %vm2882, %v2850
        %2905 = vst.msk [vmem:[%s407 + $0xb0] sm:$0xff] %vm2882, %v2853
        %2906 = vst.msk [vmem:[%s407 + $0xb8] sm:$0xff] %vm2882, %v2856
        %2907 = vst.msk [vmem:[%s407 + $0xc0] sm:$0xff] %vm2882, %v2859
        %2908 = vst.msk [vmem:[%s407 + $0xc8] sm:$0xff] %vm2882, %v2862
        %2909 = vst.msk [vmem:[%s407 + $0xd0] sm:$0xff] %vm2882, %v2865
        %2910 = vst.msk [vmem:[%s407 + $0xd8] sm:$0xff] %vm2882, %v2868
        %2911 = vst.msk [vmem:[%s407 + $0xe0] sm:$0xff] %vm2882, %v2871
        %2912 = vst.msk [vmem:[%s407 + $0xe8] sm:$0xff] %vm2882, %v2874
        %2913 = vst.msk [vmem:[%s407 + $0xf0] sm:$0xff] %vm2882, %v2877
        %2914 = vst.msk [vmem:[%s407 + $0xf8] sm:$0xff] %vm2882, %v2880
        %s2915 = sand.u32 %s269, 1
        %s2916 = sand.u32 %s269, 1
        %s2917 = smul.addr %s2916, 256
        %s2918 = scalar_lea.vmem [#allocation5], %s2917
        // Predicated region
        $region69: #{tpu_custom_call.1} parent=63 // pred_check
          %p2919 = pneg %p279
        $region70: #{tpu_custom_call.1} parent=63 // pred_check_branch
          %2921 = sbr.rel (%p2919) target = $region72
        $region71: #{tpu_custom_call.1} parent=63 // pred_region
          %s2922 = smul.u32 32, %s25
          %s2923 = ssub.s32 125, %s2922
          %p2924 = scmp.lt.s32.totalorder %s2923, 32
          %s2925 = scalar_select %p2924, %s2923, 32
          %s2926 = smul.u32 8, %s2925
          %p2927 = scmp.ne.s32.totalorder 0, %s2926
          %s2928 = smul.addr %s2922, 8
          %s2929 = scalar_lea.vmem %s11, %s2928
          // Predicated region
          $region73: #{tpu_custom_call.1} parent=71 // pred_check
            %p2930 = pneg %p2927
          $region74: #{tpu_custom_call.1} parent=71 // pred_check_branch
            %2932 = sbr.rel (%p2930) target = $region76
          $region75: #{tpu_custom_call.1} parent=71 // pred_region
            // Predicated region
            $region77: #{tpu_custom_call.1} parent=75 // pred_check
              _
            $region78: #{tpu_custom_call.1} parent=75 // pred_check_branch
              %2934 = sbr.rel (0) target = $region80
            $region79: #{tpu_custom_call.1} parent=75 // pred_region
              // Predicated region
              $region99: #{tpu_custom_call.1} parent=79 // pred_check
                _
              $region100: #{tpu_custom_call.1} parent=79 // pred_check_branch
                %3046 = sbr.rel (0) target = $region102
              $region101: #{tpu_custom_call.1} parent=79 // pred_region
                %s3047 = sshrl.u32 %s2925, 5
                // While loop
                $region103: #{tpu_custom_call.1} parent=101 // loop_pre_header
                  _
                $region104: #{tpu_custom_call.1} parent=101 // loop_header
                  %s3049 = sphi 0, %s3051
                  %p3050 = scmp.ge.s32.totalorder %s3049, %s3047
                  %s3054 = sphi 0, %s3123
                  %s3055 = sphi %s2918, %s3126
                  %s3056 = sphi %s2929, %s3127
                $region105: #{tpu_custom_call.1} parent=101 // loop_header_branch
                  %3053 = sbr.rel (%p3050) target = $region109
                $region106: #{tpu_custom_call.1} parent=101 // loop_body
                  %v3057 = vld [vmem:[%s3055] sm:$0xff]
                  %3058 = vst [vmem:[%s3056] sm:$0xff] %v3057
                  %v3059 = vld [vmem:[%s3055 + $0x8] sm:$0xff]
                  %3060 = vst [vmem:[%s3056 + $0x8] sm:$0xff] %v3059
                  %v3061 = vld [vmem:[%s3055 + $0x10] sm:$0xff]
                  %3062 = vst [vmem:[%s3056 + $0x10] sm:$0xff] %v3061
                  %v3063 = vld [vmem:[%s3055 + $0x18] sm:$0xff]
                  %3064 = vst [vmem:[%s3056 + $0x18] sm:$0xff] %v3063
                  %v3065 = vld [vmem:[%s3055 + $0x20] sm:$0xff]
                  %3066 = vst [vmem:[%s3056 + $0x20] sm:$0xff] %v3065
                  %v3067 = vld [vmem:[%s3055 + $0x28] sm:$0xff]
                  %3068 = vst [vmem:[%s3056 + $0x28] sm:$0xff] %v3067
                  %v3069 = vld [vmem:[%s3055 + $0x30] sm:$0xff]
                  %3070 = vst [vmem:[%s3056 + $0x30] sm:$0xff] %v3069
                  %v3071 = vld [vmem:[%s3055 + $0x38] sm:$0xff]
                  %3072 = vst [vmem:[%s3056 + $0x38] sm:$0xff] %v3071
                  %v3073 = vld [vmem:[%s3055 + $0x40] sm:$0xff]
                  %3074 = vst [vmem:[%s3056 + $0x40] sm:$0xff] %v3073
                  %v3075 = vld [vmem:[%s3055 + $0x48] sm:$0xff]
                  %3076 = vst [vmem:[%s3056 + $0x48] sm:$0xff] %v3075
                  %v3077 = vld [vmem:[%s3055 + $0x50] sm:$0xff]
                  %3078 = vst [vmem:[%s3056 + $0x50] sm:$0xff] %v3077
                  %v3079 = vld [vmem:[%s3055 + $0x58] sm:$0xff]
                  %3080 = vst [vmem:[%s3056 + $0x58] sm:$0xff] %v3079
                  %v3081 = vld [vmem:[%s3055 + $0x60] sm:$0xff]
                  %3082 = vst [vmem:[%s3056 + $0x60] sm:$0xff] %v3081
                  %v3083 = vld [vmem:[%s3055 + $0x68] sm:$0xff]
                  %3084 = vst [vmem:[%s3056 + $0x68] sm:$0xff] %v3083
                  %v3085 = vld [vmem:[%s3055 + $0x70] sm:$0xff]
                  %3086 = vst [vmem:[%s3056 + $0x70] sm:$0xff] %v3085
                  %v3087 = vld [vmem:[%s3055 + $0x78] sm:$0xff]
                  %3088 = vst [vmem:[%s3056 + $0x78] sm:$0xff] %v3087
                  %v3089 = vld [vmem:[%s3055 + $0x80] sm:$0xff]
                  %3090 = vst [vmem:[%s3056 + $0x80] sm:$0xff] %v3089
                  %v3091 = vld [vmem:[%s3055 + $0x88] sm:$0xff]
                  %3092 = vst [vmem:[%s3056 + $0x88] sm:$0xff] %v3091
                  %v3093 = vld [vmem:[%s3055 + $0x90] sm:$0xff]
                  %3094 = vst [vmem:[%s3056 + $0x90] sm:$0xff] %v3093
                  %v3095 = vld [vmem:[%s3055 + $0x98] sm:$0xff]
                  %3096 = vst [vmem:[%s3056 + $0x98] sm:$0xff] %v3095
                  %v3097 = vld [vmem:[%s3055 + $0xa0] sm:$0xff]
                  %3098 = vst [vmem:[%s3056 + $0xa0] sm:$0xff] %v3097
                  %v3099 = vld [vmem:[%s3055 + $0xa8] sm:$0xff]
                  %3100 = vst [vmem:[%s3056 + $0xa8] sm:$0xff] %v3099
                  %v3101 = vld [vmem:[%s3055 + $0xb0] sm:$0xff]
                  %3102 = vst [vmem:[%s3056 + $0xb0] sm:$0xff] %v3101
                  %v3103 = vld [vmem:[%s3055 + $0xb8] sm:$0xff]
                  %3104 = vst [vmem:[%s3056 + $0xb8] sm:$0xff] %v3103
                  %v3105 = vld [vmem:[%s3055 + $0xc0] sm:$0xff]
                  %3106 = vst [vmem:[%s3056 + $0xc0] sm:$0xff] %v3105
                  %v3107 = vld [vmem:[%s3055 + $0xc8] sm:$0xff]
                  %3108 = vst [vmem:[%s3056 + $0xc8] sm:$0xff] %v3107
                  %v3109 = vld [vmem:[%s3055 + $0xd0] sm:$0xff]
                  %3110 = vst [vmem:[%s3056 + $0xd0] sm:$0xff] %v3109
                  %v3111 = vld [vmem:[%s3055 + $0xd8] sm:$0xff]
                  %3112 = vst [vmem:[%s3056 + $0xd8] sm:$0xff] %v3111
                  %v3113 = vld [vmem:[%s3055 + $0xe0] sm:$0xff]
                  %3114 = vst [vmem:[%s3056 + $0xe0] sm:$0xff] %v3113
                  %v3115 = vld [vmem:[%s3055 + $0xe8] sm:$0xff]
                  %3116 = vst [vmem:[%s3056 + $0xe8] sm:$0xff] %v3115
                  %v3117 = vld [vmem:[%s3055 + $0xf0] sm:$0xff]
                  %3118 = vst [vmem:[%s3056 + $0xf0] sm:$0xff] %v3117
                  %v3119 = vld [vmem:[%s3055 + $0xf8] sm:$0xff]
                  %3120 = vst [vmem:[%s3056 + $0xf8] sm:$0xff] %v3119
                  %s3121 = sadd.s32 1, %s3054
                  %p3122 = scmp.ge.s32.totalorder %s3121, %s3047
                  %s3123 = scalar_select %p3122, 0, %s3121
                  %s3124 = smul.u32 %s3123, 256
                  %s3125 = smul.u32 %s3123, 256
                  %s3126 = scalar_lea.vmem %s2918, %s3124 [#allocation5]
                  %s3127 = scalar_lea.vmem %s2929, %s3125
                $region107: #{tpu_custom_call.1} parent=101 // loop_footer
                  %s3051 = sadd.s32 %s3049, 1
                $region108: #{tpu_custom_call.1} parent=101 // loop_footer_branch
                  %3048 = sbr.rel target = $region104
                $region109: #{tpu_custom_call.1} parent=101 // loop_exit
                  _
                %s3128 = sshrl.u32 %s2925, 5
                %s3129 = sand.u32 %s2925, 31
                %s3130 = smul.u32 %s3128, 32
                %s3131 = smul.u32 8, %s3130
                %s3132 = scalar_lea.vmem %s2918, %s3131 [#allocation5]
                %s3133 = smul.u32 8, %s3130
                %s3134 = scalar_lea.vmem %s2929, %s3133
                // While loop
                $region110: #{tpu_custom_call.1} parent=101 // loop_pre_header
                  _
                $region111: #{tpu_custom_call.1} parent=101 // loop_header
                  %s3136 = sphi 0, %s3138
                  %p3137 = scmp.ge.s32.totalorder %s3136, %s3129
                  %s3141 = sphi 0, %s3148
                  %s3142 = sphi %s3132, %s3151
                  %s3143 = sphi %s3134, %s3152
                $region112: #{tpu_custom_call.1} parent=101 // loop_header_branch
                  %3140 = sbr.rel (%p3137) target = $region116
                $region113: #{tpu_custom_call.1} parent=101 // loop_body
                  %v3144 = vld [vmem:[%s3142] sm:$0xff]
                  %3145 = vst [vmem:[%s3143] sm:$0xff] %v3144
                  %s3146 = sadd.s32 1, %s3141
                  %p3147 = scmp.ge.s32.totalorder %s3146, %s3129
                  %s3148 = scalar_select %p3147, 0, %s3146
                  %s3149 = smul.u32 %s3148, 8
                  %s3150 = smul.u32 %s3148, 8
                  %s3151 = scalar_lea.vmem %s3132, %s3149 [#allocation5]
                  %s3152 = scalar_lea.vmem %s3134, %s3150
                $region114: #{tpu_custom_call.1} parent=101 // loop_footer
                  %s3138 = sadd.s32 %s3136, 1
                $region115: #{tpu_custom_call.1} parent=101 // loop_footer_branch
                  %3135 = sbr.rel target = $region111
                $region116: #{tpu_custom_call.1} parent=101 // loop_exit
                  _
              $region102: #{tpu_custom_call.1} parent=79 // pred_fallthru
                _
              // Predicated region
              $region117: #{tpu_custom_call.1} parent=79 // pred_check
                _
              $region118: #{tpu_custom_call.1} parent=79 // pred_check_branch
                %3154 = sbr.rel target = $region120
              $region119: #{tpu_custom_call.1} parent=79 // pred_region
                _
              $region120: #{tpu_custom_call.1} parent=79 // pred_fallthru
                _
            $region80: #{tpu_custom_call.1} parent=75 // pred_fallthru
              _
            // Predicated region
            $region81: #{tpu_custom_call.1} parent=75 // pred_check
              _
            $region82: #{tpu_custom_call.1} parent=75 // pred_check_branch
              %2936 = sbr.rel target = $region84
            $region83: #{tpu_custom_call.1} parent=75 // pred_region
              %s2938 = ssub.s32 256, 1
              %s2939 = sshrl.u32 %s2925, 5
              // While loop
              $region85: #{tpu_custom_call.1} parent=83 // loop_pre_header
                _
              $region86: #{tpu_custom_call.1} parent=83 // loop_header
                %s2941 = sphi 0, %s2943
                %p2942 = scmp.ge.s32.totalorder %s2941, %s2939
                %s2946 = sphi 0, %s3015
                %s2947 = sphi %s2918, %s3018
                %s2948 = sphi %s2929, %s3019
              $region87: #{tpu_custom_call.1} parent=83 // loop_header_branch
                %2945 = sbr.rel (%p2942) target = $region91
              $region88: #{tpu_custom_call.1} parent=83 // loop_body
                %v2949 = vld [vmem:[%s2947] sm:%s2938]
                %2950 = vst [vmem:[%s2948] sm:%s2938] %v2949
                %v2951 = vld [vmem:[%s2947 + $0x8] sm:%s2938]
                %2952 = vst [vmem:[%s2948 + $0x8] sm:%s2938] %v2951
                %v2953 = vld [vmem:[%s2947 + $0x10] sm:%s2938]
                %2954 = vst [vmem:[%s2948 + $0x10] sm:%s2938] %v2953
                %v2955 = vld [vmem:[%s2947 + $0x18] sm:%s2938]
                %2956 = vst [vmem:[%s2948 + $0x18] sm:%s2938] %v2955
                %v2957 = vld [vmem:[%s2947 + $0x20] sm:%s2938]
                %2958 = vst [vmem:[%s2948 + $0x20] sm:%s2938] %v2957
                %v2959 = vld [vmem:[%s2947 + $0x28] sm:%s2938]
                %2960 = vst [vmem:[%s2948 + $0x28] sm:%s2938] %v2959
                %v2961 = vld [vmem:[%s2947 + $0x30] sm:%s2938]
                %2962 = vst [vmem:[%s2948 + $0x30] sm:%s2938] %v2961
                %v2963 = vld [vmem:[%s2947 + $0x38] sm:%s2938]
                %2964 = vst [vmem:[%s2948 + $0x38] sm:%s2938] %v2963
                %v2965 = vld [vmem:[%s2947 + $0x40] sm:%s2938]
                %2966 = vst [vmem:[%s2948 + $0x40] sm:%s2938] %v2965
                %v2967 = vld [vmem:[%s2947 + $0x48] sm:%s2938]
                %2968 = vst [vmem:[%s2948 + $0x48] sm:%s2938] %v2967
                %v2969 = vld [vmem:[%s2947 + $0x50] sm:%s2938]
                %2970 = vst [vmem:[%s2948 + $0x50] sm:%s2938] %v2969
                %v2971 = vld [vmem:[%s2947 + $0x58] sm:%s2938]
                %2972 = vst [vmem:[%s2948 + $0x58] sm:%s2938] %v2971
                %v2973 = vld [vmem:[%s2947 + $0x60] sm:%s2938]
                %2974 = vst [vmem:[%s2948 + $0x60] sm:%s2938] %v2973
                %v2975 = vld [vmem:[%s2947 + $0x68] sm:%s2938]
                %2976 = vst [vmem:[%s2948 + $0x68] sm:%s2938] %v2975
                %v2977 = vld [vmem:[%s2947 + $0x70] sm:%s2938]
                %2978 = vst [vmem:[%s2948 + $0x70] sm:%s2938] %v2977
                %v2979 = vld [vmem:[%s2947 + $0x78] sm:%s2938]
                %2980 = vst [vmem:[%s2948 + $0x78] sm:%s2938] %v2979
                %v2981 = vld [vmem:[%s2947 + $0x80] sm:%s2938]
                %2982 = vst [vmem:[%s2948 + $0x80] sm:%s2938] %v2981
                %v2983 = vld [vmem:[%s2947 + $0x88] sm:%s2938]
                %2984 = vst [vmem:[%s2948 + $0x88] sm:%s2938] %v2983
                %v2985 = vld [vmem:[%s2947 + $0x90] sm:%s2938]
                %2986 = vst [vmem:[%s2948 + $0x90] sm:%s2938] %v2985
                %v2987 = vld [vmem:[%s2947 + $0x98] sm:%s2938]
                %2988 = vst [vmem:[%s2948 + $0x98] sm:%s2938] %v2987
                %v2989 = vld [vmem:[%s2947 + $0xa0] sm:%s2938]
                %2990 = vst [vmem:[%s2948 + $0xa0] sm:%s2938] %v2989
                %v2991 = vld [vmem:[%s2947 + $0xa8] sm:%s2938]
                %2992 = vst [vmem:[%s2948 + $0xa8] sm:%s2938] %v2991
                %v2993 = vld [vmem:[%s2947 + $0xb0] sm:%s2938]
                %2994 = vst [vmem:[%s2948 + $0xb0] sm:%s2938] %v2993
                %v2995 = vld [vmem:[%s2947 + $0xb8] sm:%s2938]
                %2996 = vst [vmem:[%s2948 + $0xb8] sm:%s2938] %v2995
                %v2997 = vld [vmem:[%s2947 + $0xc0] sm:%s2938]
                %2998 = vst [vmem:[%s2948 + $0xc0] sm:%s2938] %v2997
                %v2999 = vld [vmem:[%s2947 + $0xc8] sm:%s2938]
                %3000 = vst [vmem:[%s2948 + $0xc8] sm:%s2938] %v2999
                %v3001 = vld [vmem:[%s2947 + $0xd0] sm:%s2938]
                %3002 = vst [vmem:[%s2948 + $0xd0] sm:%s2938] %v3001
                %v3003 = vld [vmem:[%s2947 + $0xd8] sm:%s2938]
                %3004 = vst [vmem:[%s2948 + $0xd8] sm:%s2938] %v3003
                %v3005 = vld [vmem:[%s2947 + $0xe0] sm:%s2938]
                %3006 = vst [vmem:[%s2948 + $0xe0] sm:%s2938] %v3005
                %v3007 = vld [vmem:[%s2947 + $0xe8] sm:%s2938]
                %3008 = vst [vmem:[%s2948 + $0xe8] sm:%s2938] %v3007
                %v3009 = vld [vmem:[%s2947 + $0xf0] sm:%s2938]
                %3010 = vst [vmem:[%s2948 + $0xf0] sm:%s2938] %v3009
                %v3011 = vld [vmem:[%s2947 + $0xf8] sm:%s2938]
                %3012 = vst [vmem:[%s2948 + $0xf8] sm:%s2938] %v3011
                %s3013 = sadd.s32 1, %s2946
                %p3014 = scmp.ge.s32.totalorder %s3013, %s2939
                %s3015 = scalar_select %p3014, 0, %s3013
                %s3016 = smul.u32 %s3015, 256
                %s3017 = smul.u32 %s3015, 256
                %s3018 = scalar_lea.vmem %s2918, %s3016 [#allocation5]
                %s3019 = scalar_lea.vmem %s2929, %s3017
              $region89: #{tpu_custom_call.1} parent=83 // loop_footer
                %s2943 = sadd.s32 %s2941, 1
              $region90: #{tpu_custom_call.1} parent=83 // loop_footer_branch
                %2940 = sbr.rel target = $region86
              $region91: #{tpu_custom_call.1} parent=83 // loop_exit
                _
              %s3020 = sshrl.u32 %s2925, 5
              %s3021 = sand.u32 %s2925, 31
              %s3022 = smul.u32 %s3020, 32
              %s3023 = smul.u32 8, %s3022
              %s3024 = scalar_lea.vmem %s2918, %s3023 [#allocation5]
              %s3025 = smul.u32 8, %s3022
              %s3026 = scalar_lea.vmem %s2929, %s3025
              // While loop
              $region92: #{tpu_custom_call.1} parent=83 // loop_pre_header
                _
              $region93: #{tpu_custom_call.1} parent=83 // loop_header
                %s3028 = sphi 0, %s3030
                %p3029 = scmp.ge.s32.totalorder %s3028, %s3021
                %s3033 = sphi 0, %s3040
                %s3034 = sphi %s3024, %s3043
                %s3035 = sphi %s3026, %s3044
              $region94: #{tpu_custom_call.1} parent=83 // loop_header_branch
                %3032 = sbr.rel (%p3029) target = $region98
              $region95: #{tpu_custom_call.1} parent=83 // loop_body
                %v3036 = vld [vmem:[%s3034] sm:%s2938]
                %3037 = vst [vmem:[%s3035] sm:%s2938] %v3036
                %s3038 = sadd.s32 1, %s3033
                %p3039 = scmp.ge.s32.totalorder %s3038, %s3021
                %s3040 = scalar_select %p3039, 0, %s3038
                %s3041 = smul.u32 %s3040, 8
                %s3042 = smul.u32 %s3040, 8
                %s3043 = scalar_lea.vmem %s3024, %s3041 [#allocation5]
                %s3044 = scalar_lea.vmem %s3026, %s3042
              $region96: #{tpu_custom_call.1} parent=83 // loop_footer
                %s3030 = sadd.s32 %s3028, 1
              $region97: #{tpu_custom_call.1} parent=83 // loop_footer_branch
                %3027 = sbr.rel target = $region93
              $region98: #{tpu_custom_call.1} parent=83 // loop_exit
                _
            $region84: #{tpu_custom_call.1} parent=75 // pred_fallthru
              _
          $region76: #{tpu_custom_call.1} parent=71 // pred_fallthru
            _
          %3155 = vnop
        $region72: #{tpu_custom_call.1} parent=63 // pred_fallthru
          _
      $region64: #{tpu_custom_call.1} parent=5 // pred_fallthru
        _
      %p3156 = scmp.le.s32.totalorder 2, %s20
      // Predicated region
      $region121: #{tpu_custom_call.1} parent=5 // pred_check
        %p3157 = pneg %p3156
      $region122: #{tpu_custom_call.1} parent=5 // pred_check_branch
        %3159 = sbr.rel (%p3157) target = $region124
      $region123: #{tpu_custom_call.1} parent=5 // pred_region
        %s3160 = ssub.s32 %s20, 2
        // Predicated region
        $region125: #{tpu_custom_call.1} parent=123 // pred_check
          %p3161 = pneg %p285
        $region126: #{tpu_custom_call.1} parent=123 // pred_check_branch
          %3163 = sbr.rel (%p3161) target = $region128
        $region127: #{tpu_custom_call.1} parent=123 // pred_region
          %s3164 = sand.u32 %s270, 1
          %s3165 = sand.u32 %s270, 1
          %s3166 = smul.addr %s3165, 256
          %s3167 = scalar_lea.vmem [#allocation5], %s3166
        $region128: #{tpu_custom_call.1} parent=123 // pred_fallthru
          _
      $region124: #{tpu_custom_call.1} parent=5 // pred_fallthru
        _
    $region6: #{tpu_custom_call.1} parent=1 // loop_footer
      %s24 = sadd.s32 1, %s20
    $region7: #{tpu_custom_call.1} parent=1 // loop_footer_branch
      %19 = sbr.rel target = $region3
    $region8: #{tpu_custom_call.1} parent=1 // loop_exit
      _
    %3168 = vsyncpa [#allocation4], 1
    %s3169 = scalar_lea.sflag [#allocation4], 1
    %3170 = vsyncpa %s3169, 1

</llo_original>
